<compile_context>
chip_gen: v7x
topology: tpu7x:2x2x1
jax: 0.10.0
libtpu: 0.0.40
codegen_flags: <defaults>
</compile_context>

<pallas_src>
import functools

import jax
import jax.numpy as jnp
from jax.experimental import pallas as pl
from jax.experimental.pallas import tpu as pltpu

BN_EPS = 1e-5


def _conv_relu(h, w_flat, bias, pos, *, k_size, seq_len):
    """Fused conv1d('same') + folded-BN bias + ReLU over one stacked tile.

    h:      (N, Cin) f32 with N = TB * seq_len (whole sequences stacked).
    w_flat: (K*Cin, Cout) f32 with BN scale folded in; row index = k*Cin + c.
    bias:   (1, Cout) folded BatchNorm bias (+ scaled conv bias).
    pos:    (N, 1) int32, position of each row inside its own sequence.
    """
    n, _ = h.shape
    pad_l = (k_size - 1) // 2          # PyTorch 'same': left = (K-1)//2
    cols = []
    for k in range(k_size):            # static unroll over (small) kernel taps
        shift = k - pad_l              # out[t] uses h[t + shift]
        if shift == 0:
            cols.append(h)
        else:
            # rolled[i] = h[(i + shift) mod N]   (circular over the tile)
            rolled = pltpu.roll(h, shift=(-shift) % n, axis=0)
            # mask rows whose source falls outside their own sequence
            if shift > 0:
                valid = pos < (seq_len - shift)
            else:
                valid = pos >= (-shift)
            cols.append(jnp.where(valid, rolled, 0.0))
    im2col = jnp.concatenate(cols, axis=-1)          # (N, K*Cin)
    acc = jnp.dot(im2col, w_flat, preferred_element_type=jnp.float32)
    return jnp.maximum(acc + bias, 0.0)


def oscnn_kernel(x1_ref, w1_ref, b1_ref, w2_ref, b2_ref, w3_ref, b3_ref,
                 fcw_ref, fcb_ref, out_ref, *, seq_len, tile_b):
    n = tile_b * seq_len                              # rows in this batch tile

    # Row position inside its own sequence, computed once and reused.
    pos = jax.lax.broadcasted_iota(jnp.int32, (n, 1), 0) % seq_len

    # Layer 1: taps already unrolled into lanes by the wrapper (Cin == 1),
    # so it is a single (N, K1) @ (K1, C1) MXU matmul + bias + ReLU.
    h = jnp.dot(x1_ref[...], w1_ref[...], preferred_element_type=jnp.float32)
    h = jnp.maximum(h + b1_ref[...], 0.0)

    # Layers 2 / 3: in-kernel im2col via roll + boundary mask, one matmul each.
    h = _conv_relu(h, w2_ref[...], b2_ref[...], pos, k_size=5, seq_len=seq_len)
    h = _conv_relu(h, w3_ref[...], b3_ref[...], pos, k_size=3, seq_len=seq_len)

    # Global average pooling: per-sequence sublane reduction (XLU), no dense
    # pooling matrix and no extra operand DMA.
    c3 = h.shape[-1]
    pooled = jnp.sum(h.reshape(tile_b, seq_len, c3), axis=1) * (1.0 / seq_len)

    # FC layer + single store of the (TB, num_classes) output block.
    out_ref[...] = (jnp.dot(pooled, fcw_ref[...],
                            preferred_element_type=jnp.float32) + fcb_ref[...])


def _fold_bn(w_flat, conv_b, gamma, beta, mean, var, eps=BN_EPS):
    """Fold eval-mode BN into the flattened conv weight columns + a bias."""
    scale = gamma / jnp.sqrt(var + eps)                       # (Cout,)
    w = (w_flat * scale[None, :]).astype(jnp.float32)         # (K*Cin, Cout)
    b = ((conv_b - mean) * scale + beta).reshape(1, -1).astype(jnp.float32)
    return w, b


def prepare_params(p):
    """One-time prep: weight transposes, tap flattening, BN folding."""
    # conv weights: torch (Cout, Cin, K) -> (K, Cin, Cout) -> (K*Cin, Cout)
    w1_flat = jnp.transpose(p["conv1_w"][:, 0, :], (1, 0))             # (8, C1)
    w2_flat = jnp.transpose(p["conv2_w"], (2, 1, 0)).reshape(
        -1, p["conv2_w"].shape[0])                                      # (5*C1, C2)
    w3_flat = jnp.transpose(p["conv3_w"], (2, 1, 0)).reshape(
        -1, p["conv3_w"].shape[0])                                      # (3*C2, C3)

    w1, b1 = _fold_bn(w1_flat, p["conv1_b"], p["bn1_g"], p["bn1_b"],
                      p["bn1_m"], p["bn1_v"])
    w2, b2 = _fold_bn(w2_flat, p["conv2_b"], p["bn2_g"], p["bn2_b"],
                      p["bn2_m"], p["bn2_v"])
    w3, b3 = _fold_bn(w3_flat, p["conv3_b"], p["bn3_g"], p["bn3_b"],
                      p["bn3_m"], p["bn3_v"])

    return dict(w1=w1, b1=b1, w2=w2, b2=b2, w3=w3, b3=b3,
                fcw=p["fc_w"].T.astype(jnp.float32),        # (C3, num_classes)
                fcb=p["fc_b"].reshape(1, -1).astype(jnp.float32))


def _pick_tile_b(batch, seq_len, max_rows):
    """Largest batch tile TB s.t. TB | B, TB*L <= max_rows, and the (TB, NC)
    output block is legal (TB % 8 == 0 or TB == B)."""
    best = None
    for tb in range(1, batch + 1):
        if batch % tb:
            continue
        if tb * seq_len > max_rows:
            continue
        if tb % 8 == 0 or tb == batch:
            best = tb
    return best if best is not None else batch


@functools.partial(jax.jit, static_argnames=("tile_rows",))
def oscnn_forward(x, kp, *, tile_rows=2048):
    """x: (B, L, 1) float32 -> (B, num_classes) float32."""
    B, L, cin = x.shape
    assert cin == 1
    # Sequence length must tile cleanly into (8,128) sublane tiles so the
    # in-kernel pooling reshape is a pure reinterpretation.
    assert L % 8 == 0
    n = B * L
    k1 = kp["w1"].shape[0]                 # first conv kernel size (8)
    num_classes = kp["fcw"].shape[1]

    tb = _pick_tile_b(B, L, tile_rows)     # batch tile (multiple of L rows)
    rows = tb * L
    grid = (B // tb,)

    # Layer-1 im2col built in the wrapper (depends only on the raw input):
    # rows are stacked batch*time, lanes are the K1 conv taps.
    pad_l = (k1 - 1) // 2
    x2d = x[..., 0].astype(jnp.float32)                               # (B, L)
    xp = jnp.pad(x2d, ((0, 0), (pad_l, k1 - 1 - pad_l)))              # (B, L+K1-1)
    tap_idx = jnp.arange(L)[:, None] + jnp.arange(k1)[None, :]        # (L, K1)
    x_im2col = xp[:, tap_idx].reshape(n, k1)                          # (B*L, K1)

    def resident(arr):   # full-array block, VMEM-resident across grid steps
        return pl.BlockSpec(arr.shape, lambda i: (0, 0))

    kernel = functools.partial(oscnn_kernel, seq_len=L, tile_b=tb)
    return pl.pallas_call(
        kernel,
        out_shape=jax.ShapeDtypeStruct((B, num_classes), jnp.float32),
        grid=grid,
        in_specs=[
            pl.BlockSpec((rows, k1), lambda i: (i, 0)),   # batch-tiled input
            resident(kp["w1"]), resident(kp["b1"]),
            resident(kp["w2"]), resident(kp["b2"]),
            resident(kp["w3"]), resident(kp["b3"]),
            resident(kp["fcw"]), resident(kp["fcb"]),
        ],
        out_specs=pl.BlockSpec((tb, num_classes), lambda i: (i, 0)),
        compiler_params=pltpu.CompilerParams(
            dimension_semantics=("parallel",),
            vmem_limit_bytes=32 * 1024 * 1024),
    )(x_im2col, kp["w1"], kp["b1"], kp["w2"], kp["b2"],
      kp["w3"], kp["b3"], kp["fcw"], kp["fcb"])


def ref_forward(x, p):
    """Pure-JAX reference matching PyTorch eval-mode forward."""
    h = jnp.transpose(x, (0, 2, 1))        # (B, C, L)
    layers = [("conv1", "bn1", (3, 4)), ("conv2", "bn2", (2, 2)),
              ("conv3", "bn3", (1, 1))]
    for cname, bname, pads in layers:
        w = p[f"{cname}_w"]                # (Cout, Cin, K)
        b = p[f"{cname}_b"]
        h = jax.lax.conv_general_dilated(
            h, w, window_strides=(1,), padding=[pads],
            dimension_numbers=("NCH", "OIH", "NCH")) + b[None, :, None]
        g, bb, m, v = p[f"{bname}_g"], p[f"{bname}_b"], p[f"{bname}_m"], p[f"{bname}_v"]
        h = (h - m[None, :, None]) / jnp.sqrt(v[None, :, None] + BN_EPS)
        h = h * g[None, :, None] + bb[None, :, None]
        h = jnp.maximum(h, 0.0)
    pooled = jnp.mean(h, axis=2)           # (B, C3)
    return pooled @ p["fc_w"].T + p["fc_b"]


def make_params(key, num_classes=10, cnn_filters=(128, 256, 128)):
    c1, c2, c3 = cnn_filters
    ks = jax.random.split(key, 16)
    p = {
        "conv1_w": 0.1 * jax.random.normal(ks[0], (c1, 1, 8), jnp.float32),
        "conv1_b": 0.1 * jax.random.normal(ks[1], (c1,), jnp.float32),
        "conv2_w": 0.05 * jax.random.normal(ks[2], (c2, c1, 5), jnp.float32),
        "conv2_b": 0.1 * jax.random.normal(ks[3], (c2,), jnp.float32),
        "conv3_w": 0.05 * jax.random.normal(ks[4], (c3, c2, 3), jnp.float32),
        "conv3_b": 0.1 * jax.random.normal(ks[5], (c3,), jnp.float32),
        "bn1_g": 1.0 + 0.1 * jax.random.normal(ks[6], (c1,), jnp.float32),
        "bn1_b": 0.1 * jax.random.normal(ks[7], (c1,), jnp.float32),
        "bn1_m": 0.1 * jax.random.normal(ks[8], (c1,), jnp.float32),
        "bn1_v": 1.0 + 0.1 * jax.random.uniform(ks[9], (c1,), jnp.float32),
        "bn2_g": 1.0 + 0.1 * jax.random.normal(ks[10], (c2,), jnp.float32),
        "bn2_b": 0.1 * jax.random.normal(ks[11], (c2,), jnp.float32),
        "bn2_m": 0.1 * jax.random.normal(ks[12], (c2,), jnp.float32),
        "bn2_v": 1.0 + 0.1 * jax.random.uniform(ks[13], (c2,), jnp.float32),
        "bn3_g": jnp.ones((c3,), jnp.float32),
        "bn3_b": jnp.zeros((c3,), jnp.float32),
        "bn3_m": jnp.zeros((c3,), jnp.float32),
        "bn3_v": jnp.ones((c3,), jnp.float32),
        "fc_w": 0.1 * jax.random.normal(ks[14], (num_classes, c3), jnp.float32),
        "fc_b": 0.1 * jax.random.normal(ks[15], (num_classes,), jnp.float32),
    }
    return p


if __name__ == "__main__":
    key = jax.random.PRNGKey(0)
    pkey, xkey = jax.random.split(key)

    num_classes = 10
    B, L = 16, 16                    # (batch, sequence_length, input_size=1)
    params = make_params(pkey, num_classes=num_classes)
    x = jax.random.normal(xkey, (B, L, 1), jnp.float32)

    kparams = prepare_params(params)          # one-time weight prep / BN fold
    # tile_rows=128 -> TB=8, grid=(2,): exercises batch tiling + pipelining.
    out = oscnn_forward(x, kparams, tile_rows=128)
    out = jax.block_until_ready(out)

    ref = ref_forward(x, params)
    assert out.shape == (B, num_classes)
    assert jnp.allclose(out, ref, rtol=1e-4, atol=1e-4), (
        f"mismatch: max abs err {jnp.max(jnp.abs(out - ref))}")

    print("KERNEL_OK")
</pallas_src>

<mosaic_0001>
module attributes {stable_mosaic.version = 11 : i64} {
  func.func @oscnn_kernel(%arg0: i32, %arg1: memref<128x8xf32, #tpu.memory_space<vmem>>, %arg2: memref<8x128xf32, #tpu.memory_space<vmem>>, %arg3: memref<1x128xf32, #tpu.memory_space<vmem>>, %arg4: memref<640x256xf32, #tpu.memory_space<vmem>>, %arg5: memref<1x256xf32, #tpu.memory_space<vmem>>, %arg6: memref<768x128xf32, #tpu.memory_space<vmem>>, %arg7: memref<1x128xf32, #tpu.memory_space<vmem>>, %arg8: memref<128x10xf32, #tpu.memory_space<vmem>>, %arg9: memref<1x10xf32, #tpu.memory_space<vmem>>, %arg10: memref<8x10xf32, #tpu.memory_space<vmem>>) attributes {dimension_semantics = [#tpu.dimension_semantics<parallel>], iteration_bounds = array<i64: 2>, scalar_prefetch = 0 : i64, scratch_operands = 0 : i64, tpu.core_type = #tpu.core_type<tc>, window_params = [{transform_indices = @transform_0, window_bounds = array<i64: 128, 8>}, {pipeline_mode = #tpu.pipeline_mode<synchronous>, transform_indices = @transform_1, window_bounds = array<i64: 8, 128>}, {pipeline_mode = #tpu.pipeline_mode<synchronous>, transform_indices = @transform_2, window_bounds = array<i64: 1, 128>}, {pipeline_mode = #tpu.pipeline_mode<synchronous>, transform_indices = @transform_3, window_bounds = array<i64: 640, 256>}, {pipeline_mode = #tpu.pipeline_mode<synchronous>, transform_indices = @transform_4, window_bounds = array<i64: 1, 256>}, {pipeline_mode = #tpu.pipeline_mode<synchronous>, transform_indices = @transform_5, window_bounds = array<i64: 768, 128>}, {pipeline_mode = #tpu.pipeline_mode<synchronous>, transform_indices = @transform_6, window_bounds = array<i64: 1, 128>}, {pipeline_mode = #tpu.pipeline_mode<synchronous>, transform_indices = @transform_7, window_bounds = array<i64: 128, 10>}, {pipeline_mode = #tpu.pipeline_mode<synchronous>, transform_indices = @transform_8, window_bounds = array<i64: 1, 10>}, {transform_indices = @transform_9, window_bounds = array<i64: 8, 10>}]} {
    %0 = tpu.iota {dimensions = array<i32: 0>} : vector<128x1xi32>
    %c16_i32 = arith.constant 16 : i32
    %c0_i32 = arith.constant 0 : i32
    %1 = arith.cmpi eq, %c16_i32, %c0_i32 : i32
    %c1_i32 = arith.constant 1 : i32
    %2 = arith.select %1, %c1_i32, %c16_i32 : i32
    %3 = vector.broadcast %2 : i32 to vector<128x1xi32>
    %4 = arith.remsi %0, %3 : vector<128x1xi32>
    %c0_i32_0 = arith.constant 0 : i32
    %5 = vector.broadcast %c0_i32_0 : i32 to vector<128x1xi32>
    %6 = arith.cmpi ne, %4, %5 : vector<128x1xi32>
    %c0_i32_1 = arith.constant 0 : i32
    %7 = vector.broadcast %c0_i32_1 : i32 to vector<128x1xi32>
    %8 = arith.cmpi slt, %4, %7 : vector<128x1xi32>
    %c0_i32_2 = arith.constant 0 : i32
    %9 = arith.cmpi slt, %2, %c0_i32_2 : i32
    %10 = vector.broadcast %9 : i1 to vector<128x1xi1>
    %11 = vector.broadcast %10 : vector<128x1xi1> to vector<128x1xi1>
    %12 = arith.xori %8, %11 : vector<128x1xi1>
    %13 = arith.andi %12, %6 : vector<128x1xi1>
    %14 = vector.broadcast %2 : i32 to vector<128x1xi32>
    %15 = arith.addi %4, %14 : vector<128x1xi32>
    %16 = arith.select %13, %15, %4 : vector<128x1xi1>, vector<128x1xi32>
    %c0 = arith.constant 0 : index
    %c0_3 = arith.constant 0 : index
    %17 = vector.load %arg1[%c0, %c0_3] : memref<128x8xf32, #tpu.memory_space<vmem>>, vector<128x8xf32>
    %c0_4 = arith.constant 0 : index
    %c0_5 = arith.constant 0 : index
    %18 = vector.load %arg2[%c0_4, %c0_5] : memref<8x128xf32, #tpu.memory_space<vmem>>, vector<8x128xf32>
    %cst = arith.constant dense<0.000000e+00> : vector<128x128xf32>
    %19 = tpu.matmul %17, %18, %cst {dimension_numbers = #tpu.dot_dimension_numbers<[1], [0], [0], [1], [0, 0, 1, 1], [], []>} : vector<128x8xf32>, vector<8x128xf32>, vector<128x128xf32> -> vector<128x128xf32>
    %c0_6 = arith.constant 0 : index
    %c0_7 = arith.constant 0 : index
    %20 = vector.load %arg3[%c0_6, %c0_7] : memref<1x128xf32, #tpu.memory_space<vmem>>, vector<1x128xf32>
    %21 = vector.broadcast %20 : vector<1x128xf32> to vector<128x128xf32>
    %22 = arith.addf %19, %21 : vector<128x128xf32>
    %cst_8 = arith.constant 0.000000e+00 : f32
    %23 = vector.broadcast %cst_8 : f32 to vector<128x128xf32>
    %24 = arith.maximumf %22, %23 : vector<128x128xf32>
    %c0_9 = arith.constant 0 : index
    %c0_10 = arith.constant 0 : index
    %25 = vector.load %arg4[%c0_9, %c0_10] : memref<640x256xf32, #tpu.memory_space<vmem>>, vector<640x256xf32>
    %c0_11 = arith.constant 0 : index
    %c0_12 = arith.constant 0 : index
    %26 = vector.load %arg5[%c0_11, %c0_12] : memref<1x256xf32, #tpu.memory_space<vmem>>, vector<1x256xf32>
    %c2_i32 = arith.constant 2 : i32
    %27 = tpu.dynamic_rotate %24 by %c2_i32 dim 0 : vector<128x128xf32>, i32 -> vector<128x128xf32>
    %c2_i32_13 = arith.constant 2 : i32
    %28 = vector.broadcast %c2_i32_13 : i32 to vector<128x1xi32>
    %29 = arith.cmpi sge, %16, %28 : vector<128x1xi32>
    %cst_14 = arith.constant 0.000000e+00 : f32
    %30 = vector.shape_cast %29 : vector<128x1xi1> to vector<128x1xi1>
    %31 = vector.broadcast %30 : vector<128x1xi1> to vector<128x128xi1>
    %32 = vector.broadcast %cst_14 : f32 to vector<128x128xf32>
    %33 = arith.select %31, %27, %32 : vector<128x128xi1>, vector<128x128xf32>
    %c1_i32_15 = arith.constant 1 : i32
    %34 = tpu.dynamic_rotate %24 by %c1_i32_15 dim 0 : vector<128x128xf32>, i32 -> vector<128x128xf32>
    %c1_i32_16 = arith.constant 1 : i32
    %35 = vector.broadcast %c1_i32_16 : i32 to vector<128x1xi32>
    %36 = arith.cmpi sge, %16, %35 : vector<128x1xi32>
    %cst_17 = arith.constant 0.000000e+00 : f32
    %37 = vector.shape_cast %36 : vector<128x1xi1> to vector<128x1xi1>
    %38 = vector.broadcast %37 : vector<128x1xi1> to vector<128x128xi1>
    %39 = vector.broadcast %cst_17 : f32 to vector<128x128xf32>
    %40 = arith.select %38, %34, %39 : vector<128x128xi1>, vector<128x128xf32>
    %c127_i32 = arith.constant 127 : i32
    %41 = tpu.dynamic_rotate %24 by %c127_i32 dim 0 : vector<128x128xf32>, i32 -> vector<128x128xf32>
    %c15_i32 = arith.constant 15 : i32
    %42 = vector.broadcast %c15_i32 : i32 to vector<128x1xi32>
    %43 = arith.cmpi slt, %16, %42 : vector<128x1xi32>
    %cst_18 = arith.constant 0.000000e+00 : f32
    %44 = vector.shape_cast %43 : vector<128x1xi1> to vector<128x1xi1>
    %45 = vector.broadcast %44 : vector<128x1xi1> to vector<128x128xi1>
    %46 = vector.broadcast %cst_18 : f32 to vector<128x128xf32>
    %47 = arith.select %45, %41, %46 : vector<128x128xi1>, vector<128x128xf32>
    %c126_i32 = arith.constant 126 : i32
    %48 = tpu.dynamic_rotate %24 by %c126_i32 dim 0 : vector<128x128xf32>, i32 -> vector<128x128xf32>
    %c14_i32 = arith.constant 14 : i32
    %49 = vector.broadcast %c14_i32 : i32 to vector<128x1xi32>
    %50 = arith.cmpi slt, %16, %49 : vector<128x1xi32>
    %cst_19 = arith.constant 0.000000e+00 : f32
    %51 = vector.shape_cast %50 : vector<128x1xi1> to vector<128x1xi1>
    %52 = vector.broadcast %51 : vector<128x1xi1> to vector<128x128xi1>
    %53 = vector.broadcast %cst_19 : f32 to vector<128x128xf32>
    %54 = arith.select %52, %48, %53 : vector<128x128xi1>, vector<128x128xf32>
    %55 = tpu.concatenate %33, %40, %24, %47, %54 in 1 : vector<128x128xf32>, vector<128x128xf32>, vector<128x128xf32>, vector<128x128xf32>, vector<128x128xf32> -> vector<128x640xf32>
    %cst_20 = arith.constant dense<0.000000e+00> : vector<128x256xf32>
    %56 = tpu.matmul %55, %25, %cst_20 {dimension_numbers = #tpu.dot_dimension_numbers<[1], [0], [0], [1], [0, 0, 1, 1], [], []>} : vector<128x640xf32>, vector<640x256xf32>, vector<128x256xf32> -> vector<128x256xf32>
    %57 = vector.broadcast %26 : vector<1x256xf32> to vector<128x256xf32>
    %58 = arith.addf %56, %57 : vector<128x256xf32>
    %cst_21 = arith.constant 0.000000e+00 : f32
    %59 = vector.broadcast %cst_21 : f32 to vector<128x256xf32>
    %60 = arith.maximumf %58, %59 : vector<128x256xf32>
    %c0_22 = arith.constant 0 : index
    %c0_23 = arith.constant 0 : index
    %61 = vector.load %arg6[%c0_22, %c0_23] : memref<768x128xf32, #tpu.memory_space<vmem>>, vector<768x128xf32>
    %c0_24 = arith.constant 0 : index
    %c0_25 = arith.constant 0 : index
    %62 = vector.load %arg7[%c0_24, %c0_25] : memref<1x128xf32, #tpu.memory_space<vmem>>, vector<1x128xf32>
    %c1_i32_26 = arith.constant 1 : i32
    %63 = tpu.dynamic_rotate %60 by %c1_i32_26 dim 0 : vector<128x256xf32>, i32 -> vector<128x256xf32>
    %c1_i32_27 = arith.constant 1 : i32
    %64 = vector.broadcast %c1_i32_27 : i32 to vector<128x1xi32>
    %65 = arith.cmpi sge, %16, %64 : vector<128x1xi32>
    %cst_28 = arith.constant 0.000000e+00 : f32
    %66 = vector.shape_cast %65 : vector<128x1xi1> to vector<128x1xi1>
    %67 = vector.broadcast %66 : vector<128x1xi1> to vector<128x256xi1>
    %68 = vector.broadcast %cst_28 : f32 to vector<128x256xf32>
    %69 = arith.select %67, %63, %68 : vector<128x256xi1>, vector<128x256xf32>
    %c127_i32_29 = arith.constant 127 : i32
    %70 = tpu.dynamic_rotate %60 by %c127_i32_29 dim 0 : vector<128x256xf32>, i32 -> vector<128x256xf32>
    %c15_i32_30 = arith.constant 15 : i32
    %71 = vector.broadcast %c15_i32_30 : i32 to vector<128x1xi32>
    %72 = arith.cmpi slt, %16, %71 : vector<128x1xi32>
    %cst_31 = arith.constant 0.000000e+00 : f32
    %73 = vector.shape_cast %72 : vector<128x1xi1> to vector<128x1xi1>
    %74 = vector.broadcast %73 : vector<128x1xi1> to vector<128x256xi1>
    %75 = vector.broadcast %cst_31 : f32 to vector<128x256xf32>
    %76 = arith.select %74, %70, %75 : vector<128x256xi1>, vector<128x256xf32>
    %77 = tpu.concatenate %69, %60, %76 in 1 : vector<128x256xf32>, vector<128x256xf32>, vector<128x256xf32> -> vector<128x768xf32>
    %cst_32 = arith.constant dense<0.000000e+00> : vector<128x128xf32>
    %78 = tpu.matmul %77, %61, %cst_32 {dimension_numbers = #tpu.dot_dimension_numbers<[1], [0], [0], [1], [0, 0, 1, 1], [], []>} : vector<128x768xf32>, vector<768x128xf32>, vector<128x128xf32> -> vector<128x128xf32>
    %79 = vector.broadcast %62 : vector<1x128xf32> to vector<128x128xf32>
    %80 = arith.addf %78, %79 : vector<128x128xf32>
    %cst_33 = arith.constant 0.000000e+00 : f32
    %81 = vector.broadcast %cst_33 : f32 to vector<128x128xf32>
    %82 = arith.maximumf %80, %81 : vector<128x128xf32>
    %83 = vector.shape_cast %82 : vector<128x128xf32> to vector<8x16x128xf32>
    %cst_34 = arith.constant dense<0.000000e+00> : vector<8x128xf32>
    %84 = vector.multi_reduction <add>, %83, %cst_34 [1] : vector<8x16x128xf32> to vector<8x128xf32>
    %cst_35 = arith.constant 6.250000e-02 : f32
    %85 = vector.broadcast %cst_35 : f32 to vector<8x128xf32>
    %86 = arith.mulf %84, %85 : vector<8x128xf32>
    %c0_36 = arith.constant 0 : index
    %c0_37 = arith.constant 0 : index
    %87 = vector.load %arg8[%c0_36, %c0_37] : memref<128x10xf32, #tpu.memory_space<vmem>>, vector<128x10xf32>
    %cst_38 = arith.constant dense<0.000000e+00> : vector<8x10xf32>
    %88 = tpu.matmul %86, %87, %cst_38 {dimension_numbers = #tpu.dot_dimension_numbers<[1], [0], [0], [1], [0, 0, 1, 1], [], []>} : vector<8x128xf32>, vector<128x10xf32>, vector<8x10xf32> -> vector<8x10xf32>
    %c0_39 = arith.constant 0 : index
    %c0_40 = arith.constant 0 : index
    %89 = vector.load %arg9[%c0_39, %c0_40] : memref<1x10xf32, #tpu.memory_space<vmem>>, vector<1x10xf32>
    %90 = vector.broadcast %89 : vector<1x10xf32> to vector<8x10xf32>
    %91 = arith.addf %88, %90 : vector<8x10xf32>
    %c0_41 = arith.constant 0 : index
    %c0_42 = arith.constant 0 : index
    %92 = vector.load %arg10[%c0_41, %c0_42] : memref<8x10xf32, #tpu.memory_space<vmem>>, vector<8x10xf32>
    tpu.vector_store %arg10[%c0_41, %c0_42], %91 {strides = array<i32>} : memref<8x10xf32, #tpu.memory_space<vmem>>, vector<8x10xf32>,
    return
  }
  func.func @transform_0(%arg0: i32) -> (i32, i32) {
    %c0_i32 = arith.constant 0 : i32
    %c0_i32_0 = arith.constant 0 : i32
    return %arg0, %c0_i32 : i32, i32
  }
  func.func @transform_1(%arg0: i32) -> (i32, i32) {
    %c0_i32 = arith.constant 0 : i32
    %c0_i32_0 = arith.constant 0 : i32
    %c0_i32_1 = arith.constant 0 : i32
    return %c0_i32, %c0_i32_0 : i32, i32
  }
  func.func @transform_2(%arg0: i32) -> (i32, i32) {
    %c0_i32 = arith.constant 0 : i32
    %c0_i32_0 = arith.constant 0 : i32
    %c0_i32_1 = arith.constant 0 : i32
    return %c0_i32, %c0_i32_0 : i32, i32
  }
  func.func @transform_3(%arg0: i32) -> (i32, i32) {
    %c0_i32 = arith.constant 0 : i32
    %c0_i32_0 = arith.constant 0 : i32
    %c0_i32_1 = arith.constant 0 : i32
    return %c0_i32, %c0_i32_0 : i32, i32
  }
  func.func @transform_4(%arg0: i32) -> (i32, i32) {
    %c0_i32 = arith.constant 0 : i32
    %c0_i32_0 = arith.constant 0 : i32
    %c0_i32_1 = arith.constant 0 : i32
    return %c0_i32, %c0_i32_0 : i32, i32
  }
  func.func @transform_5(%arg0: i32) -> (i32, i32) {
    %c0_i32 = arith.constant 0 : i32
    %c0_i32_0 = arith.constant 0 : i32
    %c0_i32_1 = arith.constant 0 : i32
    return %c0_i32, %c0_i32_0 : i32, i32
  }
  func.func @transform_6(%arg0: i32) -> (i32, i32) {
    %c0_i32 = arith.constant 0 : i32
    %c0_i32_0 = arith.constant 0 : i32
    %c0_i32_1 = arith.constant 0 : i32
    return %c0_i32, %c0_i32_0 : i32, i32
  }
  func.func @transform_7(%arg0: i32) -> (i32, i32) {
    %c0_i32 = arith.constant 0 : i32
    %c0_i32_0 = arith.constant 0 : i32
    %c0_i32_1 = arith.constant 0 : i32
    return %c0_i32, %c0_i32_0 : i32, i32
  }
  func.func @transform_8(%arg0: i32) -> (i32, i32) {
    %c0_i32 = arith.constant 0 : i32
    %c0_i32_0 = arith.constant 0 : i32
    %c0_i32_1 = arith.constant 0 : i32
    return %c0_i32, %c0_i32_0 : i32, i32
  }
  func.func @transform_9(%arg0: i32) -> (i32, i32) {
    %c0_i32 = arith.constant 0 : i32
    %c0_i32_0 = arith.constant 0 : i32
    return %arg0, %c0_i32 : i32, i32
  }
}

</mosaic_0001>

<llo_original>
// kernel: oscnn_forward.1
$region0: #{oscnn_forward.1}
  #allocation0 [shape = 'u32[]', space=smem, size = 0x4, offset = 0x4, fixed_abs, tag = 'smem constant byte address 0x4 - core index']
  #allocation1 [shape = 'u32[144,128]{1,0:T(1,128)}', space=vmem, size = 0x12000, scoped, tag = 'internal scratch']
  %s0 = inlined_call_operand.vmem [shape: f32[256,8], index: 0, kind: input, shape index: {}]
  %s1 = inlined_call_operand.vmem [shape: f32[8,128], index: 1, kind: input, shape index: {}]
  %s2 = inlined_call_operand.vmem [shape: f32[1,128], index: 2, kind: input, shape index: {}]
  %s3 = inlined_call_operand.vmem [shape: f32[640,256], index: 3, kind: input, shape index: {}]
  %s4 = inlined_call_operand.vmem [shape: f32[1,256], index: 4, kind: input, shape index: {}]
  %s5 = inlined_call_operand.vmem [shape: f32[768,128], index: 5, kind: input, shape index: {}]
  %s6 = inlined_call_operand.vmem [shape: f32[1,128], index: 6, kind: input, shape index: {}]
  %s7 = inlined_call_operand.vmem [shape: f32[128,10], index: 7, kind: input, shape index: {}]
  %s8 = inlined_call_operand.vmem [shape: f32[1,10], index: 8, kind: input, shape index: {}]
  %s9 = inlined_call_operand.hbm [shape: f32[16,10], index: 9, kind: output, shape index: {}]
  %s10 = sld [smem:[#allocation0]]
  $region69: #{oscnn_forward.1} parent=0
    _
  %s12 = ssub.s32 1, %s10
  %s13 = scalar_select 0, %s12, %s10
  $region1: #{oscnn_forward.1} parent=0
    #allocation2 [shape = 'u8[8192]{0}', space=vmem, size = 0x2000, scoped, tag = 'output window, operand 0']
    #allocation3 [shape = 's32[2]{0}', space=sflag, size = 0x8, scoped, tag = 'scoped memory for oscnn_forward.1']
    %14 = vsyncpa [#allocation3], 0
    %s15 = scalar_lea.sflag [#allocation3], 1
    %16 = vsyncpa %s15, 0
    loop: start=0, step=1, limit=4
    $region2: #{oscnn_forward.1} parent=1 // loop_pre_header
      _
    $region3: #{oscnn_forward.1} parent=1 // loop_header
      %s18 = sphi 0, %s22
      %p19 = scmp.ge.s32.totalorder %s18, 4
      %s28 = sphi 0, %s30
      %s31 = sphi 0, %s28
      %s32 = sphi 0, %s31
      %s48 = sphi 0, %s32
      %s52 = sphi 0, %s52
      %s54 = sphi 0, %s52
      %s55 = sphi 0, %s54
      %s69 = sphi 0, %s55
      %s73 = sphi 0, %s73
      %s75 = sphi 0, %s73
      %s76 = sphi 0, %s75
      %s90 = sphi 0, %s76
      %s94 = sphi 0, %s94
      %s96 = sphi 0, %s94
      %s97 = sphi 0, %s96
      %s111 = sphi 0, %s97
      %s115 = sphi 0, %s115
      %s117 = sphi 0, %s115
      %s118 = sphi 0, %s117
      %s132 = sphi 0, %s118
      %s136 = sphi 0, %s136
      %s138 = sphi 0, %s136
      %s139 = sphi 0, %s138
      %s153 = sphi 0, %s139
      %s157 = sphi 0, %s157
      %s159 = sphi 0, %s157
      %s160 = sphi 0, %s159
      %s174 = sphi 0, %s160
      %s178 = sphi 0, %s178
      %s180 = sphi 0, %s178
      %s181 = sphi 0, %s180
      %s195 = sphi 0, %s181
      %s199 = sphi 0, %s199
      %s201 = sphi 0, %s199
      %s202 = sphi 0, %s201
      %s216 = sphi 0, %s202
      %s222 = sphi 0, %s224
      %s225 = sphi 0, %s222
      %s226 = sphi 0, %s225
      %s242 = sphi 0, %s226
    $region4: #{oscnn_forward.1} parent=1 // loop_header_branch
      %21 = sbr.rel (%p19) target = $region8
    $region5: #{oscnn_forward.1} parent=1 // loop_body
      %s23 = ssub.s32 %s18, 1
      %s24 = ssub.s32 %s18, 2
      %s25 = sadd.s32 %s18, 1
      %s26 = ssub.s32 %s18, %s25
      %p27 = scmp.eq.s32.totalorder %s26, 0
      %s29 = sadd.s32 %s28, 1
      %s30 = scalar_select %p27, %s28, %s29
      %p33 = pneg %p27
      %p34 = scmp.eq.s32.totalorder %s18, 1
      %p35 = por %p33, %p34
      %p36 = scmp.ne.s32.totalorder %s28, %s31
      %p37 = scmp.eq.s32.totalorder %s18, 0
      %p38 = por %p36, %p37
      %p39 = scmp.ne.s32.totalorder %s28, %s31
      %p40 = scmp.eq.s32.totalorder %s23, 1
      %p41 = por %p39, %p40
      %p42 = scmp.ne.s32.totalorder %s31, %s32
      %p43 = scmp.eq.s32.totalorder %s23, 0
      %p44 = por %p42, %p43
      %p45 = scmp.ne.s32.totalorder %s31, %s32
      %p46 = scmp.eq.s32.totalorder %s24, 1
      %p47 = por %p45, %p46
      %p49 = scmp.ne.s32.totalorder %s32, %s48
      %p50 = scmp.eq.s32.totalorder %s24, 0
      %p51 = por %p49, %p50
      %s53 = sadd.s32 %s52, 1
      %p56 = scmp.eq.s32.totalorder %s18, 1
      %p57 = scmp.ne.s32.totalorder %s52, %s54
      %p58 = scmp.eq.s32.totalorder %s18, 0
      %p59 = por %p57, %p58
      %p60 = scmp.ne.s32.totalorder %s52, %s54
      %p61 = scmp.eq.s32.totalorder %s23, 1
      %p62 = por %p60, %p61
      %p63 = scmp.ne.s32.totalorder %s54, %s55
      %p64 = scmp.eq.s32.totalorder %s23, 0
      %p65 = por %p63, %p64
      %p66 = scmp.ne.s32.totalorder %s54, %s55
      %p67 = scmp.eq.s32.totalorder %s24, 1
      %p68 = por %p66, %p67
      %p70 = scmp.ne.s32.totalorder %s55, %s69
      %p71 = scmp.eq.s32.totalorder %s24, 0
      %p72 = por %p70, %p71
      %s74 = sadd.s32 %s73, 1
      %p77 = scmp.eq.s32.totalorder %s18, 1
      %p78 = scmp.ne.s32.totalorder %s73, %s75
      %p79 = scmp.eq.s32.totalorder %s18, 0
      %p80 = por %p78, %p79
      %p81 = scmp.ne.s32.totalorder %s73, %s75
      %p82 = scmp.eq.s32.totalorder %s23, 1
      %p83 = por %p81, %p82
      %p84 = scmp.ne.s32.totalorder %s75, %s76
      %p85 = scmp.eq.s32.totalorder %s23, 0
      %p86 = por %p84, %p85
      %p87 = scmp.ne.s32.totalorder %s75, %s76
      %p88 = scmp.eq.s32.totalorder %s24, 1
      %p89 = por %p87, %p88
      %p91 = scmp.ne.s32.totalorder %s76, %s90
      %p92 = scmp.eq.s32.totalorder %s24, 0
      %p93 = por %p91, %p92
      %s95 = sadd.s32 %s94, 1
      %p98 = scmp.eq.s32.totalorder %s18, 1
      %p99 = scmp.ne.s32.totalorder %s94, %s96
      %p100 = scmp.eq.s32.totalorder %s18, 0
      %p101 = por %p99, %p100
      %p102 = scmp.ne.s32.totalorder %s94, %s96
      %p103 = scmp.eq.s32.totalorder %s23, 1
      %p104 = por %p102, %p103
      %p105 = scmp.ne.s32.totalorder %s96, %s97
      %p106 = scmp.eq.s32.totalorder %s23, 0
      %p107 = por %p105, %p106
      %p108 = scmp.ne.s32.totalorder %s96, %s97
      %p109 = scmp.eq.s32.totalorder %s24, 1
      %p110 = por %p108, %p109
      %p112 = scmp.ne.s32.totalorder %s97, %s111
      %p113 = scmp.eq.s32.totalorder %s24, 0
      %p114 = por %p112, %p113
      %s116 = sadd.s32 %s115, 1
      %p119 = scmp.eq.s32.totalorder %s18, 1
      %p120 = scmp.ne.s32.totalorder %s115, %s117
      %p121 = scmp.eq.s32.totalorder %s18, 0
      %p122 = por %p120, %p121
      %p123 = scmp.ne.s32.totalorder %s115, %s117
      %p124 = scmp.eq.s32.totalorder %s23, 1
      %p125 = por %p123, %p124
      %p126 = scmp.ne.s32.totalorder %s117, %s118
      %p127 = scmp.eq.s32.totalorder %s23, 0
      %p128 = por %p126, %p127
      %p129 = scmp.ne.s32.totalorder %s117, %s118
      %p130 = scmp.eq.s32.totalorder %s24, 1
      %p131 = por %p129, %p130
      %p133 = scmp.ne.s32.totalorder %s118, %s132
      %p134 = scmp.eq.s32.totalorder %s24, 0
      %p135 = por %p133, %p134
      %s137 = sadd.s32 %s136, 1
      %p140 = scmp.eq.s32.totalorder %s18, 1
      %p141 = scmp.ne.s32.totalorder %s136, %s138
      %p142 = scmp.eq.s32.totalorder %s18, 0
      %p143 = por %p141, %p142
      %p144 = scmp.ne.s32.totalorder %s136, %s138
      %p145 = scmp.eq.s32.totalorder %s23, 1
      %p146 = por %p144, %p145
      %p147 = scmp.ne.s32.totalorder %s138, %s139
      %p148 = scmp.eq.s32.totalorder %s23, 0
      %p149 = por %p147, %p148
      %p150 = scmp.ne.s32.totalorder %s138, %s139
      %p151 = scmp.eq.s32.totalorder %s24, 1
      %p152 = por %p150, %p151
      %p154 = scmp.ne.s32.totalorder %s139, %s153
      %p155 = scmp.eq.s32.totalorder %s24, 0
      %p156 = por %p154, %p155
      %s158 = sadd.s32 %s157, 1
      %p161 = scmp.eq.s32.totalorder %s18, 1
      %p162 = scmp.ne.s32.totalorder %s157, %s159
      %p163 = scmp.eq.s32.totalorder %s18, 0
      %p164 = por %p162, %p163
      %p165 = scmp.ne.s32.totalorder %s157, %s159
      %p166 = scmp.eq.s32.totalorder %s23, 1
      %p167 = por %p165, %p166
      %p168 = scmp.ne.s32.totalorder %s159, %s160
      %p169 = scmp.eq.s32.totalorder %s23, 0
      %p170 = por %p168, %p169
      %p171 = scmp.ne.s32.totalorder %s159, %s160
      %p172 = scmp.eq.s32.totalorder %s24, 1
      %p173 = por %p171, %p172
      %p175 = scmp.ne.s32.totalorder %s160, %s174
      %p176 = scmp.eq.s32.totalorder %s24, 0
      %p177 = por %p175, %p176
      %s179 = sadd.s32 %s178, 1
      %p182 = scmp.eq.s32.totalorder %s18, 1
      %p183 = scmp.ne.s32.totalorder %s178, %s180
      %p184 = scmp.eq.s32.totalorder %s18, 0
      %p185 = por %p183, %p184
      %p186 = scmp.ne.s32.totalorder %s178, %s180
      %p187 = scmp.eq.s32.totalorder %s23, 1
      %p188 = por %p186, %p187
      %p189 = scmp.ne.s32.totalorder %s180, %s181
      %p190 = scmp.eq.s32.totalorder %s23, 0
      %p191 = por %p189, %p190
      %p192 = scmp.ne.s32.totalorder %s180, %s181
      %p193 = scmp.eq.s32.totalorder %s24, 1
      %p194 = por %p192, %p193
      %p196 = scmp.ne.s32.totalorder %s181, %s195
      %p197 = scmp.eq.s32.totalorder %s24, 0
      %p198 = por %p196, %p197
      %s200 = sadd.s32 %s199, 1
      %p203 = scmp.eq.s32.totalorder %s18, 1
      %p204 = scmp.ne.s32.totalorder %s199, %s201
      %p205 = scmp.eq.s32.totalorder %s18, 0
      %p206 = por %p204, %p205
      %p207 = scmp.ne.s32.totalorder %s199, %s201
      %p208 = scmp.eq.s32.totalorder %s23, 1
      %p209 = por %p207, %p208
      %p210 = scmp.ne.s32.totalorder %s201, %s202
      %p211 = scmp.eq.s32.totalorder %s23, 0
      %p212 = por %p210, %p211
      %p213 = scmp.ne.s32.totalorder %s201, %s202
      %p214 = scmp.eq.s32.totalorder %s24, 1
      %p215 = por %p213, %p214
      %p217 = scmp.ne.s32.totalorder %s202, %s216
      %p218 = scmp.eq.s32.totalorder %s24, 0
      %p219 = por %p217, %p218
      %s220 = ssub.s32 %s18, %s25
      %p221 = scmp.eq.s32.totalorder %s220, 0
      %s223 = sadd.s32 %s222, 1
      %s224 = scalar_select %p221, %s222, %s223
      %p227 = pneg %p221
      %p228 = scmp.eq.s32.totalorder %s18, 1
      %p229 = por %p227, %p228
      %p230 = scmp.ne.s32.totalorder %s222, %s225
      %p231 = scmp.eq.s32.totalorder %s18, 0
      %p232 = por %p230, %p231
      %p233 = scmp.ne.s32.totalorder %s222, %s225
      %p234 = scmp.eq.s32.totalorder %s23, 1
      %p235 = por %p233, %p234
      %p236 = scmp.ne.s32.totalorder %s225, %s226
      %p237 = scmp.eq.s32.totalorder %s23, 0
      %p238 = por %p236, %p237
      %p239 = scmp.ne.s32.totalorder %s225, %s226
      %p240 = scmp.eq.s32.totalorder %s24, 1
      %p241 = por %p239, %p240
      %p243 = scmp.ne.s32.totalorder %s226, %s242
      %p244 = scmp.eq.s32.totalorder %s24, 0
      %p245 = por %p243, %p244
      %p246 = scmp.le.s32.totalorder 1, %s18
      %p247 = scmp.lt.s32.totalorder %s18, 3
      %p248 = pnand %p246, %p247
      %p249 = pneg %p248
      // Predicated region
      $region9: #{oscnn_forward.1} parent=5 // pred_check
        _
      $region10: #{oscnn_forward.1} parent=5 // pred_check_branch
        %251 = sbr.rel (%p248) target = $region12
      $region11: #{oscnn_forward.1} parent=5 // pred_region
        %s252 = ssub.s32 %s18, 1
        // Predicated region
        $region13: #{oscnn_forward.1} parent=11 // pred_check
          %p253 = pneg %p65
        $region14: #{oscnn_forward.1} parent=11 // pred_check_branch
          %255 = sbr.rel (%p253) target = $region16
        $region15: #{oscnn_forward.1} parent=11 // pred_region
          _
        $region16: #{oscnn_forward.1} parent=11 // pred_fallthru
          _
        // Predicated region
        $region17: #{oscnn_forward.1} parent=11 // pred_check
          %p256 = pneg %p86
        $region18: #{oscnn_forward.1} parent=11 // pred_check_branch
          %258 = sbr.rel (%p256) target = $region20
        $region19: #{oscnn_forward.1} parent=11 // pred_region
          _
        $region20: #{oscnn_forward.1} parent=11 // pred_fallthru
          _
        // Predicated region
        $region21: #{oscnn_forward.1} parent=11 // pred_check
          %p259 = pneg %p107
        $region22: #{oscnn_forward.1} parent=11 // pred_check_branch
          %261 = sbr.rel (%p259) target = $region24
        $region23: #{oscnn_forward.1} parent=11 // pred_region
          _
        $region24: #{oscnn_forward.1} parent=11 // pred_fallthru
          _
        // Predicated region
        $region25: #{oscnn_forward.1} parent=11 // pred_check
          %p262 = pneg %p128
        $region26: #{oscnn_forward.1} parent=11 // pred_check_branch
          %264 = sbr.rel (%p262) target = $region28
        $region27: #{oscnn_forward.1} parent=11 // pred_region
          _
        $region28: #{oscnn_forward.1} parent=11 // pred_fallthru
          _
        // Predicated region
        $region29: #{oscnn_forward.1} parent=11 // pred_check
          %p265 = pneg %p149
        $region30: #{oscnn_forward.1} parent=11 // pred_check_branch
          %267 = sbr.rel (%p265) target = $region32
        $region31: #{oscnn_forward.1} parent=11 // pred_region
          _
        $region32: #{oscnn_forward.1} parent=11 // pred_fallthru
          _
        // Predicated region
        $region33: #{oscnn_forward.1} parent=11 // pred_check
          %p268 = pneg %p170
        $region34: #{oscnn_forward.1} parent=11 // pred_check_branch
          %270 = sbr.rel (%p268) target = $region36
        $region35: #{oscnn_forward.1} parent=11 // pred_region
          _
        $region36: #{oscnn_forward.1} parent=11 // pred_fallthru
          _
        // Predicated region
        $region37: #{oscnn_forward.1} parent=11 // pred_check
          %p271 = pneg %p191
        $region38: #{oscnn_forward.1} parent=11 // pred_check_branch
          %273 = sbr.rel (%p271) target = $region40
        $region39: #{oscnn_forward.1} parent=11 // pred_region
          _
        $region40: #{oscnn_forward.1} parent=11 // pred_fallthru
          _
        // Predicated region
        $region41: #{oscnn_forward.1} parent=11 // pred_check
          %p274 = pneg %p212
        $region42: #{oscnn_forward.1} parent=11 // pred_check_branch
          %276 = sbr.rel (%p274) target = $region44
        $region43: #{oscnn_forward.1} parent=11 // pred_region
          _
        $region44: #{oscnn_forward.1} parent=11 // pred_fallthru
          _
      $region12: #{oscnn_forward.1} parent=5 // pred_fallthru
        _
      %p277 = scmp.lt.s32.totalorder %s18, 2
      // Predicated region
      $region45: #{oscnn_forward.1} parent=5 // pred_check
        %p278 = pneg %p277
      $region46: #{oscnn_forward.1} parent=5 // pred_check_branch
        %280 = sbr.rel (%p278) target = $region48
      $region47: #{oscnn_forward.1} parent=5 // pred_region
        // Predicated region
        $region49: #{oscnn_forward.1} parent=47 // pred_check
          %p281 = pneg %p38
        $region50: #{oscnn_forward.1} parent=47 // pred_check_branch
          %283 = sbr.rel (%p281) target = $region52
        $region51: #{oscnn_forward.1} parent=47 // pred_region
          %s284 = smul.u32 16, %s18
          %p285 = scmp.lt.s32.totalorder %s284, 31
          %s286 = scalar_select %p285, %s284, 31
          %s287 = smul.addr %s286, 8
          %s288 = scalar_lea.vmem %s0, %s287
          %s289 = smul.u32 16, %s18
        $region52: #{oscnn_forward.1} parent=47 // pred_fallthru
          _
      $region48: #{oscnn_forward.1} parent=5 // pred_fallthru
        _
      %p290 = scmp.le.s32.totalorder 1, %s18
      %p291 = scmp.lt.s32.totalorder %s18, 3
      %p292 = pnand %p290, %p291
      %p293 = pneg %p292
      // Predicated region
      $region53: #{oscnn_forward.1} parent=5 // pred_check
        _
      $region54: #{oscnn_forward.1} parent=5 // pred_check_branch
        %295 = sbr.rel (%p292) target = $region56
      $region55: #{oscnn_forward.1} parent=5 // pred_region
        %s296 = ssub.s32 %s18, 1
        %s297 = smul.u32 16, %s23
        %p298 = scmp.lt.s32.totalorder %s297, 31
        %s299 = scalar_select %p298, %s297, 31
        %s300 = smul.addr %s299, 8
        %s301 = scalar_lea.vmem %s0, %s300
        %p302 = pneg %p44
        %p303 = pneg %p41
        %p304 = pneg %p65
        %p305 = pneg %p62
        %p306 = pneg %p86
        %p307 = pneg %p83
        %p308 = pneg %p107
        %p309 = pneg %p104
        %p310 = pneg %p128
        %p311 = pneg %p125
        %p312 = pneg %p149
        %p313 = pneg %p146
        %p314 = pneg %p170
        %p315 = pneg %p167
        %p316 = pneg %p191
        %p317 = pneg %p188
        %p318 = pneg %p212
        %p319 = pneg %p209
        %p320 = pneg %p238
        %p321 = pneg %p235
        %s322 = sand.u32 %s225, 1
        %s323 = scalar_lea.sflag [#allocation3], %s322
        %s324 = sand.u32 %s225, 1
        %s325 = smul.addr %s324, 8
        %s326 = scalar_lea.vmem [#allocation2], %s325
        %s327 = smul.u32 16, %s23
        %p328 = scmp.lt.s32.totalorder %s327, 31
        %s329 = scalar_select %p328, %s327, 31
        %s330 = smul.addr %s329, 8
        %s331 = scalar_lea.vmem %s0, %s330
        %s332 = smul.u32 16, %s23
        %v333 = vlaneseq
        %v334 = vshrl.u32 %v333, 7
        %v335 = vadd.s32 %v334, 8
        %v336 = vadd.s32 %v334, 16
        %v337 = vadd.s32 %v334, 24
        %v338 = vadd.s32 %v334, 32
        %v339 = vadd.s32 %v334, 40
        %v340 = vadd.s32 %v334, 48
        %v341 = vadd.s32 %v334, 56
        %v342 = vadd.s32 %v334, 64
        %v343 = vadd.s32 %v334, 72
        %v344 = vadd.s32 %v334, 80
        %v345 = vadd.s32 %v334, 88
        %v346 = vadd.s32 %v334, 96
        %v347 = vadd.s32 %v334, 104
        %v348 = vadd.s32 %v334, 112
        %v349 = vadd.s32 %v334, 120
        %vm350 = vcmp.lt.s32.totalorder %v334, 0
        %v351 = vsub.s32 0, %v334
        %v352 = vsel %vm350, %v351, %v334
        %v353 = vshrl.u32 %v352, 4
        %v354 = vand.u32 %v352, 15
        %v355 = vsub.s32 0, %v354
        %v356 = vsel %vm350, %v355, %v354
        %vm357 = vcmp.lt.s32.totalorder %v335, 0
        %v358 = vsub.s32 0, %v335
        %v359 = vsel %vm357, %v358, %v335
        %v360 = vshrl.u32 %v359, 4
        %v361 = vand.u32 %v359, 15
        %v362 = vsub.s32 0, %v361
        %v363 = vsel %vm357, %v362, %v361
        %vm364 = vcmp.lt.s32.totalorder %v336, 0
        %v365 = vsub.s32 0, %v336
        %v366 = vsel %vm364, %v365, %v336
        %v367 = vshrl.u32 %v366, 4
        %v368 = vand.u32 %v366, 15
        %v369 = vsub.s32 0, %v368
        %v370 = vsel %vm364, %v369, %v368
        %vm371 = vcmp.lt.s32.totalorder %v337, 0
        %v372 = vsub.s32 0, %v337
        %v373 = vsel %vm371, %v372, %v337
        %v374 = vshrl.u32 %v373, 4
        %v375 = vand.u32 %v373, 15
        %v376 = vsub.s32 0, %v375
        %v377 = vsel %vm371, %v376, %v375
        %vm378 = vcmp.lt.s32.totalorder %v338, 0
        %v379 = vsub.s32 0, %v338
        %v380 = vsel %vm378, %v379, %v338
        %v381 = vshrl.u32 %v380, 4
        %v382 = vand.u32 %v380, 15
        %v383 = vsub.s32 0, %v382
        %v384 = vsel %vm378, %v383, %v382
        %vm385 = vcmp.lt.s32.totalorder %v339, 0
        %v386 = vsub.s32 0, %v339
        %v387 = vsel %vm385, %v386, %v339
        %v388 = vshrl.u32 %v387, 4
        %v389 = vand.u32 %v387, 15
        %v390 = vsub.s32 0, %v389
        %v391 = vsel %vm385, %v390, %v389
        %vm392 = vcmp.lt.s32.totalorder %v340, 0
        %v393 = vsub.s32 0, %v340
        %v394 = vsel %vm392, %v393, %v340
        %v395 = vshrl.u32 %v394, 4
        %v396 = vand.u32 %v394, 15
        %v397 = vsub.s32 0, %v396
        %v398 = vsel %vm392, %v397, %v396
        %vm399 = vcmp.lt.s32.totalorder %v341, 0
        %v400 = vsub.s32 0, %v341
        %v401 = vsel %vm399, %v400, %v341
        %v402 = vshrl.u32 %v401, 4
        %v403 = vand.u32 %v401, 15
        %v404 = vsub.s32 0, %v403
        %v405 = vsel %vm399, %v404, %v403
        %vm406 = vcmp.lt.s32.totalorder %v342, 0
        %v407 = vsub.s32 0, %v342
        %v408 = vsel %vm406, %v407, %v342
        %v409 = vshrl.u32 %v408, 4
        %v410 = vand.u32 %v408, 15
        %v411 = vsub.s32 0, %v410
        %v412 = vsel %vm406, %v411, %v410
        %vm413 = vcmp.lt.s32.totalorder %v343, 0
        %v414 = vsub.s32 0, %v343
        %v415 = vsel %vm413, %v414, %v343
        %v416 = vshrl.u32 %v415, 4
        %v417 = vand.u32 %v415, 15
        %v418 = vsub.s32 0, %v417
        %v419 = vsel %vm413, %v418, %v417
        %vm420 = vcmp.lt.s32.totalorder %v344, 0
        %v421 = vsub.s32 0, %v344
        %v422 = vsel %vm420, %v421, %v344
        %v423 = vshrl.u32 %v422, 4
        %v424 = vand.u32 %v422, 15
        %v425 = vsub.s32 0, %v424
        %v426 = vsel %vm420, %v425, %v424
        %vm427 = vcmp.lt.s32.totalorder %v345, 0
        %v428 = vsub.s32 0, %v345
        %v429 = vsel %vm427, %v428, %v345
        %v430 = vshrl.u32 %v429, 4
        %v431 = vand.u32 %v429, 15
        %v432 = vsub.s32 0, %v431
        %v433 = vsel %vm427, %v432, %v431
        %vm434 = vcmp.lt.s32.totalorder %v346, 0
        %v435 = vsub.s32 0, %v346
        %v436 = vsel %vm434, %v435, %v346
        %v437 = vshrl.u32 %v436, 4
        %v438 = vand.u32 %v436, 15
        %v439 = vsub.s32 0, %v438
        %v440 = vsel %vm434, %v439, %v438
        %vm441 = vcmp.lt.s32.totalorder %v347, 0
        %v442 = vsub.s32 0, %v347
        %v443 = vsel %vm441, %v442, %v347
        %v444 = vshrl.u32 %v443, 4
        %v445 = vand.u32 %v443, 15
        %v446 = vsub.s32 0, %v445
        %v447 = vsel %vm441, %v446, %v445
        %vm448 = vcmp.lt.s32.totalorder %v348, 0
        %v449 = vsub.s32 0, %v348
        %v450 = vsel %vm448, %v449, %v348
        %v451 = vshrl.u32 %v450, 4
        %v452 = vand.u32 %v450, 15
        %v453 = vsub.s32 0, %v452
        %v454 = vsel %vm448, %v453, %v452
        %vm455 = vcmp.lt.s32.totalorder %v349, 0
        %v456 = vsub.s32 0, %v349
        %v457 = vsel %vm455, %v456, %v349
        %v458 = vshrl.u32 %v457, 4
        %v459 = vand.u32 %v457, 15
        %v460 = vsub.s32 0, %v459
        %v461 = vsel %vm455, %v460, %v459
        %vm462 = vcmp.ne.s32.totalorder %v356, 0
        %vm463 = vcmp.ne.s32.totalorder %v363, 0
        %vm464 = vcmp.ne.s32.totalorder %v370, 0
        %vm465 = vcmp.ne.s32.totalorder %v377, 0
        %vm466 = vcmp.ne.s32.totalorder %v384, 0
        %vm467 = vcmp.ne.s32.totalorder %v391, 0
        %vm468 = vcmp.ne.s32.totalorder %v398, 0
        %vm469 = vcmp.ne.s32.totalorder %v405, 0
        %vm470 = vcmp.ne.s32.totalorder %v412, 0
        %vm471 = vcmp.ne.s32.totalorder %v419, 0
        %vm472 = vcmp.ne.s32.totalorder %v426, 0
        %vm473 = vcmp.ne.s32.totalorder %v433, 0
        %vm474 = vcmp.ne.s32.totalorder %v440, 0
        %vm475 = vcmp.ne.s32.totalorder %v447, 0
        %vm476 = vcmp.ne.s32.totalorder %v454, 0
        %vm477 = vcmp.ne.s32.totalorder %v461, 0
        %vm478 = vcmp.lt.s32.totalorder %v356, 0
        %vm479 = vcmp.lt.s32.totalorder %v363, 0
        %vm480 = vcmp.lt.s32.totalorder %v370, 0
        %vm481 = vcmp.lt.s32.totalorder %v377, 0
        %vm482 = vcmp.lt.s32.totalorder %v384, 0
        %vm483 = vcmp.lt.s32.totalorder %v391, 0
        %vm484 = vcmp.lt.s32.totalorder %v398, 0
        %vm485 = vcmp.lt.s32.totalorder %v405, 0
        %vm486 = vcmp.lt.s32.totalorder %v412, 0
        %vm487 = vcmp.lt.s32.totalorder %v419, 0
        %vm488 = vcmp.lt.s32.totalorder %v426, 0
        %vm489 = vcmp.lt.s32.totalorder %v433, 0
        %vm490 = vcmp.lt.s32.totalorder %v440, 0
        %vm491 = vcmp.lt.s32.totalorder %v447, 0
        %vm492 = vcmp.lt.s32.totalorder %v454, 0
        %vm493 = vcmp.lt.s32.totalorder %v461, 0
        %vm494 = vmand %vm478, %vm462
        %vm495 = vmand %vm479, %vm463
        %vm496 = vmand %vm480, %vm464
        %vm497 = vmand %vm481, %vm465
        %vm498 = vmand %vm482, %vm466
        %vm499 = vmand %vm483, %vm467
        %vm500 = vmand %vm484, %vm468
        %vm501 = vmand %vm485, %vm469
        %vm502 = vmand %vm486, %vm470
        %vm503 = vmand %vm487, %vm471
        %vm504 = vmand %vm488, %vm472
        %vm505 = vmand %vm489, %vm473
        %vm506 = vmand %vm490, %vm474
        %vm507 = vmand %vm491, %vm475
        %vm508 = vmand %vm492, %vm476
        %vm509 = vmand %vm493, %vm477
        %v510 = vadd.s32 %v356, 16
        %v511 = vadd.s32 %v363, 16
        %v512 = vadd.s32 %v370, 16
        %v513 = vadd.s32 %v377, 16
        %v514 = vadd.s32 %v384, 16
        %v515 = vadd.s32 %v391, 16
        %v516 = vadd.s32 %v398, 16
        %v517 = vadd.s32 %v405, 16
        %v518 = vadd.s32 %v412, 16
        %v519 = vadd.s32 %v419, 16
        %v520 = vadd.s32 %v426, 16
        %v521 = vadd.s32 %v433, 16
        %v522 = vadd.s32 %v440, 16
        %v523 = vadd.s32 %v447, 16
        %v524 = vadd.s32 %v454, 16
        %v525 = vadd.s32 %v461, 16
        %v526 = vsel %vm494, %v510, %v356
        %v527 = vsel %vm495, %v511, %v363
        %v528 = vsel %vm496, %v512, %v370
        %v529 = vsel %vm497, %v513, %v377
        %v530 = vsel %vm498, %v514, %v384
        %v531 = vsel %vm499, %v515, %v391
        %v532 = vsel %vm500, %v516, %v398
        %v533 = vsel %vm501, %v517, %v405
        %v534 = vsel %vm502, %v518, %v412
        %v535 = vsel %vm503, %v519, %v419
        %v536 = vsel %vm504, %v520, %v426
        %v537 = vsel %vm505, %v521, %v433
        %v538 = vsel %vm506, %v522, %v440
        %v539 = vsel %vm507, %v523, %v447
        %v540 = vsel %vm508, %v524, %v454
        %v541 = vsel %vm509, %v525, %v461
        %v542 = vld [vmem:[%s331] sm:$0xff]
        %v543 = vld [vmem:[%s331 + $0x8] sm:$0xff]
        %v544 = vld [vmem:[%s331 + $0x10] sm:$0xff]
        %v545 = vld [vmem:[%s331 + $0x18] sm:$0xff]
        %v546 = vld [vmem:[%s331 + $0x20] sm:$0xff]
        %v547 = vld [vmem:[%s331 + $0x28] sm:$0xff]
        %v548 = vld [vmem:[%s331 + $0x30] sm:$0xff]
        %v549 = vld [vmem:[%s331 + $0x38] sm:$0xff]
        %v550 = vld [vmem:[%s331 + $0x40] sm:$0xff]
        %v551 = vld [vmem:[%s331 + $0x48] sm:$0xff]
        %v552 = vld [vmem:[%s331 + $0x50] sm:$0xff]
        %v553 = vld [vmem:[%s331 + $0x58] sm:$0xff]
        %v554 = vld [vmem:[%s331 + $0x60] sm:$0xff]
        %v555 = vld [vmem:[%s331 + $0x68] sm:$0xff]
        %v556 = vld [vmem:[%s331 + $0x70] sm:$0xff]
        %v557 = vld [vmem:[%s331 + $0x78] sm:$0xff]
        %v558 = vld [vmem:[%s1] sm:$0xff]
        %v559 = vld [vmem:[%s2] sm:$0x1]
        %v561 = vlaneseq
        %v562 = vshrl.u32 %v561, 7
        %v563 = vsub.s32 0, %v562
        %v564 = vrot.slane %v559, %v563
        %vm566 = vcmask 64512
        %v568 = vsel %vm566, %v542, 0
        %v571 = vsel %vm566, %v543, 0
        %v574 = vsel %vm566, %v544, 0
        %v577 = vsel %vm566, %v545, 0
        %v580 = vsel %vm566, %v546, 0
        %v583 = vsel %vm566, %v547, 0
        %v586 = vsel %vm566, %v548, 0
        %v589 = vsel %vm566, %v549, 0
        %v592 = vsel %vm566, %v550, 0
        %v595 = vsel %vm566, %v551, 0
        %v598 = vsel %vm566, %v552, 0
        %v601 = vsel %vm566, %v553, 0
        %v604 = vsel %vm566, %v554, 0
        %v607 = vsel %vm566, %v555, 0
        %v610 = vsel %vm566, %v556, 0
        %v613 = vsel %vm566, %v557, 0
        %615 = vmatprep.subr.mxu0 0.0
        %616 = vmatpush1.msra.mxu0 %v558
        %617 = vmatprep.subr.mxu0 0.0
        %618 = vmatpush1.msra.mxu0 0.0
        %619 = vmatprep.subr.mxu0 0.0
        %620 = vmatpush1.msra.mxu0 0.0
        %621 = vmatprep.subr.mxu0 0.0
        %622 = vmatpush1.msra.mxu0 0.0
        %623 = vmatprep.subr.mxu0 0.0
        %624 = vmatpush1.msra.mxu0 0.0
        %625 = vmatprep.subr.mxu0 0.0
        %626 = vmatpush1.msra.mxu0 0.0
        %627 = vmatprep.subr.mxu0 0.0
        %628 = vmatpush1.msra.mxu0 0.0
        %629 = vmatprep.subr.mxu0 0.0
        %630 = vmatpush1.msra.mxu0 0.0
        %631 = vmatprep.subr.mxu0 0.0
        %632 = vmatpush1.msra.mxu0 0.0
        %633 = vmatprep.subr.mxu0 0.0
        %634 = vmatpush1.msra.mxu0 0.0
        %635 = vmatprep.subr.mxu0 0.0
        %636 = vmatpush1.msra.mxu0 0.0
        %637 = vmatprep.subr.mxu0 0.0
        %638 = vmatpush1.msra.mxu0 0.0
        %639 = vmatprep.subr.mxu0 0.0
        %640 = vmatpush1.msra.mxu0 0.0
        %641 = vmatprep.subr.mxu0 0.0
        %642 = vmatpush1.msra.mxu0 0.0
        %643 = vmatprep.subr.mxu0 0.0
        %644 = vmatpush1.msra.mxu0 0.0
        %645 = vmatprep.subr.mxu0 0.0
        %646 = vmatpush1.msra.mxu0 0.0
        %647 = vmatprep.subr.mxu0 0.0
        %648 = vmatpush1.msra.mxu0 0.0
        %649 = vmatprep.subr.mxu0 0.0
        %650 = vmatpush1.msra.mxu0 0.0
        %651 = vmatprep.subr.mxu0 0.0
        %652 = vmatpush1.msra.mxu0 0.0
        %653 = vmatprep.subr.mxu0 0.0
        %654 = vmatpush1.msra.mxu0 0.0
        %655 = vmatprep.subr.mxu0 0.0
        %656 = vmatpush1.msra.mxu0 0.0
        %657 = vmatprep.subr.mxu0 0.0
        %658 = vmatpush1.msra.mxu0 0.0
        %659 = vmatprep.subr.mxu0 0.0
        %660 = vmatpush1.msra.mxu0 0.0
        %661 = vmatprep.subr.mxu0 0.0
        %662 = vmatpush1.msra.mxu0 0.0
        %663 = vmatprep.subr.mxu0 0.0
        %664 = vmatpush1.msra.mxu0 0.0
        %665 = vmatprep.subr.mxu0 0.0
        %666 = vmatpush1.msra.mxu0 0.0
        %667 = vmatprep.subr.mxu0 0.0
        %668 = vmatpush1.msra.mxu0 0.0
        %669 = vmatprep.subr.mxu0 0.0
        %670 = vmatpush1.msra.mxu0 0.0
        %671 = vmatprep.subr.mxu0 0.0
        %672 = vmatpush1.msra.mxu0 0.0
        %673 = vmatprep.subr.mxu0 0.0
        %674 = vmatpush1.msra.mxu0 0.0
        %675 = vmatprep.subr.mxu0 0.0
        %676 = vmatpush1.msra.mxu0 0.0
        %677 = vmatprep.subr.mxu0 0.0
        %678 = vmatpush1.msra.mxu0 0.0
        %679 = vmatprep.mubr.f32.mxu0 0.0
        %680 = vmatmul.mubr.f32.gmra.mrb[0].mxu0 %v568
        %v681 = vpop.f32.mrb[0].mxu0
        %v682 = vadd.f32 %v564, %v681
        %v683 = vpop.f32.mrb[0].mxu0
        %684 = vmatprep.mubr.f32.mxu0 0.0
        %685 = vmatmul.mubr.f32.gmra.mrb[0].mxu0 %v571
        %v686 = vpop.f32.mrb[0].mxu0
        %v687 = vadd.f32 %v564, %v686
        %v688 = vpop.f32.mrb[0].mxu0
        %689 = vmatprep.mubr.f32.mxu0 0.0
        %690 = vmatmul.mubr.f32.gmra.mrb[0].mxu0 %v574
        %v691 = vpop.f32.mrb[0].mxu0
        %v692 = vadd.f32 %v564, %v691
        %v693 = vpop.f32.mrb[0].mxu0
        %694 = vmatprep.mubr.f32.mxu0 0.0
        %695 = vmatmul.mubr.f32.gmra.mrb[0].mxu0 %v577
        %v696 = vpop.f32.mrb[0].mxu0
        %v697 = vadd.f32 %v564, %v696
        %v698 = vpop.f32.mrb[0].mxu0
        %699 = vmatprep.mubr.f32.mxu0 0.0
        %700 = vmatmul.mubr.f32.gmra.mrb[0].mxu0 %v580
        %v701 = vpop.f32.mrb[0].mxu0
        %v702 = vadd.f32 %v564, %v701
        %v703 = vpop.f32.mrb[0].mxu0
        %704 = vmatprep.mubr.f32.mxu0 0.0
        %705 = vmatmul.mubr.f32.gmra.mrb[0].mxu0 %v583
        %v706 = vpop.f32.mrb[0].mxu0
        %v707 = vadd.f32 %v564, %v706
        %v708 = vpop.f32.mrb[0].mxu0
        %709 = vmatprep.mubr.f32.mxu0 0.0
        %710 = vmatmul.mubr.f32.gmra.mrb[0].mxu0 %v586
        %v711 = vpop.f32.mrb[0].mxu0
        %v712 = vadd.f32 %v564, %v711
        %v713 = vpop.f32.mrb[0].mxu0
        %714 = vmatprep.mubr.f32.mxu0 0.0
        %715 = vmatmul.mubr.f32.gmra.mrb[0].mxu0 %v589
        %v716 = vpop.f32.mrb[0].mxu0
        %v717 = vadd.f32 %v564, %v716
        %v718 = vpop.f32.mrb[0].mxu0
        %719 = vmatprep.mubr.f32.mxu0 0.0
        %720 = vmatmul.mubr.f32.gmra.mrb[0].mxu0 %v592
        %v721 = vpop.f32.mrb[0].mxu0
        %v722 = vadd.f32 %v564, %v721
        %v723 = vpop.f32.mrb[0].mxu0
        %724 = vmatprep.mubr.f32.mxu0 0.0
        %725 = vmatmul.mubr.f32.gmra.mrb[0].mxu0 %v595
        %v726 = vpop.f32.mrb[0].mxu0
        %v727 = vadd.f32 %v564, %v726
        %v728 = vpop.f32.mrb[0].mxu0
        %729 = vmatprep.mubr.f32.mxu0 0.0
        %730 = vmatmul.mubr.f32.gmra.mrb[0].mxu0 %v598
        %v731 = vpop.f32.mrb[0].mxu0
        %v732 = vadd.f32 %v564, %v731
        %v733 = vpop.f32.mrb[0].mxu0
        %734 = vmatprep.mubr.f32.mxu0 0.0
        %735 = vmatmul.mubr.f32.gmra.mrb[0].mxu0 %v601
        %v736 = vpop.f32.mrb[0].mxu0
        %v737 = vadd.f32 %v564, %v736
        %v738 = vpop.f32.mrb[0].mxu0
        %739 = vmatprep.mubr.f32.mxu0 0.0
        %740 = vmatmul.mubr.f32.gmra.mrb[0].mxu0 %v604
        %v741 = vpop.f32.mrb[0].mxu0
        %v742 = vadd.f32 %v564, %v741
        %v743 = vpop.f32.mrb[0].mxu0
        %744 = vmatprep.mubr.f32.mxu0 0.0
        %745 = vmatmul.mubr.f32.gmra.mrb[0].mxu0 %v607
        %v746 = vpop.f32.mrb[0].mxu0
        %v747 = vadd.f32 %v564, %v746
        %v748 = vpop.f32.mrb[0].mxu0
        %749 = vmatprep.mubr.f32.mxu0 0.0
        %750 = vmatmul.mubr.f32.gmra.mrb[0].mxu0 %v610
        %v751 = vpop.f32.mrb[0].mxu0
        %v752 = vadd.f32 %v564, %v751
        %v753 = vpop.f32.mrb[0].mxu0
        %754 = vmatprep.mubr.f32.mxu0 0.0
        %755 = vmatmul.mubr.f32.gmra.mrb[0].mxu0 %v613
        %v756 = vpop.f32.mrb[0].mxu0
        %v757 = vadd.f32 %v564, %v756
        %v758 = vpop.f32.mrb[0].mxu0
        %759 = vdwg.mxu0
        %v760 = vmax.f32 %v682, 0.0
        %v761 = vmax.f32 %v687, 0.0
        %v762 = vmax.f32 %v692, 0.0
        %v763 = vmax.f32 %v697, 0.0
        %v764 = vmax.f32 %v702, 0.0
        %v765 = vmax.f32 %v707, 0.0
        %v766 = vmax.f32 %v712, 0.0
        %v767 = vmax.f32 %v717, 0.0
        %v768 = vmax.f32 %v722, 0.0
        %v769 = vmax.f32 %v727, 0.0
        %v770 = vmax.f32 %v732, 0.0
        %v771 = vmax.f32 %v737, 0.0
        %v772 = vmax.f32 %v742, 0.0
        %v773 = vmax.f32 %v747, 0.0
        %v774 = vmax.f32 %v752, 0.0
        %v775 = vmax.f32 %v757, 0.0
        %v776 = vld [vmem:[%s3] sm:$0xff]
        %v777 = vld [vmem:[%s3 + $0x8] sm:$0xff]
        %v778 = vld [vmem:[%s3 + $0x10] sm:$0xff]
        %v779 = vld [vmem:[%s3 + $0x18] sm:$0xff]
        %v780 = vld [vmem:[%s3 + $0x20] sm:$0xff]
        %v781 = vld [vmem:[%s3 + $0x28] sm:$0xff]
        %v782 = vld [vmem:[%s3 + $0x30] sm:$0xff]
        %v783 = vld [vmem:[%s3 + $0x38] sm:$0xff]
        %v784 = vld [vmem:[%s3 + $0x40] sm:$0xff]
        %v785 = vld [vmem:[%s3 + $0x48] sm:$0xff]
        %v786 = vld [vmem:[%s3 + $0x50] sm:$0xff]
        %v787 = vld [vmem:[%s3 + $0x58] sm:$0xff]
        %v788 = vld [vmem:[%s3 + $0x60] sm:$0xff]
        %v789 = vld [vmem:[%s3 + $0x68] sm:$0xff]
        %v790 = vld [vmem:[%s3 + $0x70] sm:$0xff]
        %v791 = vld [vmem:[%s3 + $0x78] sm:$0xff]
        %v792 = vld [vmem:[%s3 + $0x80] sm:$0xff]
        %v793 = vld [vmem:[%s3 + $0x88] sm:$0xff]
        %v794 = vld [vmem:[%s3 + $0x90] sm:$0xff]
        %v795 = vld [vmem:[%s3 + $0x98] sm:$0xff]
        %v796 = vld [vmem:[%s3 + $0xa0] sm:$0xff]
        %v797 = vld [vmem:[%s3 + $0xa8] sm:$0xff]
        %v798 = vld [vmem:[%s3 + $0xb0] sm:$0xff]
        %v799 = vld [vmem:[%s3 + $0xb8] sm:$0xff]
        %v800 = vld [vmem:[%s3 + $0xc0] sm:$0xff]
        %v801 = vld [vmem:[%s3 + $0xc8] sm:$0xff]
        %v802 = vld [vmem:[%s3 + $0xd0] sm:$0xff]
        %v803 = vld [vmem:[%s3 + $0xd8] sm:$0xff]
        %v804 = vld [vmem:[%s3 + $0xe0] sm:$0xff]
        %v805 = vld [vmem:[%s3 + $0xe8] sm:$0xff]
        %v806 = vld [vmem:[%s3 + $0xf0] sm:$0xff]
        %v807 = vld [vmem:[%s3 + $0xf8] sm:$0xff]
        %v808 = vld [vmem:[%s3 + $0x100] sm:$0xff]
        %v809 = vld [vmem:[%s3 + $0x108] sm:$0xff]
        %v810 = vld [vmem:[%s3 + $0x110] sm:$0xff]
        %v811 = vld [vmem:[%s3 + $0x118] sm:$0xff]
        %v812 = vld [vmem:[%s3 + $0x120] sm:$0xff]
        %v813 = vld [vmem:[%s3 + $0x128] sm:$0xff]
        %v814 = vld [vmem:[%s3 + $0x130] sm:$0xff]
        %v815 = vld [vmem:[%s3 + $0x138] sm:$0xff]
        %v816 = vld [vmem:[%s3 + $0x140] sm:$0xff]
        %v817 = vld [vmem:[%s3 + $0x148] sm:$0xff]
        %v818 = vld [vmem:[%s3 + $0x150] sm:$0xff]
        %v819 = vld [vmem:[%s3 + $0x158] sm:$0xff]
        %v820 = vld [vmem:[%s3 + $0x160] sm:$0xff]
        %v821 = vld [vmem:[%s3 + $0x168] sm:$0xff]
        %v822 = vld [vmem:[%s3 + $0x170] sm:$0xff]
        %v823 = vld [vmem:[%s3 + $0x178] sm:$0xff]
        %v824 = vld [vmem:[%s3 + $0x180] sm:$0xff]
        %v825 = vld [vmem:[%s3 + $0x188] sm:$0xff]
        %v826 = vld [vmem:[%s3 + $0x190] sm:$0xff]
        %v827 = vld [vmem:[%s3 + $0x198] sm:$0xff]
        %v828 = vld [vmem:[%s3 + $0x1a0] sm:$0xff]
        %v829 = vld [vmem:[%s3 + $0x1a8] sm:$0xff]
        %v830 = vld [vmem:[%s3 + $0x1b0] sm:$0xff]
        %v831 = vld [vmem:[%s3 + $0x1b8] sm:$0xff]
        %v832 = vld [vmem:[%s3 + $0x1c0] sm:$0xff]
        %v833 = vld [vmem:[%s3 + $0x1c8] sm:$0xff]
        %v834 = vld [vmem:[%s3 + $0x1d0] sm:$0xff]
        %v835 = vld [vmem:[%s3 + $0x1d8] sm:$0xff]
        %v836 = vld [vmem:[%s3 + $0x1e0] sm:$0xff]
        %v837 = vld [vmem:[%s3 + $0x1e8] sm:$0xff]
        %v838 = vld [vmem:[%s3 + $0x1f0] sm:$0xff]
        %v839 = vld [vmem:[%s3 + $0x1f8] sm:$0xff]
        %v840 = vld [vmem:[%s3 + $0x200] sm:$0xff]
        %v841 = vld [vmem:[%s3 + $0x208] sm:$0xff]
        %v842 = vld [vmem:[%s3 + $0x210] sm:$0xff]
        %v843 = vld [vmem:[%s3 + $0x218] sm:$0xff]
        %v844 = vld [vmem:[%s3 + $0x220] sm:$0xff]
        %v845 = vld [vmem:[%s3 + $0x228] sm:$0xff]
        %v846 = vld [vmem:[%s3 + $0x230] sm:$0xff]
        %v847 = vld [vmem:[%s3 + $0x238] sm:$0xff]
        %v848 = vld [vmem:[%s3 + $0x240] sm:$0xff]
        %v849 = vld [vmem:[%s3 + $0x248] sm:$0xff]
        %v850 = vld [vmem:[%s3 + $0x250] sm:$0xff]
        %v851 = vld [vmem:[%s3 + $0x258] sm:$0xff]
        %v852 = vld [vmem:[%s3 + $0x260] sm:$0xff]
        %v853 = vld [vmem:[%s3 + $0x268] sm:$0xff]
        %v854 = vld [vmem:[%s3 + $0x270] sm:$0xff]
        %v855 = vld [vmem:[%s3 + $0x278] sm:$0xff]
        %v856 = vld [vmem:[%s3 + $0x280] sm:$0xff]
        %v857 = vld [vmem:[%s3 + $0x288] sm:$0xff]
        %v858 = vld [vmem:[%s3 + $0x290] sm:$0xff]
        %v859 = vld [vmem:[%s3 + $0x298] sm:$0xff]
        %v860 = vld [vmem:[%s3 + $0x2a0] sm:$0xff]
        %v861 = vld [vmem:[%s3 + $0x2a8] sm:$0xff]
        %v862 = vld [vmem:[%s3 + $0x2b0] sm:$0xff]
        %v863 = vld [vmem:[%s3 + $0x2b8] sm:$0xff]
        %v864 = vld [vmem:[%s3 + $0x2c0] sm:$0xff]
        %v865 = vld [vmem:[%s3 + $0x2c8] sm:$0xff]
        %v866 = vld [vmem:[%s3 + $0x2d0] sm:$0xff]
        %v867 = vld [vmem:[%s3 + $0x2d8] sm:$0xff]
        %v868 = vld [vmem:[%s3 + $0x2e0] sm:$0xff]
        %v869 = vld [vmem:[%s3 + $0x2e8] sm:$0xff]
        %v870 = vld [vmem:[%s3 + $0x2f0] sm:$0xff]
        %v871 = vld [vmem:[%s3 + $0x2f8] sm:$0xff]
        %v872 = vld [vmem:[%s3 + $0x300] sm:$0xff]
        %v873 = vld [vmem:[%s3 + $0x308] sm:$0xff]
        %v874 = vld [vmem:[%s3 + $0x310] sm:$0xff]
        %v875 = vld [vmem:[%s3 + $0x318] sm:$0xff]
        %v876 = vld [vmem:[%s3 + $0x320] sm:$0xff]
        %v877 = vld [vmem:[%s3 + $0x328] sm:$0xff]
        %v878 = vld [vmem:[%s3 + $0x330] sm:$0xff]
        %v879 = vld [vmem:[%s3 + $0x338] sm:$0xff]
        %v880 = vld [vmem:[%s3 + $0x340] sm:$0xff]
        %v881 = vld [vmem:[%s3 + $0x348] sm:$0xff]
        %v882 = vld [vmem:[%s3 + $0x350] sm:$0xff]
        %v883 = vld [vmem:[%s3 + $0x358] sm:$0xff]
        %v884 = vld [vmem:[%s3 + $0x360] sm:$0xff]
        %v885 = vld [vmem:[%s3 + $0x368] sm:$0xff]
        %v886 = vld [vmem:[%s3 + $0x370] sm:$0xff]
        %v887 = vld [vmem:[%s3 + $0x378] sm:$0xff]
        %v888 = vld [vmem:[%s3 + $0x380] sm:$0xff]
        %v889 = vld [vmem:[%s3 + $0x388] sm:$0xff]
        %v890 = vld [vmem:[%s3 + $0x390] sm:$0xff]
        %v891 = vld [vmem:[%s3 + $0x398] sm:$0xff]
        %v892 = vld [vmem:[%s3 + $0x3a0] sm:$0xff]
        %v893 = vld [vmem:[%s3 + $0x3a8] sm:$0xff]
        %v894 = vld [vmem:[%s3 + $0x3b0] sm:$0xff]
        %v895 = vld [vmem:[%s3 + $0x3b8] sm:$0xff]
        %v896 = vld [vmem:[%s3 + $0x3c0] sm:$0xff]
        %v897 = vld [vmem:[%s3 + $0x3c8] sm:$0xff]
        %v898 = vld [vmem:[%s3 + $0x3d0] sm:$0xff]
        %v899 = vld [vmem:[%s3 + $0x3d8] sm:$0xff]
        %v900 = vld [vmem:[%s3 + $0x3e0] sm:$0xff]
        %v901 = vld [vmem:[%s3 + $0x3e8] sm:$0xff]
        %v902 = vld [vmem:[%s3 + $0x3f0] sm:$0xff]
        %v903 = vld [vmem:[%s3 + $0x3f8] sm:$0xff]
        %v904 = vld [vmem:[%s3 + $0x400] sm:$0xff]
        %v905 = vld [vmem:[%s3 + $0x408] sm:$0xff]
        %v906 = vld [vmem:[%s3 + $0x410] sm:$0xff]
        %v907 = vld [vmem:[%s3 + $0x418] sm:$0xff]
        %v908 = vld [vmem:[%s3 + $0x420] sm:$0xff]
        %v909 = vld [vmem:[%s3 + $0x428] sm:$0xff]
        %v910 = vld [vmem:[%s3 + $0x430] sm:$0xff]
        %v911 = vld [vmem:[%s3 + $0x438] sm:$0xff]
        %v912 = vld [vmem:[%s3 + $0x440] sm:$0xff]
        %v913 = vld [vmem:[%s3 + $0x448] sm:$0xff]
        %v914 = vld [vmem:[%s3 + $0x450] sm:$0xff]
        %v915 = vld [vmem:[%s3 + $0x458] sm:$0xff]
        %v916 = vld [vmem:[%s3 + $0x460] sm:$0xff]
        %v917 = vld [vmem:[%s3 + $0x468] sm:$0xff]
        %v918 = vld [vmem:[%s3 + $0x470] sm:$0xff]
        %v919 = vld [vmem:[%s3 + $0x478] sm:$0xff]
        %v920 = vld [vmem:[%s3 + $0x480] sm:$0xff]
        %v921 = vld [vmem:[%s3 + $0x488] sm:$0xff]
        %v922 = vld [vmem:[%s3 + $0x490] sm:$0xff]
        %v923 = vld [vmem:[%s3 + $0x498] sm:$0xff]
        %v924 = vld [vmem:[%s3 + $0x4a0] sm:$0xff]
        %v925 = vld [vmem:[%s3 + $0x4a8] sm:$0xff]
        %v926 = vld [vmem:[%s3 + $0x4b0] sm:$0xff]
        %v927 = vld [vmem:[%s3 + $0x4b8] sm:$0xff]
        %v928 = vld [vmem:[%s3 + $0x4c0] sm:$0xff]
        %v929 = vld [vmem:[%s3 + $0x4c8] sm:$0xff]
        %v930 = vld [vmem:[%s3 + $0x4d0] sm:$0xff]
        %v931 = vld [vmem:[%s3 + $0x4d8] sm:$0xff]
        %v932 = vld [vmem:[%s3 + $0x4e0] sm:$0xff]
        %v933 = vld [vmem:[%s3 + $0x4e8] sm:$0xff]
        %v934 = vld [vmem:[%s3 + $0x4f0] sm:$0xff]
        %v935 = vld [vmem:[%s3 + $0x4f8] sm:$0xff]
        %v936 = vld [vmem:[%s4] sm:$0x3]
        %v937 = vrot.slane %v760, 6
        %v938 = vrot.slane %v761, 6
        %v939 = vrot.slane %v762, 6
        %v940 = vrot.slane %v763, 6
        %v941 = vrot.slane %v764, 6
        %v942 = vrot.slane %v765, 6
        %v943 = vrot.slane %v766, 6
        %v944 = vrot.slane %v767, 6
        %v945 = vrot.slane %v768, 6
        %v946 = vrot.slane %v769, 6
        %v947 = vrot.slane %v770, 6
        %v948 = vrot.slane %v771, 6
        %v949 = vrot.slane %v772, 6
        %v950 = vrot.slane %v773, 6
        %v951 = vrot.slane %v774, 6
        %v952 = vrot.slane %v775, 6
        %vm953 = vcmp.lt.s32.totalorder %v334, 2
        %v954 = vsel %vm953, %v951, %v952
        %v955 = vsel %vm953, %v950, %v951
        %v956 = vsel %vm953, %v949, %v950
        %v957 = vsel %vm953, %v948, %v949
        %v958 = vsel %vm953, %v947, %v948
        %v959 = vsel %vm953, %v946, %v947
        %v960 = vsel %vm953, %v945, %v946
        %v961 = vsel %vm953, %v944, %v945
        %v962 = vsel %vm953, %v943, %v944
        %v963 = vsel %vm953, %v942, %v943
        %v964 = vsel %vm953, %v941, %v942
        %v965 = vsel %vm953, %v940, %v941
        %v966 = vsel %vm953, %v939, %v940
        %v967 = vsel %vm953, %v938, %v939
        %v968 = vsel %vm953, %v937, %v938
        %v969 = vsel %vm953, %v952, %v937
        %vm970 = vcmp.ge.s32.totalorder %v526, 2
        %vm971 = vcmp.ge.s32.totalorder %v527, 2
        %vm972 = vcmp.ge.s32.totalorder %v528, 2
        %vm973 = vcmp.ge.s32.totalorder %v529, 2
        %vm974 = vcmp.ge.s32.totalorder %v530, 2
        %vm975 = vcmp.ge.s32.totalorder %v531, 2
        %vm976 = vcmp.ge.s32.totalorder %v532, 2
        %vm977 = vcmp.ge.s32.totalorder %v533, 2
        %vm978 = vcmp.ge.s32.totalorder %v534, 2
        %vm979 = vcmp.ge.s32.totalorder %v535, 2
        %vm980 = vcmp.ge.s32.totalorder %v536, 2
        %vm981 = vcmp.ge.s32.totalorder %v537, 2
        %vm982 = vcmp.ge.s32.totalorder %v538, 2
        %vm983 = vcmp.ge.s32.totalorder %v539, 2
        %vm984 = vcmp.ge.s32.totalorder %v540, 2
        %vm985 = vcmp.ge.s32.totalorder %v541, 2
        %v986 = vsel %vm970, 1, 0
        %v987 = vsel %vm971, 1, 0
        %v988 = vsel %vm972, 1, 0
        %v989 = vsel %vm973, 1, 0
        %v990 = vsel %vm974, 1, 0
        %v991 = vsel %vm975, 1, 0
        %v992 = vsel %vm976, 1, 0
        %v993 = vsel %vm977, 1, 0
        %v994 = vsel %vm978, 1, 0
        %v995 = vsel %vm979, 1, 0
        %v996 = vsel %vm980, 1, 0
        %v997 = vsel %vm981, 1, 0
        %v998 = vsel %vm982, 1, 0
        %v999 = vsel %vm983, 1, 0
        %v1000 = vsel %vm984, 1, 0
        %v1001 = vsel %vm985, 1, 0
        %vm1002 = vcmp.eq.s32.totalorder %v986, 1
        %vm1003 = vcmp.eq.s32.totalorder %v987, 1
        %vm1004 = vcmp.eq.s32.totalorder %v988, 1
        %vm1005 = vcmp.eq.s32.totalorder %v989, 1
        %vm1006 = vcmp.eq.s32.totalorder %v990, 1
        %vm1007 = vcmp.eq.s32.totalorder %v991, 1
        %vm1008 = vcmp.eq.s32.totalorder %v992, 1
        %vm1009 = vcmp.eq.s32.totalorder %v993, 1
        %vm1010 = vcmp.eq.s32.totalorder %v994, 1
        %vm1011 = vcmp.eq.s32.totalorder %v995, 1
        %vm1012 = vcmp.eq.s32.totalorder %v996, 1
        %vm1013 = vcmp.eq.s32.totalorder %v997, 1
        %vm1014 = vcmp.eq.s32.totalorder %v998, 1
        %vm1015 = vcmp.eq.s32.totalorder %v999, 1
        %vm1016 = vcmp.eq.s32.totalorder %v1000, 1
        %vm1017 = vcmp.eq.s32.totalorder %v1001, 1
        %v1018 = vsel %vm1002, %v969, 0.0
        %v1019 = vsel %vm1003, %v968, 0.0
        %v1020 = vsel %vm1004, %v967, 0.0
        %v1021 = vsel %vm1005, %v966, 0.0
        %v1022 = vsel %vm1006, %v965, 0.0
        %v1023 = vsel %vm1007, %v964, 0.0
        %v1024 = vsel %vm1008, %v963, 0.0
        %v1025 = vsel %vm1009, %v962, 0.0
        %v1026 = vsel %vm1010, %v961, 0.0
        %v1027 = vsel %vm1011, %v960, 0.0
        %v1028 = vsel %vm1012, %v959, 0.0
        %v1029 = vsel %vm1013, %v958, 0.0
        %v1030 = vsel %vm1014, %v957, 0.0
        %v1031 = vsel %vm1015, %v956, 0.0
        %v1032 = vsel %vm1016, %v955, 0.0
        %v1033 = vsel %vm1017, %v954, 0.0
        %v1034 = vrot.slane %v760, 7
        %v1035 = vrot.slane %v761, 7
        %v1036 = vrot.slane %v762, 7
        %v1037 = vrot.slane %v763, 7
        %v1038 = vrot.slane %v764, 7
        %v1039 = vrot.slane %v765, 7
        %v1040 = vrot.slane %v766, 7
        %v1041 = vrot.slane %v767, 7
        %v1042 = vrot.slane %v768, 7
        %v1043 = vrot.slane %v769, 7
        %v1044 = vrot.slane %v770, 7
        %v1045 = vrot.slane %v771, 7
        %v1046 = vrot.slane %v772, 7
        %v1047 = vrot.slane %v773, 7
        %v1048 = vrot.slane %v774, 7
        %v1049 = vrot.slane %v775, 7
        %vm1050 = vcmp.lt.s32.totalorder %v334, 1
        %v1051 = vsel %vm1050, %v1048, %v1049
        %v1052 = vsel %vm1050, %v1047, %v1048
        %v1053 = vsel %vm1050, %v1046, %v1047
        %v1054 = vsel %vm1050, %v1045, %v1046
        %v1055 = vsel %vm1050, %v1044, %v1045
        %v1056 = vsel %vm1050, %v1043, %v1044
        %v1057 = vsel %vm1050, %v1042, %v1043
        %v1058 = vsel %vm1050, %v1041, %v1042
        %v1059 = vsel %vm1050, %v1040, %v1041
        %v1060 = vsel %vm1050, %v1039, %v1040
        %v1061 = vsel %vm1050, %v1038, %v1039
        %v1062 = vsel %vm1050, %v1037, %v1038
        %v1063 = vsel %vm1050, %v1036, %v1037
        %v1064 = vsel %vm1050, %v1035, %v1036
        %v1065 = vsel %vm1050, %v1034, %v1035
        %v1066 = vsel %vm1050, %v1049, %v1034
        %vm1067 = vcmp.ge.s32.totalorder %v526, 1
        %vm1068 = vcmp.ge.s32.totalorder %v527, 1
        %vm1069 = vcmp.ge.s32.totalorder %v528, 1
        %vm1070 = vcmp.ge.s32.totalorder %v529, 1
        %vm1071 = vcmp.ge.s32.totalorder %v530, 1
        %vm1072 = vcmp.ge.s32.totalorder %v531, 1
        %vm1073 = vcmp.ge.s32.totalorder %v532, 1
        %vm1074 = vcmp.ge.s32.totalorder %v533, 1
        %vm1075 = vcmp.ge.s32.totalorder %v534, 1
        %vm1076 = vcmp.ge.s32.totalorder %v535, 1
        %vm1077 = vcmp.ge.s32.totalorder %v536, 1
        %vm1078 = vcmp.ge.s32.totalorder %v537, 1
        %vm1079 = vcmp.ge.s32.totalorder %v538, 1
        %vm1080 = vcmp.ge.s32.totalorder %v539, 1
        %vm1081 = vcmp.ge.s32.totalorder %v540, 1
        %vm1082 = vcmp.ge.s32.totalorder %v541, 1
        %v1083 = vsel %vm1067, 1, 0
        %v1084 = vsel %vm1068, 1, 0
        %v1085 = vsel %vm1069, 1, 0
        %v1086 = vsel %vm1070, 1, 0
        %v1087 = vsel %vm1071, 1, 0
        %v1088 = vsel %vm1072, 1, 0
        %v1089 = vsel %vm1073, 1, 0
        %v1090 = vsel %vm1074, 1, 0
        %v1091 = vsel %vm1075, 1, 0
        %v1092 = vsel %vm1076, 1, 0
        %v1093 = vsel %vm1077, 1, 0
        %v1094 = vsel %vm1078, 1, 0
        %v1095 = vsel %vm1079, 1, 0
        %v1096 = vsel %vm1080, 1, 0
        %v1097 = vsel %vm1081, 1, 0
        %v1098 = vsel %vm1082, 1, 0
        %vm1099 = vcmp.eq.s32.totalorder %v1083, 1
        %vm1100 = vcmp.eq.s32.totalorder %v1084, 1
        %vm1101 = vcmp.eq.s32.totalorder %v1085, 1
        %vm1102 = vcmp.eq.s32.totalorder %v1086, 1
        %vm1103 = vcmp.eq.s32.totalorder %v1087, 1
        %vm1104 = vcmp.eq.s32.totalorder %v1088, 1
        %vm1105 = vcmp.eq.s32.totalorder %v1089, 1
        %vm1106 = vcmp.eq.s32.totalorder %v1090, 1
        %vm1107 = vcmp.eq.s32.totalorder %v1091, 1
        %vm1108 = vcmp.eq.s32.totalorder %v1092, 1
        %vm1109 = vcmp.eq.s32.totalorder %v1093, 1
        %vm1110 = vcmp.eq.s32.totalorder %v1094, 1
        %vm1111 = vcmp.eq.s32.totalorder %v1095, 1
        %vm1112 = vcmp.eq.s32.totalorder %v1096, 1
        %vm1113 = vcmp.eq.s32.totalorder %v1097, 1
        %vm1114 = vcmp.eq.s32.totalorder %v1098, 1
        %v1115 = vsel %vm1099, %v1066, 0.0
        %v1116 = vsel %vm1100, %v1065, 0.0
        %v1117 = vsel %vm1101, %v1064, 0.0
        %v1118 = vsel %vm1102, %v1063, 0.0
        %v1119 = vsel %vm1103, %v1062, 0.0
        %v1120 = vsel %vm1104, %v1061, 0.0
        %v1121 = vsel %vm1105, %v1060, 0.0
        %v1122 = vsel %vm1106, %v1059, 0.0
        %v1123 = vsel %vm1107, %v1058, 0.0
        %v1124 = vsel %vm1108, %v1057, 0.0
        %v1125 = vsel %vm1109, %v1056, 0.0
        %v1126 = vsel %vm1110, %v1055, 0.0
        %v1127 = vsel %vm1111, %v1054, 0.0
        %v1128 = vsel %vm1112, %v1053, 0.0
        %v1129 = vsel %vm1113, %v1052, 0.0
        %v1130 = vsel %vm1114, %v1051, 0.0
        %v1131 = vrot.slane %v760, 1
        %v1132 = vrot.slane %v761, 1
        %v1133 = vrot.slane %v762, 1
        %v1134 = vrot.slane %v763, 1
        %v1135 = vrot.slane %v764, 1
        %v1136 = vrot.slane %v765, 1
        %v1137 = vrot.slane %v766, 1
        %v1138 = vrot.slane %v767, 1
        %v1139 = vrot.slane %v768, 1
        %v1140 = vrot.slane %v769, 1
        %v1141 = vrot.slane %v770, 1
        %v1142 = vrot.slane %v771, 1
        %v1143 = vrot.slane %v772, 1
        %v1144 = vrot.slane %v773, 1
        %v1145 = vrot.slane %v774, 1
        %v1146 = vrot.slane %v775, 1
        %vm1147 = vcmp.lt.s32.totalorder %v334, 7
        %v1148 = vsel %vm1147, %v1145, %v1146
        %v1149 = vsel %vm1147, %v1144, %v1145
        %v1150 = vsel %vm1147, %v1143, %v1144
        %v1151 = vsel %vm1147, %v1142, %v1143
        %v1152 = vsel %vm1147, %v1141, %v1142
        %v1153 = vsel %vm1147, %v1140, %v1141
        %v1154 = vsel %vm1147, %v1139, %v1140
        %v1155 = vsel %vm1147, %v1138, %v1139
        %v1156 = vsel %vm1147, %v1137, %v1138
        %v1157 = vsel %vm1147, %v1136, %v1137
        %v1158 = vsel %vm1147, %v1135, %v1136
        %v1159 = vsel %vm1147, %v1134, %v1135
        %v1160 = vsel %vm1147, %v1133, %v1134
        %v1161 = vsel %vm1147, %v1132, %v1133
        %v1162 = vsel %vm1147, %v1131, %v1132
        %v1163 = vsel %vm1147, %v1146, %v1131
        %vm1164 = vcmp.lt.s32.totalorder %v526, 15
        %vm1165 = vcmp.lt.s32.totalorder %v527, 15
        %vm1166 = vcmp.lt.s32.totalorder %v528, 15
        %vm1167 = vcmp.lt.s32.totalorder %v529, 15
        %vm1168 = vcmp.lt.s32.totalorder %v530, 15
        %vm1169 = vcmp.lt.s32.totalorder %v531, 15
        %vm1170 = vcmp.lt.s32.totalorder %v532, 15
        %vm1171 = vcmp.lt.s32.totalorder %v533, 15
        %vm1172 = vcmp.lt.s32.totalorder %v534, 15
        %vm1173 = vcmp.lt.s32.totalorder %v535, 15
        %vm1174 = vcmp.lt.s32.totalorder %v536, 15
        %vm1175 = vcmp.lt.s32.totalorder %v537, 15
        %vm1176 = vcmp.lt.s32.totalorder %v538, 15
        %vm1177 = vcmp.lt.s32.totalorder %v539, 15
        %vm1178 = vcmp.lt.s32.totalorder %v540, 15
        %vm1179 = vcmp.lt.s32.totalorder %v541, 15
        %v1180 = vsel %vm1164, 1, 0
        %v1181 = vsel %vm1165, 1, 0
        %v1182 = vsel %vm1166, 1, 0
        %v1183 = vsel %vm1167, 1, 0
        %v1184 = vsel %vm1168, 1, 0
        %v1185 = vsel %vm1169, 1, 0
        %v1186 = vsel %vm1170, 1, 0
        %v1187 = vsel %vm1171, 1, 0
        %v1188 = vsel %vm1172, 1, 0
        %v1189 = vsel %vm1173, 1, 0
        %v1190 = vsel %vm1174, 1, 0
        %v1191 = vsel %vm1175, 1, 0
        %v1192 = vsel %vm1176, 1, 0
        %v1193 = vsel %vm1177, 1, 0
        %v1194 = vsel %vm1178, 1, 0
        %v1195 = vsel %vm1179, 1, 0
        %vm1196 = vcmp.eq.s32.totalorder %v1180, 1
        %vm1197 = vcmp.eq.s32.totalorder %v1181, 1
        %vm1198 = vcmp.eq.s32.totalorder %v1182, 1
        %vm1199 = vcmp.eq.s32.totalorder %v1183, 1
        %vm1200 = vcmp.eq.s32.totalorder %v1184, 1
        %vm1201 = vcmp.eq.s32.totalorder %v1185, 1
        %vm1202 = vcmp.eq.s32.totalorder %v1186, 1
        %vm1203 = vcmp.eq.s32.totalorder %v1187, 1
        %vm1204 = vcmp.eq.s32.totalorder %v1188, 1
        %vm1205 = vcmp.eq.s32.totalorder %v1189, 1
        %vm1206 = vcmp.eq.s32.totalorder %v1190, 1
        %vm1207 = vcmp.eq.s32.totalorder %v1191, 1
        %vm1208 = vcmp.eq.s32.totalorder %v1192, 1
        %vm1209 = vcmp.eq.s32.totalorder %v1193, 1
        %vm1210 = vcmp.eq.s32.totalorder %v1194, 1
        %vm1211 = vcmp.eq.s32.totalorder %v1195, 1
        %v1212 = vsel %vm1196, %v1162, 0.0
        %v1213 = vsel %vm1197, %v1161, 0.0
        %v1214 = vsel %vm1198, %v1160, 0.0
        %v1215 = vsel %vm1199, %v1159, 0.0
        %v1216 = vsel %vm1200, %v1158, 0.0
        %v1217 = vsel %vm1201, %v1157, 0.0
        %v1218 = vsel %vm1202, %v1156, 0.0
        %v1219 = vsel %vm1203, %v1155, 0.0
        %v1220 = vsel %vm1204, %v1154, 0.0
        %v1221 = vsel %vm1205, %v1153, 0.0
        %v1222 = vsel %vm1206, %v1152, 0.0
        %v1223 = vsel %vm1207, %v1151, 0.0
        %v1224 = vsel %vm1208, %v1150, 0.0
        %v1225 = vsel %vm1209, %v1149, 0.0
        %v1226 = vsel %vm1210, %v1148, 0.0
        %v1227 = vsel %vm1211, %v1163, 0.0
        %v1228 = vrot.slane %v760, 2
        %v1229 = vrot.slane %v761, 2
        %v1230 = vrot.slane %v762, 2
        %v1231 = vrot.slane %v763, 2
        %v1232 = vrot.slane %v764, 2
        %v1233 = vrot.slane %v765, 2
        %v1234 = vrot.slane %v766, 2
        %v1235 = vrot.slane %v767, 2
        %v1236 = vrot.slane %v768, 2
        %v1237 = vrot.slane %v769, 2
        %v1238 = vrot.slane %v770, 2
        %v1239 = vrot.slane %v771, 2
        %v1240 = vrot.slane %v772, 2
        %v1241 = vrot.slane %v773, 2
        %v1242 = vrot.slane %v774, 2
        %v1243 = vrot.slane %v775, 2
        %vm1244 = vcmp.lt.s32.totalorder %v334, 6
        %v1245 = vsel %vm1244, %v1242, %v1243
        %v1246 = vsel %vm1244, %v1241, %v1242
        %v1247 = vsel %vm1244, %v1240, %v1241
        %v1248 = vsel %vm1244, %v1239, %v1240
        %v1249 = vsel %vm1244, %v1238, %v1239
        %v1250 = vsel %vm1244, %v1237, %v1238
        %v1251 = vsel %vm1244, %v1236, %v1237
        %v1252 = vsel %vm1244, %v1235, %v1236
        %v1253 = vsel %vm1244, %v1234, %v1235
        %v1254 = vsel %vm1244, %v1233, %v1234
        %v1255 = vsel %vm1244, %v1232, %v1233
        %v1256 = vsel %vm1244, %v1231, %v1232
        %v1257 = vsel %vm1244, %v1230, %v1231
        %v1258 = vsel %vm1244, %v1229, %v1230
        %v1259 = vsel %vm1244, %v1228, %v1229
        %v1260 = vsel %vm1244, %v1243, %v1228
        %vm1261 = vcmp.lt.s32.totalorder %v526, 14
        %vm1262 = vcmp.lt.s32.totalorder %v527, 14
        %vm1263 = vcmp.lt.s32.totalorder %v528, 14
        %vm1264 = vcmp.lt.s32.totalorder %v529, 14
        %vm1265 = vcmp.lt.s32.totalorder %v530, 14
        %vm1266 = vcmp.lt.s32.totalorder %v531, 14
        %vm1267 = vcmp.lt.s32.totalorder %v532, 14
        %vm1268 = vcmp.lt.s32.totalorder %v533, 14
        %vm1269 = vcmp.lt.s32.totalorder %v534, 14
        %vm1270 = vcmp.lt.s32.totalorder %v535, 14
        %vm1271 = vcmp.lt.s32.totalorder %v536, 14
        %vm1272 = vcmp.lt.s32.totalorder %v537, 14
        %vm1273 = vcmp.lt.s32.totalorder %v538, 14
        %vm1274 = vcmp.lt.s32.totalorder %v539, 14
        %vm1275 = vcmp.lt.s32.totalorder %v540, 14
        %vm1276 = vcmp.lt.s32.totalorder %v541, 14
        %v1277 = vsel %vm1261, 1, 0
        %v1278 = vsel %vm1262, 1, 0
        %v1279 = vsel %vm1263, 1, 0
        %v1280 = vsel %vm1264, 1, 0
        %v1281 = vsel %vm1265, 1, 0
        %v1282 = vsel %vm1266, 1, 0
        %v1283 = vsel %vm1267, 1, 0
        %v1284 = vsel %vm1268, 1, 0
        %v1285 = vsel %vm1269, 1, 0
        %v1286 = vsel %vm1270, 1, 0
        %v1287 = vsel %vm1271, 1, 0
        %v1288 = vsel %vm1272, 1, 0
        %v1289 = vsel %vm1273, 1, 0
        %v1290 = vsel %vm1274, 1, 0
        %v1291 = vsel %vm1275, 1, 0
        %v1292 = vsel %vm1276, 1, 0
        %vm1293 = vcmp.eq.s32.totalorder %v1277, 1
        %vm1294 = vcmp.eq.s32.totalorder %v1278, 1
        %vm1295 = vcmp.eq.s32.totalorder %v1279, 1
        %vm1296 = vcmp.eq.s32.totalorder %v1280, 1
        %vm1297 = vcmp.eq.s32.totalorder %v1281, 1
        %vm1298 = vcmp.eq.s32.totalorder %v1282, 1
        %vm1299 = vcmp.eq.s32.totalorder %v1283, 1
        %vm1300 = vcmp.eq.s32.totalorder %v1284, 1
        %vm1301 = vcmp.eq.s32.totalorder %v1285, 1
        %vm1302 = vcmp.eq.s32.totalorder %v1286, 1
        %vm1303 = vcmp.eq.s32.totalorder %v1287, 1
        %vm1304 = vcmp.eq.s32.totalorder %v1288, 1
        %vm1305 = vcmp.eq.s32.totalorder %v1289, 1
        %vm1306 = vcmp.eq.s32.totalorder %v1290, 1
        %vm1307 = vcmp.eq.s32.totalorder %v1291, 1
        %vm1308 = vcmp.eq.s32.totalorder %v1292, 1
        %v1309 = vsel %vm1293, %v1259, 0.0
        %v1310 = vsel %vm1294, %v1258, 0.0
        %v1311 = vsel %vm1295, %v1257, 0.0
        %v1312 = vsel %vm1296, %v1256, 0.0
        %v1313 = vsel %vm1297, %v1255, 0.0
        %v1314 = vsel %vm1298, %v1254, 0.0
        %v1315 = vsel %vm1299, %v1253, 0.0
        %v1316 = vsel %vm1300, %v1252, 0.0
        %v1317 = vsel %vm1301, %v1251, 0.0
        %v1318 = vsel %vm1302, %v1250, 0.0
        %v1319 = vsel %vm1303, %v1249, 0.0
        %v1320 = vsel %vm1304, %v1248, 0.0
        %v1321 = vsel %vm1305, %v1247, 0.0
        %v1322 = vsel %vm1306, %v1246, 0.0
        %v1323 = vsel %vm1307, %v1245, 0.0
        %v1324 = vsel %vm1308, %v1260, 0.0
        %v1326 = vlaneseq
        %v1327 = vshrl.u32 %v1326, 7
        %v1328 = vsub.s32 0, %v1327
        %v1329 = vrot.slane %v936, %v1328
        %v1330 = vlaneseq
        %v1331 = vshrl.u32 %v1330, 7
        %v1332 = vsub.s32 1, %v1331
        %v1333 = vrot.slane %v936, %v1332
        %1336 = vmatprep.subr.mxu0 %v777
        %1337 = vmatpush1.msra.mxu0 %v776
        %1338 = vmatprep.subr.mxu0 %v779
        %1339 = vmatpush1.msra.mxu0 %v778
        %1340 = vmatprep.subr.mxu0 %v781
        %1341 = vmatpush1.msra.mxu0 %v780
        %1342 = vmatprep.subr.mxu0 %v783
        %1343 = vmatpush1.msra.mxu0 %v782
        %1344 = vmatprep.subr.mxu0 %v785
        %1345 = vmatpush1.msra.mxu0 %v784
        %1346 = vmatprep.subr.mxu0 %v787
        %1347 = vmatpush1.msra.mxu0 %v786
        %1348 = vmatprep.subr.mxu0 %v789
        %1349 = vmatpush1.msra.mxu0 %v788
        %1350 = vmatprep.subr.mxu0 %v791
        %1351 = vmatpush1.msra.mxu0 %v790
        %1352 = vmatprep.subr.mxu0 %v793
        %1353 = vmatpush1.msra.mxu0 %v792
        %1354 = vmatprep.subr.mxu0 %v795
        %1355 = vmatpush1.msra.mxu0 %v794
        %1356 = vmatprep.subr.mxu0 %v797
        %1357 = vmatpush1.msra.mxu0 %v796
        %1358 = vmatprep.subr.mxu0 %v799
        %1359 = vmatpush1.msra.mxu0 %v798
        %1360 = vmatprep.subr.mxu0 %v801
        %1361 = vmatpush1.msra.mxu0 %v800
        %1362 = vmatprep.subr.mxu0 %v803
        %1363 = vmatpush1.msra.mxu0 %v802
        %1364 = vmatprep.subr.mxu0 %v805
        %1365 = vmatpush1.msra.mxu0 %v804
        %1366 = vmatprep.subr.mxu0 %v807
        %1367 = vmatpush1.msra.mxu0 %v806
        %1368 = vmatprep.subr.mxu0 %v809
        %1369 = vmatpush1.msra.mxu0 %v808
        %1370 = vmatprep.subr.mxu0 %v811
        %1371 = vmatpush1.msra.mxu0 %v810
        %1372 = vmatprep.subr.mxu0 %v813
        %1373 = vmatpush1.msra.mxu0 %v812
        %1374 = vmatprep.subr.mxu0 %v815
        %1375 = vmatpush1.msra.mxu0 %v814
        %1376 = vmatprep.subr.mxu0 %v817
        %1377 = vmatpush1.msra.mxu0 %v816
        %1378 = vmatprep.subr.mxu0 %v819
        %1379 = vmatpush1.msra.mxu0 %v818
        %1380 = vmatprep.subr.mxu0 %v821
        %1381 = vmatpush1.msra.mxu0 %v820
        %1382 = vmatprep.subr.mxu0 %v823
        %1383 = vmatpush1.msra.mxu0 %v822
        %1384 = vmatprep.subr.mxu0 %v825
        %1385 = vmatpush1.msra.mxu0 %v824
        %1386 = vmatprep.subr.mxu0 %v827
        %1387 = vmatpush1.msra.mxu0 %v826
        %1388 = vmatprep.subr.mxu0 %v829
        %1389 = vmatpush1.msra.mxu0 %v828
        %1390 = vmatprep.subr.mxu0 %v831
        %1391 = vmatpush1.msra.mxu0 %v830
        %1392 = vmatprep.subr.mxu0 %v833
        %1393 = vmatpush1.msra.mxu0 %v832
        %1394 = vmatprep.subr.mxu0 %v835
        %1395 = vmatpush1.msra.mxu0 %v834
        %1396 = vmatprep.subr.mxu0 %v837
        %1397 = vmatpush1.msra.mxu0 %v836
        %1398 = vmatprep.subr.mxu0 %v839
        %1399 = vmatpush1.msra.mxu0 %v838
        %1400 = vmatprep.mubr.f32.mxu0 %v1115
        %1401 = vmatmul.mubr.f32.gmra.mrb[0].mxu0 %v1018
        %v1402 = vpop.f32.mrb[0].mxu0
        %v1403 = vadd.f32 %v1329, %v1402
        %v1404 = vpop.f32.mrb[0].mxu0
        %v1405 = vadd.f32 %v1333, %v1404
        %1406 = vmatprep.mubr.f32.mxu0 %v1116
        %1407 = vmatmul.mubr.f32.gmra.mrb[0].mxu0 %v1019
        %v1408 = vpop.f32.mrb[0].mxu0
        %v1409 = vadd.f32 %v1329, %v1408
        %v1410 = vpop.f32.mrb[0].mxu0
        %v1411 = vadd.f32 %v1333, %v1410
        %1412 = vmatprep.mubr.f32.mxu0 %v1117
        %1413 = vmatmul.mubr.f32.gmra.mrb[0].mxu0 %v1020
        %v1414 = vpop.f32.mrb[0].mxu0
        %v1415 = vadd.f32 %v1329, %v1414
        %v1416 = vpop.f32.mrb[0].mxu0
        %v1417 = vadd.f32 %v1333, %v1416
        %1418 = vmatprep.mubr.f32.mxu0 %v1118
        %1419 = vmatmul.mubr.f32.gmra.mrb[0].mxu0 %v1021
        %v1420 = vpop.f32.mrb[0].mxu0
        %v1421 = vadd.f32 %v1329, %v1420
        %v1422 = vpop.f32.mrb[0].mxu0
        %v1423 = vadd.f32 %v1333, %v1422
        %1424 = vmatprep.mubr.f32.mxu0 %v1119
        %1425 = vmatmul.mubr.f32.gmra.mrb[0].mxu0 %v1022
        %v1426 = vpop.f32.mrb[0].mxu0
        %v1427 = vadd.f32 %v1329, %v1426
        %v1428 = vpop.f32.mrb[0].mxu0
        %v1429 = vadd.f32 %v1333, %v1428
        %1430 = vmatprep.mubr.f32.mxu0 %v1120
        %1431 = vmatmul.mubr.f32.gmra.mrb[0].mxu0 %v1023
        %v1432 = vpop.f32.mrb[0].mxu0
        %v1433 = vadd.f32 %v1329, %v1432
        %v1434 = vpop.f32.mrb[0].mxu0
        %v1435 = vadd.f32 %v1333, %v1434
        %1436 = vmatprep.mubr.f32.mxu0 %v1121
        %1437 = vmatmul.mubr.f32.gmra.mrb[0].mxu0 %v1024
        %v1438 = vpop.f32.mrb[0].mxu0
        %v1439 = vadd.f32 %v1329, %v1438
        %v1440 = vpop.f32.mrb[0].mxu0
        %v1441 = vadd.f32 %v1333, %v1440
        %1442 = vmatprep.mubr.f32.mxu0 %v1122
        %1443 = vmatmul.mubr.f32.gmra.mrb[0].mxu0 %v1025
        %v1444 = vpop.f32.mrb[0].mxu0
        %v1445 = vadd.f32 %v1329, %v1444
        %v1446 = vpop.f32.mrb[0].mxu0
        %v1447 = vadd.f32 %v1333, %v1446
        %1448 = vmatprep.mubr.f32.mxu0 %v1123
        %1449 = vmatmul.mubr.f32.gmra.mrb[0].mxu0 %v1026
        %v1450 = vpop.f32.mrb[0].mxu0
        %v1451 = vadd.f32 %v1329, %v1450
        %v1452 = vpop.f32.mrb[0].mxu0
        %v1453 = vadd.f32 %v1333, %v1452
        %1454 = vmatprep.mubr.f32.mxu0 %v1124
        %1455 = vmatmul.mubr.f32.gmra.mrb[0].mxu0 %v1027
        %v1456 = vpop.f32.mrb[0].mxu0
        %v1457 = vadd.f32 %v1329, %v1456
        %v1458 = vpop.f32.mrb[0].mxu0
        %v1459 = vadd.f32 %v1333, %v1458
        %1460 = vmatprep.mubr.f32.mxu0 %v1125
        %1461 = vmatmul.mubr.f32.gmra.mrb[0].mxu0 %v1028
        %v1462 = vpop.f32.mrb[0].mxu0
        %v1463 = vadd.f32 %v1329, %v1462
        %v1464 = vpop.f32.mrb[0].mxu0
        %v1465 = vadd.f32 %v1333, %v1464
        %1466 = vmatprep.mubr.f32.mxu0 %v1126
        %1467 = vmatmul.mubr.f32.gmra.mrb[0].mxu0 %v1029
        %v1468 = vpop.f32.mrb[0].mxu0
        %v1469 = vadd.f32 %v1329, %v1468
        %v1470 = vpop.f32.mrb[0].mxu0
        %v1471 = vadd.f32 %v1333, %v1470
        %1472 = vmatprep.mubr.f32.mxu0 %v1127
        %1473 = vmatmul.mubr.f32.gmra.mrb[0].mxu0 %v1030
        %v1474 = vpop.f32.mrb[0].mxu0
        %v1475 = vadd.f32 %v1329, %v1474
        %v1476 = vpop.f32.mrb[0].mxu0
        %v1477 = vadd.f32 %v1333, %v1476
        %1478 = vmatprep.mubr.f32.mxu0 %v1128
        %1479 = vmatmul.mubr.f32.gmra.mrb[0].mxu0 %v1031
        %v1480 = vpop.f32.mrb[0].mxu0
        %v1481 = vadd.f32 %v1329, %v1480
        %v1482 = vpop.f32.mrb[0].mxu0
        %v1483 = vadd.f32 %v1333, %v1482
        %1484 = vmatprep.mubr.f32.mxu0 %v1129
        %1485 = vmatmul.mubr.f32.gmra.mrb[0].mxu0 %v1032
        %v1486 = vpop.f32.mrb[0].mxu0
        %v1487 = vadd.f32 %v1329, %v1486
        %v1488 = vpop.f32.mrb[0].mxu0
        %v1489 = vadd.f32 %v1333, %v1488
        %1490 = vmatprep.mubr.f32.mxu0 %v1130
        %1491 = vmatmul.mubr.f32.gmra.mrb[0].mxu0 %v1033
        %v1492 = vpop.f32.mrb[0].mxu0
        %v1493 = vadd.f32 %v1329, %v1492
        %v1494 = vpop.f32.mrb[0].mxu0
        %v1495 = vadd.f32 %v1333, %v1494
        %1496 = vdwg.mxu0
        %1497 = vmatprep.subr.mxu0 %v841
        %1498 = vmatpush1.msra.mxu0 %v840
        %1499 = vmatprep.subr.mxu0 %v843
        %1500 = vmatpush1.msra.mxu0 %v842
        %1501 = vmatprep.subr.mxu0 %v845
        %1502 = vmatpush1.msra.mxu0 %v844
        %1503 = vmatprep.subr.mxu0 %v847
        %1504 = vmatpush1.msra.mxu0 %v846
        %1505 = vmatprep.subr.mxu0 %v849
        %1506 = vmatpush1.msra.mxu0 %v848
        %1507 = vmatprep.subr.mxu0 %v851
        %1508 = vmatpush1.msra.mxu0 %v850
        %1509 = vmatprep.subr.mxu0 %v853
        %1510 = vmatpush1.msra.mxu0 %v852
        %1511 = vmatprep.subr.mxu0 %v855
        %1512 = vmatpush1.msra.mxu0 %v854
        %1513 = vmatprep.subr.mxu0 %v857
        %1514 = vmatpush1.msra.mxu0 %v856
        %1515 = vmatprep.subr.mxu0 %v859
        %1516 = vmatpush1.msra.mxu0 %v858
        %1517 = vmatprep.subr.mxu0 %v861
        %1518 = vmatpush1.msra.mxu0 %v860
        %1519 = vmatprep.subr.mxu0 %v863
        %1520 = vmatpush1.msra.mxu0 %v862
        %1521 = vmatprep.subr.mxu0 %v865
        %1522 = vmatpush1.msra.mxu0 %v864
        %1523 = vmatprep.subr.mxu0 %v867
        %1524 = vmatpush1.msra.mxu0 %v866
        %1525 = vmatprep.subr.mxu0 %v869
        %1526 = vmatpush1.msra.mxu0 %v868
        %1527 = vmatprep.subr.mxu0 %v871
        %1528 = vmatpush1.msra.mxu0 %v870
        %1529 = vmatprep.subr.mxu0 %v873
        %1530 = vmatpush1.msra.mxu0 %v872
        %1531 = vmatprep.subr.mxu0 %v875
        %1532 = vmatpush1.msra.mxu0 %v874
        %1533 = vmatprep.subr.mxu0 %v877
        %1534 = vmatpush1.msra.mxu0 %v876
        %1535 = vmatprep.subr.mxu0 %v879
        %1536 = vmatpush1.msra.mxu0 %v878
        %1537 = vmatprep.subr.mxu0 %v881
        %1538 = vmatpush1.msra.mxu0 %v880
        %1539 = vmatprep.subr.mxu0 %v883
        %1540 = vmatpush1.msra.mxu0 %v882
        %1541 = vmatprep.subr.mxu0 %v885
        %1542 = vmatpush1.msra.mxu0 %v884
        %1543 = vmatprep.subr.mxu0 %v887
        %1544 = vmatpush1.msra.mxu0 %v886
        %1545 = vmatprep.subr.mxu0 %v889
        %1546 = vmatpush1.msra.mxu0 %v888
        %1547 = vmatprep.subr.mxu0 %v891
        %1548 = vmatpush1.msra.mxu0 %v890
        %1549 = vmatprep.subr.mxu0 %v893
        %1550 = vmatpush1.msra.mxu0 %v892
        %1551 = vmatprep.subr.mxu0 %v895
        %1552 = vmatpush1.msra.mxu0 %v894
        %1553 = vmatprep.subr.mxu0 %v897
        %1554 = vmatpush1.msra.mxu0 %v896
        %1555 = vmatprep.subr.mxu0 %v899
        %1556 = vmatpush1.msra.mxu0 %v898
        %1557 = vmatprep.subr.mxu0 %v901
        %1558 = vmatpush1.msra.mxu0 %v900
        %1559 = vmatprep.subr.mxu0 %v903
        %1560 = vmatpush1.msra.mxu0 %v902
        %1561 = vmatprep.mubr.f32.mxu0 %v1212
        %1562 = vmatmul.mubr.f32.gmra.mrb[0].mxu0 %v760
        %v1563 = vpop.f32.mrb[0].mxu0
        %v1564 = vadd.f32 %v1403, %v1563
        %v1565 = vpop.f32.mrb[0].mxu0
        %v1566 = vadd.f32 %v1405, %v1565
        %1567 = vmatprep.mubr.f32.mxu0 %v1213
        %1568 = vmatmul.mubr.f32.gmra.mrb[0].mxu0 %v761
        %v1569 = vpop.f32.mrb[0].mxu0
        %v1570 = vadd.f32 %v1409, %v1569
        %v1571 = vpop.f32.mrb[0].mxu0
        %v1572 = vadd.f32 %v1411, %v1571
        %1573 = vmatprep.mubr.f32.mxu0 %v1214
        %1574 = vmatmul.mubr.f32.gmra.mrb[0].mxu0 %v762
        %v1575 = vpop.f32.mrb[0].mxu0
        %v1576 = vadd.f32 %v1415, %v1575
        %v1577 = vpop.f32.mrb[0].mxu0
        %v1578 = vadd.f32 %v1417, %v1577
        %1579 = vmatprep.mubr.f32.mxu0 %v1215
        %1580 = vmatmul.mubr.f32.gmra.mrb[0].mxu0 %v763
        %v1581 = vpop.f32.mrb[0].mxu0
        %v1582 = vadd.f32 %v1421, %v1581
        %v1583 = vpop.f32.mrb[0].mxu0
        %v1584 = vadd.f32 %v1423, %v1583
        %1585 = vmatprep.mubr.f32.mxu0 %v1216
        %1586 = vmatmul.mubr.f32.gmra.mrb[0].mxu0 %v764
        %v1587 = vpop.f32.mrb[0].mxu0
        %v1588 = vadd.f32 %v1427, %v1587
        %v1589 = vpop.f32.mrb[0].mxu0
        %v1590 = vadd.f32 %v1429, %v1589
        %1591 = vmatprep.mubr.f32.mxu0 %v1217
        %1592 = vmatmul.mubr.f32.gmra.mrb[0].mxu0 %v765
        %v1593 = vpop.f32.mrb[0].mxu0
        %v1594 = vadd.f32 %v1433, %v1593
        %v1595 = vpop.f32.mrb[0].mxu0
        %v1596 = vadd.f32 %v1435, %v1595
        %1597 = vmatprep.mubr.f32.mxu0 %v1218
        %1598 = vmatmul.mubr.f32.gmra.mrb[0].mxu0 %v766
        %v1599 = vpop.f32.mrb[0].mxu0
        %v1600 = vadd.f32 %v1439, %v1599
        %v1601 = vpop.f32.mrb[0].mxu0
        %v1602 = vadd.f32 %v1441, %v1601
        %1603 = vmatprep.mubr.f32.mxu0 %v1219
        %1604 = vmatmul.mubr.f32.gmra.mrb[0].mxu0 %v767
        %v1605 = vpop.f32.mrb[0].mxu0
        %v1606 = vadd.f32 %v1445, %v1605
        %v1607 = vpop.f32.mrb[0].mxu0
        %v1608 = vadd.f32 %v1447, %v1607
        %1609 = vmatprep.mubr.f32.mxu0 %v1220
        %1610 = vmatmul.mubr.f32.gmra.mrb[0].mxu0 %v768
        %v1611 = vpop.f32.mrb[0].mxu0
        %v1612 = vadd.f32 %v1451, %v1611
        %v1613 = vpop.f32.mrb[0].mxu0
        %v1614 = vadd.f32 %v1453, %v1613
        %1615 = vmatprep.mubr.f32.mxu0 %v1221
        %1616 = vmatmul.mubr.f32.gmra.mrb[0].mxu0 %v769
        %v1617 = vpop.f32.mrb[0].mxu0
        %v1618 = vadd.f32 %v1457, %v1617
        %v1619 = vpop.f32.mrb[0].mxu0
        %v1620 = vadd.f32 %v1459, %v1619
        %1621 = vmatprep.mubr.f32.mxu0 %v1222
        %1622 = vmatmul.mubr.f32.gmra.mrb[0].mxu0 %v770
        %v1623 = vpop.f32.mrb[0].mxu0
        %v1624 = vadd.f32 %v1463, %v1623
        %v1625 = vpop.f32.mrb[0].mxu0
        %v1626 = vadd.f32 %v1465, %v1625
        %1627 = vmatprep.mubr.f32.mxu0 %v1223
        %1628 = vmatmul.mubr.f32.gmra.mrb[0].mxu0 %v771
        %v1629 = vpop.f32.mrb[0].mxu0
        %v1630 = vadd.f32 %v1469, %v1629
        %v1631 = vpop.f32.mrb[0].mxu0
        %v1632 = vadd.f32 %v1471, %v1631
        %1633 = vmatprep.mubr.f32.mxu0 %v1224
        %1634 = vmatmul.mubr.f32.gmra.mrb[0].mxu0 %v772
        %v1635 = vpop.f32.mrb[0].mxu0
        %v1636 = vadd.f32 %v1475, %v1635
        %v1637 = vpop.f32.mrb[0].mxu0
        %v1638 = vadd.f32 %v1477, %v1637
        %1639 = vmatprep.mubr.f32.mxu0 %v1225
        %1640 = vmatmul.mubr.f32.gmra.mrb[0].mxu0 %v773
        %v1641 = vpop.f32.mrb[0].mxu0
        %v1642 = vadd.f32 %v1481, %v1641
        %v1643 = vpop.f32.mrb[0].mxu0
        %v1644 = vadd.f32 %v1483, %v1643
        %1645 = vmatprep.mubr.f32.mxu0 %v1226
        %1646 = vmatmul.mubr.f32.gmra.mrb[0].mxu0 %v774
        %v1647 = vpop.f32.mrb[0].mxu0
        %v1648 = vadd.f32 %v1487, %v1647
        %v1649 = vpop.f32.mrb[0].mxu0
        %v1650 = vadd.f32 %v1489, %v1649
        %1651 = vmatprep.mubr.f32.mxu0 %v1227
        %1652 = vmatmul.mubr.f32.gmra.mrb[0].mxu0 %v775
        %v1653 = vpop.f32.mrb[0].mxu0
        %v1654 = vadd.f32 %v1493, %v1653
        %v1655 = vpop.f32.mrb[0].mxu0
        %v1656 = vadd.f32 %v1495, %v1655
        %1657 = vdwg.mxu0
        %1658 = vmatprep.subr.mxu0 %v905
        %1659 = vmatpush1.msra.mxu0 %v904
        %1660 = vmatprep.subr.mxu0 %v907
        %1661 = vmatpush1.msra.mxu0 %v906
        %1662 = vmatprep.subr.mxu0 %v909
        %1663 = vmatpush1.msra.mxu0 %v908
        %1664 = vmatprep.subr.mxu0 %v911
        %1665 = vmatpush1.msra.mxu0 %v910
        %1666 = vmatprep.subr.mxu0 %v913
        %1667 = vmatpush1.msra.mxu0 %v912
        %1668 = vmatprep.subr.mxu0 %v915
        %1669 = vmatpush1.msra.mxu0 %v914
        %1670 = vmatprep.subr.mxu0 %v917
        %1671 = vmatpush1.msra.mxu0 %v916
        %1672 = vmatprep.subr.mxu0 %v919
        %1673 = vmatpush1.msra.mxu0 %v918
        %1674 = vmatprep.subr.mxu0 %v921
        %1675 = vmatpush1.msra.mxu0 %v920
        %1676 = vmatprep.subr.mxu0 %v923
        %1677 = vmatpush1.msra.mxu0 %v922
        %1678 = vmatprep.subr.mxu0 %v925
        %1679 = vmatpush1.msra.mxu0 %v924
        %1680 = vmatprep.subr.mxu0 %v927
        %1681 = vmatpush1.msra.mxu0 %v926
        %1682 = vmatprep.subr.mxu0 %v929
        %1683 = vmatpush1.msra.mxu0 %v928
        %1684 = vmatprep.subr.mxu0 %v931
        %1685 = vmatpush1.msra.mxu0 %v930
        %1686 = vmatprep.subr.mxu0 %v933
        %1687 = vmatpush1.msra.mxu0 %v932
        %1688 = vmatprep.subr.mxu0 %v935
        %1689 = vmatpush1.msra.mxu0 %v934
        %1690 = vmatprep.subr.mxu0 0.0
        %1691 = vmatpush1.msra.mxu0 0.0
        %1692 = vmatprep.subr.mxu0 0.0
        %1693 = vmatpush1.msra.mxu0 0.0
        %1694 = vmatprep.subr.mxu0 0.0
        %1695 = vmatpush1.msra.mxu0 0.0
        %1696 = vmatprep.subr.mxu0 0.0
        %1697 = vmatpush1.msra.mxu0 0.0
        %1698 = vmatprep.subr.mxu0 0.0
        %1699 = vmatpush1.msra.mxu0 0.0
        %1700 = vmatprep.subr.mxu0 0.0
        %1701 = vmatpush1.msra.mxu0 0.0
        %1702 = vmatprep.subr.mxu0 0.0
        %1703 = vmatpush1.msra.mxu0 0.0
        %1704 = vmatprep.subr.mxu0 0.0
        %1705 = vmatpush1.msra.mxu0 0.0
        %1706 = vmatprep.subr.mxu0 0.0
        %1707 = vmatpush1.msra.mxu0 0.0
        %1708 = vmatprep.subr.mxu0 0.0
        %1709 = vmatpush1.msra.mxu0 0.0
        %1710 = vmatprep.subr.mxu0 0.0
        %1711 = vmatpush1.msra.mxu0 0.0
        %1712 = vmatprep.subr.mxu0 0.0
        %1713 = vmatpush1.msra.mxu0 0.0
        %1714 = vmatprep.subr.mxu0 0.0
        %1715 = vmatpush1.msra.mxu0 0.0
        %1716 = vmatprep.subr.mxu0 0.0
        %1717 = vmatpush1.msra.mxu0 0.0
        %1718 = vmatprep.subr.mxu0 0.0
        %1719 = vmatpush1.msra.mxu0 0.0
        %1720 = vmatprep.subr.mxu0 0.0
        %1721 = vmatpush1.msra.mxu0 0.0
        %1722 = vmatprep.mubr.f32.mxu0 0.0
        %1723 = vmatmul.mubr.f32.gmra.mrb[0].mxu0 %v1309
        %v1724 = vpop.f32.mrb[0].mxu0
        %v1725 = vadd.f32 %v1564, %v1724
        %v1726 = vpop.f32.mrb[0].mxu0
        %v1727 = vadd.f32 %v1566, %v1726
        %1728 = vmatprep.mubr.f32.mxu0 0.0
        %1729 = vmatmul.mubr.f32.gmra.mrb[0].mxu0 %v1310
        %v1730 = vpop.f32.mrb[0].mxu0
        %v1731 = vadd.f32 %v1570, %v1730
        %v1732 = vpop.f32.mrb[0].mxu0
        %v1733 = vadd.f32 %v1572, %v1732
        %1734 = vmatprep.mubr.f32.mxu0 0.0
        %1735 = vmatmul.mubr.f32.gmra.mrb[0].mxu0 %v1311
        %v1736 = vpop.f32.mrb[0].mxu0
        %v1737 = vadd.f32 %v1576, %v1736
        %v1738 = vpop.f32.mrb[0].mxu0
        %v1739 = vadd.f32 %v1578, %v1738
        %1740 = vmatprep.mubr.f32.mxu0 0.0
        %1741 = vmatmul.mubr.f32.gmra.mrb[0].mxu0 %v1312
        %v1742 = vpop.f32.mrb[0].mxu0
        %v1743 = vadd.f32 %v1582, %v1742
        %v1744 = vpop.f32.mrb[0].mxu0
        %v1745 = vadd.f32 %v1584, %v1744
        %1746 = vmatprep.mubr.f32.mxu0 0.0
        %1747 = vmatmul.mubr.f32.gmra.mrb[0].mxu0 %v1313
        %v1748 = vpop.f32.mrb[0].mxu0
        %v1749 = vadd.f32 %v1588, %v1748
        %v1750 = vpop.f32.mrb[0].mxu0
        %v1751 = vadd.f32 %v1590, %v1750
        %1752 = vmatprep.mubr.f32.mxu0 0.0
        %1753 = vmatmul.mubr.f32.gmra.mrb[0].mxu0 %v1314
        %v1754 = vpop.f32.mrb[0].mxu0
        %v1755 = vadd.f32 %v1594, %v1754
        %v1756 = vpop.f32.mrb[0].mxu0
        %v1757 = vadd.f32 %v1596, %v1756
        %1758 = vmatprep.mubr.f32.mxu0 0.0
        %1759 = vmatmul.mubr.f32.gmra.mrb[0].mxu0 %v1315
        %v1760 = vpop.f32.mrb[0].mxu0
        %v1761 = vadd.f32 %v1600, %v1760
        %v1762 = vpop.f32.mrb[0].mxu0
        %v1763 = vadd.f32 %v1602, %v1762
        %1764 = vmatprep.mubr.f32.mxu0 0.0
        %1765 = vmatmul.mubr.f32.gmra.mrb[0].mxu0 %v1316
        %v1766 = vpop.f32.mrb[0].mxu0
        %v1767 = vadd.f32 %v1606, %v1766
        %v1768 = vpop.f32.mrb[0].mxu0
        %v1769 = vadd.f32 %v1608, %v1768
        %1770 = vmatprep.mubr.f32.mxu0 0.0
        %1771 = vmatmul.mubr.f32.gmra.mrb[0].mxu0 %v1317
        %v1772 = vpop.f32.mrb[0].mxu0
        %v1773 = vadd.f32 %v1612, %v1772
        %v1774 = vpop.f32.mrb[0].mxu0
        %v1775 = vadd.f32 %v1614, %v1774
        %1776 = vmatprep.mubr.f32.mxu0 0.0
        %1777 = vmatmul.mubr.f32.gmra.mrb[0].mxu0 %v1318
        %v1778 = vpop.f32.mrb[0].mxu0
        %v1779 = vadd.f32 %v1618, %v1778
        %v1780 = vpop.f32.mrb[0].mxu0
        %v1781 = vadd.f32 %v1620, %v1780
        %1782 = vmatprep.mubr.f32.mxu0 0.0
        %1783 = vmatmul.mubr.f32.gmra.mrb[0].mxu0 %v1319
        %v1784 = vpop.f32.mrb[0].mxu0
        %v1785 = vadd.f32 %v1624, %v1784
        %v1786 = vpop.f32.mrb[0].mxu0
        %v1787 = vadd.f32 %v1626, %v1786
        %1788 = vmatprep.mubr.f32.mxu0 0.0
        %1789 = vmatmul.mubr.f32.gmra.mrb[0].mxu0 %v1320
        %v1790 = vpop.f32.mrb[0].mxu0
        %v1791 = vadd.f32 %v1630, %v1790
        %v1792 = vpop.f32.mrb[0].mxu0
        %v1793 = vadd.f32 %v1632, %v1792
        %1794 = vmatprep.mubr.f32.mxu0 0.0
        %1795 = vmatmul.mubr.f32.gmra.mrb[0].mxu0 %v1321
        %v1796 = vpop.f32.mrb[0].mxu0
        %v1797 = vadd.f32 %v1636, %v1796
        %v1798 = vpop.f32.mrb[0].mxu0
        %v1799 = vadd.f32 %v1638, %v1798
        %1800 = vmatprep.mubr.f32.mxu0 0.0
        %1801 = vmatmul.mubr.f32.gmra.mrb[0].mxu0 %v1322
        %v1802 = vpop.f32.mrb[0].mxu0
        %v1803 = vadd.f32 %v1642, %v1802
        %v1804 = vpop.f32.mrb[0].mxu0
        %v1805 = vadd.f32 %v1644, %v1804
        %1806 = vmatprep.mubr.f32.mxu0 0.0
        %1807 = vmatmul.mubr.f32.gmra.mrb[0].mxu0 %v1323
        %v1808 = vpop.f32.mrb[0].mxu0
        %v1809 = vadd.f32 %v1648, %v1808
        %v1810 = vpop.f32.mrb[0].mxu0
        %v1811 = vadd.f32 %v1650, %v1810
        %1812 = vmatprep.mubr.f32.mxu0 0.0
        %1813 = vmatmul.mubr.f32.gmra.mrb[0].mxu0 %v1324
        %v1814 = vpop.f32.mrb[0].mxu0
        %v1815 = vadd.f32 %v1654, %v1814
        %v1816 = vpop.f32.mrb[0].mxu0
        %v1817 = vadd.f32 %v1656, %v1816
        %1818 = vdwg.mxu0
        %v1819 = vmax.f32 %v1725, 0.0
        %v1820 = vmax.f32 %v1727, 0.0
        %v1821 = vmax.f32 %v1731, 0.0
        %v1822 = vmax.f32 %v1733, 0.0
        %v1823 = vmax.f32 %v1737, 0.0
        %v1824 = vmax.f32 %v1739, 0.0
        %v1825 = vmax.f32 %v1743, 0.0
        %v1826 = vmax.f32 %v1745, 0.0
        %v1827 = vmax.f32 %v1749, 0.0
        %v1828 = vmax.f32 %v1751, 0.0
        %v1829 = vmax.f32 %v1755, 0.0
        %v1830 = vmax.f32 %v1757, 0.0
        %v1831 = vmax.f32 %v1761, 0.0
        %v1832 = vmax.f32 %v1763, 0.0
        %v1833 = vmax.f32 %v1767, 0.0
        %v1834 = vmax.f32 %v1769, 0.0
        %v1835 = vmax.f32 %v1773, 0.0
        %v1836 = vmax.f32 %v1775, 0.0
        %v1837 = vmax.f32 %v1779, 0.0
        %v1838 = vmax.f32 %v1781, 0.0
        %v1839 = vmax.f32 %v1785, 0.0
        %v1840 = vmax.f32 %v1787, 0.0
        %v1841 = vmax.f32 %v1791, 0.0
        %v1842 = vmax.f32 %v1793, 0.0
        %v1843 = vmax.f32 %v1797, 0.0
        %v1844 = vmax.f32 %v1799, 0.0
        %v1845 = vmax.f32 %v1803, 0.0
        %v1846 = vmax.f32 %v1805, 0.0
        %v1847 = vmax.f32 %v1809, 0.0
        %v1848 = vmax.f32 %v1811, 0.0
        %v1849 = vmax.f32 %v1815, 0.0
        %v1850 = vmax.f32 %v1817, 0.0
        %v1851 = vld [vmem:[%s5] sm:$0xff]
        %v1852 = vld [vmem:[%s5 + $0x8] sm:$0xff]
        %v1853 = vld [vmem:[%s5 + $0x10] sm:$0xff]
        %v1854 = vld [vmem:[%s5 + $0x18] sm:$0xff]
        %v1855 = vld [vmem:[%s5 + $0x20] sm:$0xff]
        %v1856 = vld [vmem:[%s5 + $0x28] sm:$0xff]
        %v1857 = vld [vmem:[%s5 + $0x30] sm:$0xff]
        %v1858 = vld [vmem:[%s5 + $0x38] sm:$0xff]
        %v1859 = vld [vmem:[%s5 + $0x40] sm:$0xff]
        %v1860 = vld [vmem:[%s5 + $0x48] sm:$0xff]
        %v1861 = vld [vmem:[%s5 + $0x50] sm:$0xff]
        %v1862 = vld [vmem:[%s5 + $0x58] sm:$0xff]
        %v1863 = vld [vmem:[%s5 + $0x60] sm:$0xff]
        %v1864 = vld [vmem:[%s5 + $0x68] sm:$0xff]
        %v1865 = vld [vmem:[%s5 + $0x70] sm:$0xff]
        %v1866 = vld [vmem:[%s5 + $0x78] sm:$0xff]
        %v1867 = vld [vmem:[%s5 + $0x80] sm:$0xff]
        %v1868 = vld [vmem:[%s5 + $0x88] sm:$0xff]
        %v1869 = vld [vmem:[%s5 + $0x90] sm:$0xff]
        %v1870 = vld [vmem:[%s5 + $0x98] sm:$0xff]
        %v1871 = vld [vmem:[%s5 + $0xa0] sm:$0xff]
        %v1872 = vld [vmem:[%s5 + $0xa8] sm:$0xff]
        %v1873 = vld [vmem:[%s5 + $0xb0] sm:$0xff]
        %v1874 = vld [vmem:[%s5 + $0xb8] sm:$0xff]
        %v1875 = vld [vmem:[%s5 + $0xc0] sm:$0xff]
        %v1876 = vld [vmem:[%s5 + $0xc8] sm:$0xff]
        %v1877 = vld [vmem:[%s5 + $0xd0] sm:$0xff]
        %v1878 = vld [vmem:[%s5 + $0xd8] sm:$0xff]
        %v1879 = vld [vmem:[%s5 + $0xe0] sm:$0xff]
        %v1880 = vld [vmem:[%s5 + $0xe8] sm:$0xff]
        %v1881 = vld [vmem:[%s5 + $0xf0] sm:$0xff]
        %v1882 = vld [vmem:[%s5 + $0xf8] sm:$0xff]
        %v1883 = vld [vmem:[%s5 + $0x100] sm:$0xff]
        %v1884 = vld [vmem:[%s5 + $0x108] sm:$0xff]
        %v1885 = vld [vmem:[%s5 + $0x110] sm:$0xff]
        %v1886 = vld [vmem:[%s5 + $0x118] sm:$0xff]
        %v1887 = vld [vmem:[%s5 + $0x120] sm:$0xff]
        %v1888 = vld [vmem:[%s5 + $0x128] sm:$0xff]
        %v1889 = vld [vmem:[%s5 + $0x130] sm:$0xff]
        %v1890 = vld [vmem:[%s5 + $0x138] sm:$0xff]
        %v1891 = vld [vmem:[%s5 + $0x140] sm:$0xff]
        %v1892 = vld [vmem:[%s5 + $0x148] sm:$0xff]
        %v1893 = vld [vmem:[%s5 + $0x150] sm:$0xff]
        %v1894 = vld [vmem:[%s5 + $0x158] sm:$0xff]
        %v1895 = vld [vmem:[%s5 + $0x160] sm:$0xff]
        %v1896 = vld [vmem:[%s5 + $0x168] sm:$0xff]
        %v1897 = vld [vmem:[%s5 + $0x170] sm:$0xff]
        %v1898 = vld [vmem:[%s5 + $0x178] sm:$0xff]
        %v1899 = vld [vmem:[%s5 + $0x180] sm:$0xff]
        %v1900 = vld [vmem:[%s5 + $0x188] sm:$0xff]
        %v1901 = vld [vmem:[%s5 + $0x190] sm:$0xff]
        %v1902 = vld [vmem:[%s5 + $0x198] sm:$0xff]
        %v1903 = vld [vmem:[%s5 + $0x1a0] sm:$0xff]
        %v1904 = vld [vmem:[%s5 + $0x1a8] sm:$0xff]
        %v1905 = vld [vmem:[%s5 + $0x1b0] sm:$0xff]
        %v1906 = vld [vmem:[%s5 + $0x1b8] sm:$0xff]
        %v1907 = vld [vmem:[%s5 + $0x1c0] sm:$0xff]
        %v1908 = vld [vmem:[%s5 + $0x1c8] sm:$0xff]
        %v1909 = vld [vmem:[%s5 + $0x1d0] sm:$0xff]
        %v1910 = vld [vmem:[%s5 + $0x1d8] sm:$0xff]
        %v1911 = vld [vmem:[%s5 + $0x1e0] sm:$0xff]
        %v1912 = vld [vmem:[%s5 + $0x1e8] sm:$0xff]
        %v1913 = vld [vmem:[%s5 + $0x1f0] sm:$0xff]
        %v1914 = vld [vmem:[%s5 + $0x1f8] sm:$0xff]
        %v1915 = vld [vmem:[%s5 + $0x200] sm:$0xff]
        %v1916 = vld [vmem:[%s5 + $0x208] sm:$0xff]
        %v1917 = vld [vmem:[%s5 + $0x210] sm:$0xff]
        %v1918 = vld [vmem:[%s5 + $0x218] sm:$0xff]
        %v1919 = vld [vmem:[%s5 + $0x220] sm:$0xff]
        %v1920 = vld [vmem:[%s5 + $0x228] sm:$0xff]
        %v1921 = vld [vmem:[%s5 + $0x230] sm:$0xff]
        %v1922 = vld [vmem:[%s5 + $0x238] sm:$0xff]
        %v1923 = vld [vmem:[%s5 + $0x240] sm:$0xff]
        %v1924 = vld [vmem:[%s5 + $0x248] sm:$0xff]
        %v1925 = vld [vmem:[%s5 + $0x250] sm:$0xff]
        %v1926 = vld [vmem:[%s5 + $0x258] sm:$0xff]
        %v1927 = vld [vmem:[%s5 + $0x260] sm:$0xff]
        %v1928 = vld [vmem:[%s5 + $0x268] sm:$0xff]
        %v1929 = vld [vmem:[%s5 + $0x270] sm:$0xff]
        %v1930 = vld [vmem:[%s5 + $0x278] sm:$0xff]
        %v1931 = vld [vmem:[%s5 + $0x280] sm:$0xff]
        %v1932 = vld [vmem:[%s5 + $0x288] sm:$0xff]
        %v1933 = vld [vmem:[%s5 + $0x290] sm:$0xff]
        %v1934 = vld [vmem:[%s5 + $0x298] sm:$0xff]
        %v1935 = vld [vmem:[%s5 + $0x2a0] sm:$0xff]
        %v1936 = vld [vmem:[%s5 + $0x2a8] sm:$0xff]
        %v1937 = vld [vmem:[%s5 + $0x2b0] sm:$0xff]
        %v1938 = vld [vmem:[%s5 + $0x2b8] sm:$0xff]
        %v1939 = vld [vmem:[%s5 + $0x2c0] sm:$0xff]
        %v1940 = vld [vmem:[%s5 + $0x2c8] sm:$0xff]
        %v1941 = vld [vmem:[%s5 + $0x2d0] sm:$0xff]
        %v1942 = vld [vmem:[%s5 + $0x2d8] sm:$0xff]
        %v1943 = vld [vmem:[%s5 + $0x2e0] sm:$0xff]
        %v1944 = vld [vmem:[%s5 + $0x2e8] sm:$0xff]
        %v1945 = vld [vmem:[%s5 + $0x2f0] sm:$0xff]
        %v1946 = vld [vmem:[%s5 + $0x2f8] sm:$0xff]
        %v1947 = vld [vmem:[%s6] sm:$0x1]
        %v1948 = vrot.slane %v1819, 7
        %v1949 = vrot.slane %v1820, 7
        %v1950 = vrot.slane %v1821, 7
        %v1951 = vrot.slane %v1822, 7
        %v1952 = vrot.slane %v1823, 7
        %v1953 = vrot.slane %v1824, 7
        %v1954 = vrot.slane %v1825, 7
        %v1955 = vrot.slane %v1826, 7
        %v1956 = vrot.slane %v1827, 7
        %v1957 = vrot.slane %v1828, 7
        %v1958 = vrot.slane %v1829, 7
        %v1959 = vrot.slane %v1830, 7
        %v1960 = vrot.slane %v1831, 7
        %v1961 = vrot.slane %v1832, 7
        %v1962 = vrot.slane %v1833, 7
        %v1963 = vrot.slane %v1834, 7
        %v1964 = vrot.slane %v1835, 7
        %v1965 = vrot.slane %v1836, 7
        %v1966 = vrot.slane %v1837, 7
        %v1967 = vrot.slane %v1838, 7
        %v1968 = vrot.slane %v1839, 7
        %v1969 = vrot.slane %v1840, 7
        %v1970 = vrot.slane %v1841, 7
        %v1971 = vrot.slane %v1842, 7
        %v1972 = vrot.slane %v1843, 7
        %v1973 = vrot.slane %v1844, 7
        %v1974 = vrot.slane %v1845, 7
        %v1975 = vrot.slane %v1846, 7
        %v1976 = vrot.slane %v1847, 7
        %v1977 = vrot.slane %v1848, 7
        %v1978 = vrot.slane %v1849, 7
        %v1979 = vrot.slane %v1850, 7
        %v1980 = vsel %vm1050, %v1976, %v1978
        %v1981 = vsel %vm1050, %v1977, %v1979
        %v1982 = vsel %vm1050, %v1974, %v1976
        %v1983 = vsel %vm1050, %v1975, %v1977
        %v1984 = vsel %vm1050, %v1972, %v1974
        %v1985 = vsel %vm1050, %v1973, %v1975
        %v1986 = vsel %vm1050, %v1970, %v1972
        %v1987 = vsel %vm1050, %v1971, %v1973
        %v1988 = vsel %vm1050, %v1968, %v1970
        %v1989 = vsel %vm1050, %v1969, %v1971
        %v1990 = vsel %vm1050, %v1966, %v1968
        %v1991 = vsel %vm1050, %v1967, %v1969
        %v1992 = vsel %vm1050, %v1964, %v1966
        %v1993 = vsel %vm1050, %v1965, %v1967
        %v1994 = vsel %vm1050, %v1962, %v1964
        %v1995 = vsel %vm1050, %v1963, %v1965
        %v1996 = vsel %vm1050, %v1960, %v1962
        %v1997 = vsel %vm1050, %v1961, %v1963
        %v1998 = vsel %vm1050, %v1958, %v1960
        %v1999 = vsel %vm1050, %v1959, %v1961
        %v2000 = vsel %vm1050, %v1956, %v1958
        %v2001 = vsel %vm1050, %v1957, %v1959
        %v2002 = vsel %vm1050, %v1954, %v1956
        %v2003 = vsel %vm1050, %v1955, %v1957
        %v2004 = vsel %vm1050, %v1952, %v1954
        %v2005 = vsel %vm1050, %v1953, %v1955
        %v2006 = vsel %vm1050, %v1950, %v1952
        %v2007 = vsel %vm1050, %v1951, %v1953
        %v2008 = vsel %vm1050, %v1948, %v1950
        %v2009 = vsel %vm1050, %v1949, %v1951
        %v2010 = vsel %vm1050, %v1978, %v1948
        %v2011 = vsel %vm1050, %v1979, %v1949
        %v2012 = vsel %vm1099, %v2010, 0.0
        %v2013 = vsel %vm1099, %v2011, 0.0
        %v2014 = vsel %vm1100, %v2008, 0.0
        %v2015 = vsel %vm1100, %v2009, 0.0
        %v2016 = vsel %vm1101, %v2006, 0.0
        %v2017 = vsel %vm1101, %v2007, 0.0
        %v2018 = vsel %vm1102, %v2004, 0.0
        %v2019 = vsel %vm1102, %v2005, 0.0
        %v2020 = vsel %vm1103, %v2002, 0.0
        %v2021 = vsel %vm1103, %v2003, 0.0
        %v2022 = vsel %vm1104, %v2000, 0.0
        %v2023 = vsel %vm1104, %v2001, 0.0
        %v2024 = vsel %vm1105, %v1998, 0.0
        %v2025 = vsel %vm1105, %v1999, 0.0
        %v2026 = vsel %vm1106, %v1996, 0.0
        %v2027 = vsel %vm1106, %v1997, 0.0
        %v2028 = vsel %vm1107, %v1994, 0.0
        %v2029 = vsel %vm1107, %v1995, 0.0
        %v2030 = vsel %vm1108, %v1992, 0.0
        %v2031 = vsel %vm1108, %v1993, 0.0
        %v2032 = vsel %vm1109, %v1990, 0.0
        %v2033 = vsel %vm1109, %v1991, 0.0
        %v2034 = vsel %vm1110, %v1988, 0.0
        %v2035 = vsel %vm1110, %v1989, 0.0
        %v2036 = vsel %vm1111, %v1986, 0.0
        %v2037 = vsel %vm1111, %v1987, 0.0
        %v2038 = vsel %vm1112, %v1984, 0.0
        %v2039 = vsel %vm1112, %v1985, 0.0
        %v2040 = vsel %vm1113, %v1982, 0.0
        %v2041 = vsel %vm1113, %v1983, 0.0
        %v2042 = vsel %vm1114, %v1980, 0.0
        %v2043 = vsel %vm1114, %v1981, 0.0
        %v2044 = vrot.slane %v1819, 1
        %v2045 = vrot.slane %v1820, 1
        %v2046 = vrot.slane %v1821, 1
        %v2047 = vrot.slane %v1822, 1
        %v2048 = vrot.slane %v1823, 1
        %v2049 = vrot.slane %v1824, 1
        %v2050 = vrot.slane %v1825, 1
        %v2051 = vrot.slane %v1826, 1
        %v2052 = vrot.slane %v1827, 1
        %v2053 = vrot.slane %v1828, 1
        %v2054 = vrot.slane %v1829, 1
        %v2055 = vrot.slane %v1830, 1
        %v2056 = vrot.slane %v1831, 1
        %v2057 = vrot.slane %v1832, 1
        %v2058 = vrot.slane %v1833, 1
        %v2059 = vrot.slane %v1834, 1
        %v2060 = vrot.slane %v1835, 1
        %v2061 = vrot.slane %v1836, 1
        %v2062 = vrot.slane %v1837, 1
        %v2063 = vrot.slane %v1838, 1
        %v2064 = vrot.slane %v1839, 1
        %v2065 = vrot.slane %v1840, 1
        %v2066 = vrot.slane %v1841, 1
        %v2067 = vrot.slane %v1842, 1
        %v2068 = vrot.slane %v1843, 1
        %v2069 = vrot.slane %v1844, 1
        %v2070 = vrot.slane %v1845, 1
        %v2071 = vrot.slane %v1846, 1
        %v2072 = vrot.slane %v1847, 1
        %v2073 = vrot.slane %v1848, 1
        %v2074 = vrot.slane %v1849, 1
        %v2075 = vrot.slane %v1850, 1
        %v2076 = vsel %vm1147, %v2072, %v2074
        %v2077 = vsel %vm1147, %v2073, %v2075
        %v2078 = vsel %vm1147, %v2070, %v2072
        %v2079 = vsel %vm1147, %v2071, %v2073
        %v2080 = vsel %vm1147, %v2068, %v2070
        %v2081 = vsel %vm1147, %v2069, %v2071
        %v2082 = vsel %vm1147, %v2066, %v2068
        %v2083 = vsel %vm1147, %v2067, %v2069
        %v2084 = vsel %vm1147, %v2064, %v2066
        %v2085 = vsel %vm1147, %v2065, %v2067
        %v2086 = vsel %vm1147, %v2062, %v2064
        %v2087 = vsel %vm1147, %v2063, %v2065
        %v2088 = vsel %vm1147, %v2060, %v2062
        %v2089 = vsel %vm1147, %v2061, %v2063
        %v2090 = vsel %vm1147, %v2058, %v2060
        %v2091 = vsel %vm1147, %v2059, %v2061
        %v2092 = vsel %vm1147, %v2056, %v2058
        %v2093 = vsel %vm1147, %v2057, %v2059
        %v2094 = vsel %vm1147, %v2054, %v2056
        %v2095 = vsel %vm1147, %v2055, %v2057
        %v2096 = vsel %vm1147, %v2052, %v2054
        %v2097 = vsel %vm1147, %v2053, %v2055
        %v2098 = vsel %vm1147, %v2050, %v2052
        %v2099 = vsel %vm1147, %v2051, %v2053
        %v2100 = vsel %vm1147, %v2048, %v2050
        %v2101 = vsel %vm1147, %v2049, %v2051
        %v2102 = vsel %vm1147, %v2046, %v2048
        %v2103 = vsel %vm1147, %v2047, %v2049
        %v2104 = vsel %vm1147, %v2044, %v2046
        %v2105 = vsel %vm1147, %v2045, %v2047
        %v2106 = vsel %vm1147, %v2074, %v2044
        %v2107 = vsel %vm1147, %v2075, %v2045
        %v2108 = vsel %vm1196, %v2104, 0.0
        %v2109 = vsel %vm1196, %v2105, 0.0
        %v2110 = vsel %vm1197, %v2102, 0.0
        %v2111 = vsel %vm1197, %v2103, 0.0
        %v2112 = vsel %vm1198, %v2100, 0.0
        %v2113 = vsel %vm1198, %v2101, 0.0
        %v2114 = vsel %vm1199, %v2098, 0.0
        %v2115 = vsel %vm1199, %v2099, 0.0
        %v2116 = vsel %vm1200, %v2096, 0.0
        %v2117 = vsel %vm1200, %v2097, 0.0
        %v2118 = vsel %vm1201, %v2094, 0.0
        %v2119 = vsel %vm1201, %v2095, 0.0
        %v2120 = vsel %vm1202, %v2092, 0.0
        %v2121 = vsel %vm1202, %v2093, 0.0
        %v2122 = vsel %vm1203, %v2090, 0.0
        %v2123 = vsel %vm1203, %v2091, 0.0
        %v2124 = vsel %vm1204, %v2088, 0.0
        %v2125 = vsel %vm1204, %v2089, 0.0
        %v2126 = vsel %vm1205, %v2086, 0.0
        %v2127 = vsel %vm1205, %v2087, 0.0
        %v2128 = vsel %vm1206, %v2084, 0.0
        %v2129 = vsel %vm1206, %v2085, 0.0
        %v2130 = vsel %vm1207, %v2082, 0.0
        %v2131 = vsel %vm1207, %v2083, 0.0
        %v2132 = vsel %vm1208, %v2080, 0.0
        %v2133 = vsel %vm1208, %v2081, 0.0
        %v2134 = vsel %vm1209, %v2078, 0.0
        %v2135 = vsel %vm1209, %v2079, 0.0
        %v2136 = vsel %vm1210, %v2076, 0.0
        %v2137 = vsel %vm1210, %v2077, 0.0
        %v2138 = vsel %vm1211, %v2106, 0.0
        %v2139 = vsel %vm1211, %v2107, 0.0
        %v2141 = vlaneseq
        %v2142 = vshrl.u32 %v2141, 7
        %v2143 = vsub.s32 0, %v2142
        %v2144 = vrot.slane %v1947, %v2143
        %2146 = vmatprep.subr.mxu0 0.0
        %2147 = vmatpush1.msra.mxu0 %v1851
        %2148 = vmatprep.subr.mxu0 0.0
        %2149 = vmatpush1.msra.mxu0 %v1852
        %2150 = vmatprep.subr.mxu0 0.0
        %2151 = vmatpush1.msra.mxu0 %v1853
        %2152 = vmatprep.subr.mxu0 0.0
        %2153 = vmatpush1.msra.mxu0 %v1854
        %2154 = vmatprep.subr.mxu0 0.0
        %2155 = vmatpush1.msra.mxu0 %v1855
        %2156 = vmatprep.subr.mxu0 0.0
        %2157 = vmatpush1.msra.mxu0 %v1856
        %2158 = vmatprep.subr.mxu0 0.0
        %2159 = vmatpush1.msra.mxu0 %v1857
        %2160 = vmatprep.subr.mxu0 0.0
        %2161 = vmatpush1.msra.mxu0 %v1858
        %2162 = vmatprep.subr.mxu0 0.0
        %2163 = vmatpush1.msra.mxu0 %v1859
        %2164 = vmatprep.subr.mxu0 0.0
        %2165 = vmatpush1.msra.mxu0 %v1860
        %2166 = vmatprep.subr.mxu0 0.0
        %2167 = vmatpush1.msra.mxu0 %v1861
        %2168 = vmatprep.subr.mxu0 0.0
        %2169 = vmatpush1.msra.mxu0 %v1862
        %2170 = vmatprep.subr.mxu0 0.0
        %2171 = vmatpush1.msra.mxu0 %v1863
        %2172 = vmatprep.subr.mxu0 0.0
        %2173 = vmatpush1.msra.mxu0 %v1864
        %2174 = vmatprep.subr.mxu0 0.0
        %2175 = vmatpush1.msra.mxu0 %v1865
        %2176 = vmatprep.subr.mxu0 0.0
        %2177 = vmatpush1.msra.mxu0 %v1866
        %2178 = vmatprep.subr.mxu0 0.0
        %2179 = vmatpush1.msra.mxu0 %v1867
        %2180 = vmatprep.subr.mxu0 0.0
        %2181 = vmatpush1.msra.mxu0 %v1868
        %2182 = vmatprep.subr.mxu0 0.0
        %2183 = vmatpush1.msra.mxu0 %v1869
        %2184 = vmatprep.subr.mxu0 0.0
        %2185 = vmatpush1.msra.mxu0 %v1870
        %2186 = vmatprep.subr.mxu0 0.0
        %2187 = vmatpush1.msra.mxu0 %v1871
        %2188 = vmatprep.subr.mxu0 0.0
        %2189 = vmatpush1.msra.mxu0 %v1872
        %2190 = vmatprep.subr.mxu0 0.0
        %2191 = vmatpush1.msra.mxu0 %v1873
        %2192 = vmatprep.subr.mxu0 0.0
        %2193 = vmatpush1.msra.mxu0 %v1874
        %2194 = vmatprep.subr.mxu0 0.0
        %2195 = vmatpush1.msra.mxu0 %v1875
        %2196 = vmatprep.subr.mxu0 0.0
        %2197 = vmatpush1.msra.mxu0 %v1876
        %2198 = vmatprep.subr.mxu0 0.0
        %2199 = vmatpush1.msra.mxu0 %v1877
        %2200 = vmatprep.subr.mxu0 0.0
        %2201 = vmatpush1.msra.mxu0 %v1878
        %2202 = vmatprep.subr.mxu0 0.0
        %2203 = vmatpush1.msra.mxu0 %v1879
        %2204 = vmatprep.subr.mxu0 0.0
        %2205 = vmatpush1.msra.mxu0 %v1880
        %2206 = vmatprep.subr.mxu0 0.0
        %2207 = vmatpush1.msra.mxu0 %v1881
        %2208 = vmatprep.subr.mxu0 0.0
        %2209 = vmatpush1.msra.mxu0 %v1882
        %2210 = vmatprep.mubr.f32.mxu0 %v2013
        %2211 = vmatmul.mubr.f32.gmra.mrb[0].mxu0 %v2012
        %v2212 = vpop.f32.mrb[0].mxu0
        %v2213 = vadd.f32 %v2144, %v2212
        %v2214 = vpop.f32.mrb[0].mxu0
        %2215 = vmatprep.mubr.f32.mxu0 %v2015
        %2216 = vmatmul.mubr.f32.gmra.mrb[0].mxu0 %v2014
        %v2217 = vpop.f32.mrb[0].mxu0
        %v2218 = vadd.f32 %v2144, %v2217
        %v2219 = vpop.f32.mrb[0].mxu0
        %2220 = vmatprep.mubr.f32.mxu0 %v2017
        %2221 = vmatmul.mubr.f32.gmra.mrb[0].mxu0 %v2016
        %v2222 = vpop.f32.mrb[0].mxu0
        %v2223 = vadd.f32 %v2144, %v2222
        %v2224 = vpop.f32.mrb[0].mxu0
        %2225 = vmatprep.mubr.f32.mxu0 %v2019
        %2226 = vmatmul.mubr.f32.gmra.mrb[0].mxu0 %v2018
        %v2227 = vpop.f32.mrb[0].mxu0
        %v2228 = vadd.f32 %v2144, %v2227
        %v2229 = vpop.f32.mrb[0].mxu0
        %2230 = vmatprep.mubr.f32.mxu0 %v2021
        %2231 = vmatmul.mubr.f32.gmra.mrb[0].mxu0 %v2020
        %v2232 = vpop.f32.mrb[0].mxu0
        %v2233 = vadd.f32 %v2144, %v2232
        %v2234 = vpop.f32.mrb[0].mxu0
        %2235 = vmatprep.mubr.f32.mxu0 %v2023
        %2236 = vmatmul.mubr.f32.gmra.mrb[0].mxu0 %v2022
        %v2237 = vpop.f32.mrb[0].mxu0
        %v2238 = vadd.f32 %v2144, %v2237
        %v2239 = vpop.f32.mrb[0].mxu0
        %2240 = vmatprep.mubr.f32.mxu0 %v2025
        %2241 = vmatmul.mubr.f32.gmra.mrb[0].mxu0 %v2024
        %v2242 = vpop.f32.mrb[0].mxu0
        %v2243 = vadd.f32 %v2144, %v2242
        %v2244 = vpop.f32.mrb[0].mxu0
        %2245 = vmatprep.mubr.f32.mxu0 %v2027
        %2246 = vmatmul.mubr.f32.gmra.mrb[0].mxu0 %v2026
        %v2247 = vpop.f32.mrb[0].mxu0
        %v2248 = vadd.f32 %v2144, %v2247
        %v2249 = vpop.f32.mrb[0].mxu0
        %2250 = vmatprep.mubr.f32.mxu0 %v2029
        %2251 = vmatmul.mubr.f32.gmra.mrb[0].mxu0 %v2028
        %v2252 = vpop.f32.mrb[0].mxu0
        %v2253 = vadd.f32 %v2144, %v2252
        %v2254 = vpop.f32.mrb[0].mxu0
        %2255 = vmatprep.mubr.f32.mxu0 %v2031
        %2256 = vmatmul.mubr.f32.gmra.mrb[0].mxu0 %v2030
        %v2257 = vpop.f32.mrb[0].mxu0
        %v2258 = vadd.f32 %v2144, %v2257
        %v2259 = vpop.f32.mrb[0].mxu0
        %2260 = vmatprep.mubr.f32.mxu0 %v2033
        %2261 = vmatmul.mubr.f32.gmra.mrb[0].mxu0 %v2032
        %v2262 = vpop.f32.mrb[0].mxu0
        %v2263 = vadd.f32 %v2144, %v2262
        %v2264 = vpop.f32.mrb[0].mxu0
        %2265 = vmatprep.mubr.f32.mxu0 %v2035
        %2266 = vmatmul.mubr.f32.gmra.mrb[0].mxu0 %v2034
        %v2267 = vpop.f32.mrb[0].mxu0
        %v2268 = vadd.f32 %v2144, %v2267
        %v2269 = vpop.f32.mrb[0].mxu0
        %2270 = vmatprep.mubr.f32.mxu0 %v2037
        %2271 = vmatmul.mubr.f32.gmra.mrb[0].mxu0 %v2036
        %v2272 = vpop.f32.mrb[0].mxu0
        %v2273 = vadd.f32 %v2144, %v2272
        %v2274 = vpop.f32.mrb[0].mxu0
        %2275 = vmatprep.mubr.f32.mxu0 %v2039
        %2276 = vmatmul.mubr.f32.gmra.mrb[0].mxu0 %v2038
        %v2277 = vpop.f32.mrb[0].mxu0
        %v2278 = vadd.f32 %v2144, %v2277
        %v2279 = vpop.f32.mrb[0].mxu0
        %2280 = vmatprep.mubr.f32.mxu0 %v2041
        %2281 = vmatmul.mubr.f32.gmra.mrb[0].mxu0 %v2040
        %v2282 = vpop.f32.mrb[0].mxu0
        %v2283 = vadd.f32 %v2144, %v2282
        %v2284 = vpop.f32.mrb[0].mxu0
        %2285 = vmatprep.mubr.f32.mxu0 %v2043
        %2286 = vmatmul.mubr.f32.gmra.mrb[0].mxu0 %v2042
        %v2287 = vpop.f32.mrb[0].mxu0
        %v2288 = vadd.f32 %v2144, %v2287
        %v2289 = vpop.f32.mrb[0].mxu0
        %2290 = vdwg.mxu0
        %2291 = vmatprep.subr.mxu0 0.0
        %2292 = vmatpush1.msra.mxu0 %v1883
        %2293 = vmatprep.subr.mxu0 0.0
        %2294 = vmatpush1.msra.mxu0 %v1884
        %2295 = vmatprep.subr.mxu0 0.0
        %2296 = vmatpush1.msra.mxu0 %v1885
        %2297 = vmatprep.subr.mxu0 0.0
        %2298 = vmatpush1.msra.mxu0 %v1886
        %2299 = vmatprep.subr.mxu0 0.0
        %2300 = vmatpush1.msra.mxu0 %v1887
        %2301 = vmatprep.subr.mxu0 0.0
        %2302 = vmatpush1.msra.mxu0 %v1888
        %2303 = vmatprep.subr.mxu0 0.0
        %2304 = vmatpush1.msra.mxu0 %v1889
        %2305 = vmatprep.subr.mxu0 0.0
        %2306 = vmatpush1.msra.mxu0 %v1890
        %2307 = vmatprep.subr.mxu0 0.0
        %2308 = vmatpush1.msra.mxu0 %v1891
        %2309 = vmatprep.subr.mxu0 0.0
        %2310 = vmatpush1.msra.mxu0 %v1892
        %2311 = vmatprep.subr.mxu0 0.0
        %2312 = vmatpush1.msra.mxu0 %v1893
        %2313 = vmatprep.subr.mxu0 0.0
        %2314 = vmatpush1.msra.mxu0 %v1894
        %2315 = vmatprep.subr.mxu0 0.0
        %2316 = vmatpush1.msra.mxu0 %v1895
        %2317 = vmatprep.subr.mxu0 0.0
        %2318 = vmatpush1.msra.mxu0 %v1896
        %2319 = vmatprep.subr.mxu0 0.0
        %2320 = vmatpush1.msra.mxu0 %v1897
        %2321 = vmatprep.subr.mxu0 0.0
        %2322 = vmatpush1.msra.mxu0 %v1898
        %2323 = vmatprep.subr.mxu0 0.0
        %2324 = vmatpush1.msra.mxu0 %v1899
        %2325 = vmatprep.subr.mxu0 0.0
        %2326 = vmatpush1.msra.mxu0 %v1900
        %2327 = vmatprep.subr.mxu0 0.0
        %2328 = vmatpush1.msra.mxu0 %v1901
        %2329 = vmatprep.subr.mxu0 0.0
        %2330 = vmatpush1.msra.mxu0 %v1902
        %2331 = vmatprep.subr.mxu0 0.0
        %2332 = vmatpush1.msra.mxu0 %v1903
        %2333 = vmatprep.subr.mxu0 0.0
        %2334 = vmatpush1.msra.mxu0 %v1904
        %2335 = vmatprep.subr.mxu0 0.0
        %2336 = vmatpush1.msra.mxu0 %v1905
        %2337 = vmatprep.subr.mxu0 0.0
        %2338 = vmatpush1.msra.mxu0 %v1906
        %2339 = vmatprep.subr.mxu0 0.0
        %2340 = vmatpush1.msra.mxu0 %v1907
        %2341 = vmatprep.subr.mxu0 0.0
        %2342 = vmatpush1.msra.mxu0 %v1908
        %2343 = vmatprep.subr.mxu0 0.0
        %2344 = vmatpush1.msra.mxu0 %v1909
        %2345 = vmatprep.subr.mxu0 0.0
        %2346 = vmatpush1.msra.mxu0 %v1910
        %2347 = vmatprep.subr.mxu0 0.0
        %2348 = vmatpush1.msra.mxu0 %v1911
        %2349 = vmatprep.subr.mxu0 0.0
        %2350 = vmatpush1.msra.mxu0 %v1912
        %2351 = vmatprep.subr.mxu0 0.0
        %2352 = vmatpush1.msra.mxu0 %v1913
        %2353 = vmatprep.subr.mxu0 0.0
        %2354 = vmatpush1.msra.mxu0 %v1914
        %2355 = vmatprep.mubr.f32.mxu0 %v1820
        %2356 = vmatmul.mubr.f32.gmra.mrb[0].mxu0 %v1819
        %v2357 = vpop.f32.mrb[0].mxu0
        %v2358 = vadd.f32 %v2213, %v2357
        %v2359 = vpop.f32.mrb[0].mxu0
        %2360 = vmatprep.mubr.f32.mxu0 %v1822
        %2361 = vmatmul.mubr.f32.gmra.mrb[0].mxu0 %v1821
        %v2362 = vpop.f32.mrb[0].mxu0
        %v2363 = vadd.f32 %v2218, %v2362
        %v2364 = vpop.f32.mrb[0].mxu0
        %2365 = vmatprep.mubr.f32.mxu0 %v1824
        %2366 = vmatmul.mubr.f32.gmra.mrb[0].mxu0 %v1823
        %v2367 = vpop.f32.mrb[0].mxu0
        %v2368 = vadd.f32 %v2223, %v2367
        %v2369 = vpop.f32.mrb[0].mxu0
        %2370 = vmatprep.mubr.f32.mxu0 %v1826
        %2371 = vmatmul.mubr.f32.gmra.mrb[0].mxu0 %v1825
        %v2372 = vpop.f32.mrb[0].mxu0
        %v2373 = vadd.f32 %v2228, %v2372
        %v2374 = vpop.f32.mrb[0].mxu0
        %2375 = vmatprep.mubr.f32.mxu0 %v1828
        %2376 = vmatmul.mubr.f32.gmra.mrb[0].mxu0 %v1827
        %v2377 = vpop.f32.mrb[0].mxu0
        %v2378 = vadd.f32 %v2233, %v2377
        %v2379 = vpop.f32.mrb[0].mxu0
        %2380 = vmatprep.mubr.f32.mxu0 %v1830
        %2381 = vmatmul.mubr.f32.gmra.mrb[0].mxu0 %v1829
        %v2382 = vpop.f32.mrb[0].mxu0
        %v2383 = vadd.f32 %v2238, %v2382
        %v2384 = vpop.f32.mrb[0].mxu0
        %2385 = vmatprep.mubr.f32.mxu0 %v1832
        %2386 = vmatmul.mubr.f32.gmra.mrb[0].mxu0 %v1831
        %v2387 = vpop.f32.mrb[0].mxu0
        %v2388 = vadd.f32 %v2243, %v2387
        %v2389 = vpop.f32.mrb[0].mxu0
        %2390 = vmatprep.mubr.f32.mxu0 %v1834
        %2391 = vmatmul.mubr.f32.gmra.mrb[0].mxu0 %v1833
        %v2392 = vpop.f32.mrb[0].mxu0
        %v2393 = vadd.f32 %v2248, %v2392
        %v2394 = vpop.f32.mrb[0].mxu0
        %2395 = vmatprep.mubr.f32.mxu0 %v1836
        %2396 = vmatmul.mubr.f32.gmra.mrb[0].mxu0 %v1835
        %v2397 = vpop.f32.mrb[0].mxu0
        %v2398 = vadd.f32 %v2253, %v2397
        %v2399 = vpop.f32.mrb[0].mxu0
        %2400 = vmatprep.mubr.f32.mxu0 %v1838
        %2401 = vmatmul.mubr.f32.gmra.mrb[0].mxu0 %v1837
        %v2402 = vpop.f32.mrb[0].mxu0
        %v2403 = vadd.f32 %v2258, %v2402
        %v2404 = vpop.f32.mrb[0].mxu0
        %2405 = vmatprep.mubr.f32.mxu0 %v1840
        %2406 = vmatmul.mubr.f32.gmra.mrb[0].mxu0 %v1839
        %v2407 = vpop.f32.mrb[0].mxu0
        %v2408 = vadd.f32 %v2263, %v2407
        %v2409 = vpop.f32.mrb[0].mxu0
        %2410 = vmatprep.mubr.f32.mxu0 %v1842
        %2411 = vmatmul.mubr.f32.gmra.mrb[0].mxu0 %v1841
        %v2412 = vpop.f32.mrb[0].mxu0
        %v2413 = vadd.f32 %v2268, %v2412
        %v2414 = vpop.f32.mrb[0].mxu0
        %2415 = vmatprep.mubr.f32.mxu0 %v1844
        %2416 = vmatmul.mubr.f32.gmra.mrb[0].mxu0 %v1843
        %v2417 = vpop.f32.mrb[0].mxu0
        %v2418 = vadd.f32 %v2273, %v2417
        %v2419 = vpop.f32.mrb[0].mxu0
        %2420 = vmatprep.mubr.f32.mxu0 %v1846
        %2421 = vmatmul.mubr.f32.gmra.mrb[0].mxu0 %v1845
        %v2422 = vpop.f32.mrb[0].mxu0
        %v2423 = vadd.f32 %v2278, %v2422
        %v2424 = vpop.f32.mrb[0].mxu0
        %2425 = vmatprep.mubr.f32.mxu0 %v1848
        %2426 = vmatmul.mubr.f32.gmra.mrb[0].mxu0 %v1847
        %v2427 = vpop.f32.mrb[0].mxu0
        %v2428 = vadd.f32 %v2283, %v2427
        %v2429 = vpop.f32.mrb[0].mxu0
        %2430 = vmatprep.mubr.f32.mxu0 %v1850
        %2431 = vmatmul.mubr.f32.gmra.mrb[0].mxu0 %v1849
        %v2432 = vpop.f32.mrb[0].mxu0
        %v2433 = vadd.f32 %v2288, %v2432
        %v2434 = vpop.f32.mrb[0].mxu0
        %2435 = vdwg.mxu0
        %2436 = vmatprep.subr.mxu0 0.0
        %2437 = vmatpush1.msra.mxu0 %v1915
        %2438 = vmatprep.subr.mxu0 0.0
        %2439 = vmatpush1.msra.mxu0 %v1916
        %2440 = vmatprep.subr.mxu0 0.0
        %2441 = vmatpush1.msra.mxu0 %v1917
        %2442 = vmatprep.subr.mxu0 0.0
        %2443 = vmatpush1.msra.mxu0 %v1918
        %2444 = vmatprep.subr.mxu0 0.0
        %2445 = vmatpush1.msra.mxu0 %v1919
        %2446 = vmatprep.subr.mxu0 0.0
        %2447 = vmatpush1.msra.mxu0 %v1920
        %2448 = vmatprep.subr.mxu0 0.0
        %2449 = vmatpush1.msra.mxu0 %v1921
        %2450 = vmatprep.subr.mxu0 0.0
        %2451 = vmatpush1.msra.mxu0 %v1922
        %2452 = vmatprep.subr.mxu0 0.0
        %2453 = vmatpush1.msra.mxu0 %v1923
        %2454 = vmatprep.subr.mxu0 0.0
        %2455 = vmatpush1.msra.mxu0 %v1924
        %2456 = vmatprep.subr.mxu0 0.0
        %2457 = vmatpush1.msra.mxu0 %v1925
        %2458 = vmatprep.subr.mxu0 0.0
        %2459 = vmatpush1.msra.mxu0 %v1926
        %2460 = vmatprep.subr.mxu0 0.0
        %2461 = vmatpush1.msra.mxu0 %v1927
        %2462 = vmatprep.subr.mxu0 0.0
        %2463 = vmatpush1.msra.mxu0 %v1928
        %2464 = vmatprep.subr.mxu0 0.0
        %2465 = vmatpush1.msra.mxu0 %v1929
        %2466 = vmatprep.subr.mxu0 0.0
        %2467 = vmatpush1.msra.mxu0 %v1930
        %2468 = vmatprep.subr.mxu0 0.0
        %2469 = vmatpush1.msra.mxu0 %v1931
        %2470 = vmatprep.subr.mxu0 0.0
        %2471 = vmatpush1.msra.mxu0 %v1932
        %2472 = vmatprep.subr.mxu0 0.0
        %2473 = vmatpush1.msra.mxu0 %v1933
        %2474 = vmatprep.subr.mxu0 0.0
        %2475 = vmatpush1.msra.mxu0 %v1934
        %2476 = vmatprep.subr.mxu0 0.0
        %2477 = vmatpush1.msra.mxu0 %v1935
        %2478 = vmatprep.subr.mxu0 0.0
        %2479 = vmatpush1.msra.mxu0 %v1936
        %2480 = vmatprep.subr.mxu0 0.0
        %2481 = vmatpush1.msra.mxu0 %v1937
        %2482 = vmatprep.subr.mxu0 0.0
        %2483 = vmatpush1.msra.mxu0 %v1938
        %2484 = vmatprep.subr.mxu0 0.0
        %2485 = vmatpush1.msra.mxu0 %v1939
        %2486 = vmatprep.subr.mxu0 0.0
        %2487 = vmatpush1.msra.mxu0 %v1940
        %2488 = vmatprep.subr.mxu0 0.0
        %2489 = vmatpush1.msra.mxu0 %v1941
        %2490 = vmatprep.subr.mxu0 0.0
        %2491 = vmatpush1.msra.mxu0 %v1942
        %2492 = vmatprep.subr.mxu0 0.0
        %2493 = vmatpush1.msra.mxu0 %v1943
        %2494 = vmatprep.subr.mxu0 0.0
        %2495 = vmatpush1.msra.mxu0 %v1944
        %2496 = vmatprep.subr.mxu0 0.0
        %2497 = vmatpush1.msra.mxu0 %v1945
        %2498 = vmatprep.subr.mxu0 0.0
        %2499 = vmatpush1.msra.mxu0 %v1946
        %2500 = vmatprep.mubr.f32.mxu0 %v2109
        %2501 = vmatmul.mubr.f32.gmra.mrb[0].mxu0 %v2108
        %v2502 = vpop.f32.mrb[0].mxu0
        %v2503 = vadd.f32 %v2358, %v2502
        %v2504 = vpop.f32.mrb[0].mxu0
        %2505 = vmatprep.mubr.f32.mxu0 %v2111
        %2506 = vmatmul.mubr.f32.gmra.mrb[0].mxu0 %v2110
        %v2507 = vpop.f32.mrb[0].mxu0
        %v2508 = vadd.f32 %v2363, %v2507
        %v2509 = vpop.f32.mrb[0].mxu0
        %2510 = vmatprep.mubr.f32.mxu0 %v2113
        %2511 = vmatmul.mubr.f32.gmra.mrb[0].mxu0 %v2112
        %v2512 = vpop.f32.mrb[0].mxu0
        %v2513 = vadd.f32 %v2368, %v2512
        %v2514 = vpop.f32.mrb[0].mxu0
        %2515 = vmatprep.mubr.f32.mxu0 %v2115
        %2516 = vmatmul.mubr.f32.gmra.mrb[0].mxu0 %v2114
        %v2517 = vpop.f32.mrb[0].mxu0
        %v2518 = vadd.f32 %v2373, %v2517
        %v2519 = vpop.f32.mrb[0].mxu0
        %2520 = vmatprep.mubr.f32.mxu0 %v2117
        %2521 = vmatmul.mubr.f32.gmra.mrb[0].mxu0 %v2116
        %v2522 = vpop.f32.mrb[0].mxu0
        %v2523 = vadd.f32 %v2378, %v2522
        %v2524 = vpop.f32.mrb[0].mxu0
        %2525 = vmatprep.mubr.f32.mxu0 %v2119
        %2526 = vmatmul.mubr.f32.gmra.mrb[0].mxu0 %v2118
        %v2527 = vpop.f32.mrb[0].mxu0
        %v2528 = vadd.f32 %v2383, %v2527
        %v2529 = vpop.f32.mrb[0].mxu0
        %2530 = vmatprep.mubr.f32.mxu0 %v2121
        %2531 = vmatmul.mubr.f32.gmra.mrb[0].mxu0 %v2120
        %v2532 = vpop.f32.mrb[0].mxu0
        %v2533 = vadd.f32 %v2388, %v2532
        %v2534 = vpop.f32.mrb[0].mxu0
        %2535 = vmatprep.mubr.f32.mxu0 %v2123
        %2536 = vmatmul.mubr.f32.gmra.mrb[0].mxu0 %v2122
        %v2537 = vpop.f32.mrb[0].mxu0
        %v2538 = vadd.f32 %v2393, %v2537
        %v2539 = vpop.f32.mrb[0].mxu0
        %2540 = vmatprep.mubr.f32.mxu0 %v2125
        %2541 = vmatmul.mubr.f32.gmra.mrb[0].mxu0 %v2124
        %v2542 = vpop.f32.mrb[0].mxu0
        %v2543 = vadd.f32 %v2398, %v2542
        %v2544 = vpop.f32.mrb[0].mxu0
        %2545 = vmatprep.mubr.f32.mxu0 %v2127
        %2546 = vmatmul.mubr.f32.gmra.mrb[0].mxu0 %v2126
        %v2547 = vpop.f32.mrb[0].mxu0
        %v2548 = vadd.f32 %v2403, %v2547
        %v2549 = vpop.f32.mrb[0].mxu0
        %2550 = vmatprep.mubr.f32.mxu0 %v2129
        %2551 = vmatmul.mubr.f32.gmra.mrb[0].mxu0 %v2128
        %v2552 = vpop.f32.mrb[0].mxu0
        %v2553 = vadd.f32 %v2408, %v2552
        %v2554 = vpop.f32.mrb[0].mxu0
        %2555 = vmatprep.mubr.f32.mxu0 %v2131
        %2556 = vmatmul.mubr.f32.gmra.mrb[0].mxu0 %v2130
        %v2557 = vpop.f32.mrb[0].mxu0
        %v2558 = vadd.f32 %v2413, %v2557
        %v2559 = vpop.f32.mrb[0].mxu0
        %2560 = vmatprep.mubr.f32.mxu0 %v2133
        %2561 = vmatmul.mubr.f32.gmra.mrb[0].mxu0 %v2132
        %v2562 = vpop.f32.mrb[0].mxu0
        %v2563 = vadd.f32 %v2418, %v2562
        %v2564 = vpop.f32.mrb[0].mxu0
        %2565 = vmatprep.mubr.f32.mxu0 %v2135
        %2566 = vmatmul.mubr.f32.gmra.mrb[0].mxu0 %v2134
        %v2567 = vpop.f32.mrb[0].mxu0
        %v2568 = vadd.f32 %v2423, %v2567
        %v2569 = vpop.f32.mrb[0].mxu0
        %2570 = vmatprep.mubr.f32.mxu0 %v2137
        %2571 = vmatmul.mubr.f32.gmra.mrb[0].mxu0 %v2136
        %v2572 = vpop.f32.mrb[0].mxu0
        %v2573 = vadd.f32 %v2428, %v2572
        %v2574 = vpop.f32.mrb[0].mxu0
        %2575 = vmatprep.mubr.f32.mxu0 %v2139
        %2576 = vmatmul.mubr.f32.gmra.mrb[0].mxu0 %v2138
        %v2577 = vpop.f32.mrb[0].mxu0
        %v2578 = vadd.f32 %v2433, %v2577
        %v2579 = vpop.f32.mrb[0].mxu0
        %2580 = vdwg.mxu0
        %v2581 = vmax.f32 %v2503, 0.0
        %v2582 = vmax.f32 %v2508, 0.0
        %v2583 = vmax.f32 %v2513, 0.0
        %v2584 = vmax.f32 %v2518, 0.0
        %v2585 = vmax.f32 %v2523, 0.0
        %v2586 = vmax.f32 %v2528, 0.0
        %v2587 = vmax.f32 %v2533, 0.0
        %v2588 = vmax.f32 %v2538, 0.0
        %v2589 = vmax.f32 %v2543, 0.0
        %v2590 = vmax.f32 %v2548, 0.0
        %v2591 = vmax.f32 %v2553, 0.0
        %v2592 = vmax.f32 %v2558, 0.0
        %v2593 = vmax.f32 %v2563, 0.0
        %v2594 = vmax.f32 %v2568, 0.0
        %v2595 = vmax.f32 %v2573, 0.0
        %v2596 = vmax.f32 %v2578, 0.0
        %v2597 = vadd.f32 %v2581, %v2582
        %v2598 = vrot.slane %v2597, 4
        %v2599 = vadd.f32 %v2597, %v2598
        %v2600 = vrot.slane %v2599, 2
        %v2601 = vadd.f32 %v2599, %v2600
        %v2602 = vrot.slane %v2601, 1
        %v2603 = vadd.f32 %v2601, %v2602
        %v2604 = vadd.f32 %v2583, %v2584
        %v2605 = vrot.slane %v2604, 4
        %v2606 = vadd.f32 %v2604, %v2605
        %v2607 = vrot.slane %v2606, 2
        %v2608 = vadd.f32 %v2606, %v2607
        %v2609 = vrot.slane %v2608, 1
        %v2610 = vadd.f32 %v2608, %v2609
        %v2611 = vadd.f32 %v2585, %v2586
        %v2612 = vrot.slane %v2611, 4
        %v2613 = vadd.f32 %v2611, %v2612
        %v2614 = vrot.slane %v2613, 2
        %v2615 = vadd.f32 %v2613, %v2614
        %v2616 = vrot.slane %v2615, 1
        %v2617 = vadd.f32 %v2615, %v2616
        %v2618 = vadd.f32 %v2587, %v2588
        %v2619 = vrot.slane %v2618, 4
        %v2620 = vadd.f32 %v2618, %v2619
        %v2621 = vrot.slane %v2620, 2
        %v2622 = vadd.f32 %v2620, %v2621
        %v2623 = vrot.slane %v2622, 1
        %v2624 = vadd.f32 %v2622, %v2623
        %v2625 = vadd.f32 %v2589, %v2590
        %v2626 = vrot.slane %v2625, 4
        %v2627 = vadd.f32 %v2625, %v2626
        %v2628 = vrot.slane %v2627, 2
        %v2629 = vadd.f32 %v2627, %v2628
        %v2630 = vrot.slane %v2629, 1
        %v2631 = vadd.f32 %v2629, %v2630
        %v2632 = vadd.f32 %v2591, %v2592
        %v2633 = vrot.slane %v2632, 4
        %v2634 = vadd.f32 %v2632, %v2633
        %v2635 = vrot.slane %v2634, 2
        %v2636 = vadd.f32 %v2634, %v2635
        %v2637 = vrot.slane %v2636, 1
        %v2638 = vadd.f32 %v2636, %v2637
        %v2639 = vadd.f32 %v2593, %v2594
        %v2640 = vrot.slane %v2639, 4
        %v2641 = vadd.f32 %v2639, %v2640
        %v2642 = vrot.slane %v2641, 2
        %v2643 = vadd.f32 %v2641, %v2642
        %v2644 = vrot.slane %v2643, 1
        %v2645 = vadd.f32 %v2643, %v2644
        %v2646 = vadd.f32 %v2595, %v2596
        %v2647 = vrot.slane %v2646, 4
        %v2648 = vadd.f32 %v2646, %v2647
        %v2649 = vrot.slane %v2648, 2
        %v2650 = vadd.f32 %v2648, %v2649
        %v2651 = vrot.slane %v2650, 1
        %v2652 = vadd.f32 %v2650, %v2651
        %v2653 = vmul.f32 %v2603, 0.0625
        %v2654 = vmul.f32 %v2610, 0.0625
        %v2655 = vmul.f32 %v2617, 0.0625
        %v2656 = vmul.f32 %v2624, 0.0625
        %v2657 = vmul.f32 %v2631, 0.0625
        %v2658 = vmul.f32 %v2638, 0.0625
        %v2659 = vmul.f32 %v2645, 0.0625
        %v2660 = vmul.f32 %v2652, 0.0625
        %v2661 = vld [vmem:[%s7] sm:$0xff]
        %v2662 = vld [vmem:[%s7 + $0x8] sm:$0xff]
        %v2663 = vld [vmem:[%s7 + $0x10] sm:$0xff]
        %v2664 = vld [vmem:[%s7 + $0x18] sm:$0xff]
        %v2665 = vld [vmem:[%s7 + $0x20] sm:$0xff]
        %v2666 = vld [vmem:[%s7 + $0x28] sm:$0xff]
        %v2667 = vld [vmem:[%s7 + $0x30] sm:$0xff]
        %v2668 = vld [vmem:[%s7 + $0x38] sm:$0xff]
        %v2669 = vld [vmem:[%s7 + $0x40] sm:$0xff]
        %v2670 = vld [vmem:[%s7 + $0x48] sm:$0xff]
        %v2671 = vld [vmem:[%s7 + $0x50] sm:$0xff]
        %v2672 = vld [vmem:[%s7 + $0x58] sm:$0xff]
        %v2673 = vld [vmem:[%s7 + $0x60] sm:$0xff]
        %v2674 = vld [vmem:[%s7 + $0x68] sm:$0xff]
        %v2675 = vld [vmem:[%s7 + $0x70] sm:$0xff]
        %v2676 = vld [vmem:[%s7 + $0x78] sm:$0xff]
        %v2677 = vld [vmem:[%s8] sm:$0x1]
        %v2679 = vlaneseq
        %v2680 = vshrl.u32 %v2679, 7
        %v2681 = vsub.s32 0, %v2680
        %v2682 = vrot.slane %v2677, %v2681
        %vm2692 = vcmask 1041409
        %v2693 = vsel %vm2692, %v2654, %v2653
        %vm2694 = vcmask 1042434
        %v2695 = vsel %vm2694, %v2655, %v2693
        %vm2696 = vcmask 1043459
        %v2697 = vsel %vm2696, %v2656, %v2695
        %vm2698 = vcmask 1044484
        %v2699 = vsel %vm2698, %v2657, %v2697
        %vm2700 = vcmask 1045509
        %v2701 = vsel %vm2700, %v2658, %v2699
        %vm2702 = vcmask 1046534
        %v2703 = vsel %vm2702, %v2659, %v2701
        %vm2704 = vcmask 1047559
        %v2705 = vsel %vm2704, %v2660, %v2703
        %2707 = vmatprep.subr.mxu0 0.0
        %2708 = vmatpush1.msra.mxu0 %v2661
        %2709 = vmatprep.subr.mxu0 0.0
        %2710 = vmatpush1.msra.mxu0 %v2662
        %2711 = vmatprep.subr.mxu0 0.0
        %2712 = vmatpush1.msra.mxu0 %v2663
        %2713 = vmatprep.subr.mxu0 0.0
        %2714 = vmatpush1.msra.mxu0 %v2664
        %2715 = vmatprep.subr.mxu0 0.0
        %2716 = vmatpush1.msra.mxu0 %v2665
        %2717 = vmatprep.subr.mxu0 0.0
        %2718 = vmatpush1.msra.mxu0 %v2666
        %2719 = vmatprep.subr.mxu0 0.0
        %2720 = vmatpush1.msra.mxu0 %v2667
        %2721 = vmatprep.subr.mxu0 0.0
        %2722 = vmatpush1.msra.mxu0 %v2668
        %2723 = vmatprep.subr.mxu0 0.0
        %2724 = vmatpush1.msra.mxu0 %v2669
        %2725 = vmatprep.subr.mxu0 0.0
        %2726 = vmatpush1.msra.mxu0 %v2670
        %2727 = vmatprep.subr.mxu0 0.0
        %2728 = vmatpush1.msra.mxu0 %v2671
        %2729 = vmatprep.subr.mxu0 0.0
        %2730 = vmatpush1.msra.mxu0 %v2672
        %2731 = vmatprep.subr.mxu0 0.0
        %2732 = vmatpush1.msra.mxu0 %v2673
        %2733 = vmatprep.subr.mxu0 0.0
        %2734 = vmatpush1.msra.mxu0 %v2674
        %2735 = vmatprep.subr.mxu0 0.0
        %2736 = vmatpush1.msra.mxu0 %v2675
        %2737 = vmatprep.subr.mxu0 0.0
        %2738 = vmatpush1.msra.mxu0 %v2676
        %2739 = vmatprep.subr.mxu0 0.0
        %2740 = vmatpush1.msra.mxu0 0.0
        %2741 = vmatprep.subr.mxu0 0.0
        %2742 = vmatpush1.msra.mxu0 0.0
        %2743 = vmatprep.subr.mxu0 0.0
        %2744 = vmatpush1.msra.mxu0 0.0
        %2745 = vmatprep.subr.mxu0 0.0
        %2746 = vmatpush1.msra.mxu0 0.0
        %2747 = vmatprep.subr.mxu0 0.0
        %2748 = vmatpush1.msra.mxu0 0.0
        %2749 = vmatprep.subr.mxu0 0.0
        %2750 = vmatpush1.msra.mxu0 0.0
        %2751 = vmatprep.subr.mxu0 0.0
        %2752 = vmatpush1.msra.mxu0 0.0
        %2753 = vmatprep.subr.mxu0 0.0
        %2754 = vmatpush1.msra.mxu0 0.0
        %2755 = vmatprep.subr.mxu0 0.0
        %2756 = vmatpush1.msra.mxu0 0.0
        %2757 = vmatprep.subr.mxu0 0.0
        %2758 = vmatpush1.msra.mxu0 0.0
        %2759 = vmatprep.subr.mxu0 0.0
        %2760 = vmatpush1.msra.mxu0 0.0
        %2761 = vmatprep.subr.mxu0 0.0
        %2762 = vmatpush1.msra.mxu0 0.0
        %2763 = vmatprep.subr.mxu0 0.0
        %2764 = vmatpush1.msra.mxu0 0.0
        %2765 = vmatprep.subr.mxu0 0.0
        %2766 = vmatpush1.msra.mxu0 0.0
        %2767 = vmatprep.subr.mxu0 0.0
        %2768 = vmatpush1.msra.mxu0 0.0
        %2769 = vmatprep.subr.mxu0 0.0
        %2770 = vmatpush1.msra.mxu0 0.0
        %2771 = vmatprep.mubr.f32.mxu0 0.0
        %2772 = vmatmul.mubr.f32.gmra.mrb[0].mxu0 %v2705
        %v2773 = vpop.f32.mrb[0].mxu0
        %v2774 = vadd.f32 %v2682, %v2773
        %v2775 = vpop.f32.mrb[0].mxu0
        %2776 = vdwg.mxu0
        %vm2777 = vcmask 80896
        %2778 = vst.msk [vmem:[%s326] sm:$0xff] %vm2777, %v2774
        %s2779 = sand.u32 %s225, 1
        %s2780 = scalar_lea.sflag [#allocation3], %s2779
        %s2781 = sand.u32 %s225, 1
        %s2782 = smul.addr %s2781, 8
        %s2783 = scalar_lea.vmem [#allocation2], %s2782
        // Predicated region
        $region57: #{oscnn_forward.1} parent=55 // pred_check
          %p2784 = pneg %p235
        $region58: #{oscnn_forward.1} parent=55 // pred_check_branch
          %2786 = sbr.rel (%p2784) target = $region60
        $region59: #{oscnn_forward.1} parent=55 // pred_region
          %s2788 = ssub.s32 128, 128
          %2789 = vsyncadd %s2780, %s2788
          %s2790 = smul.addr %s23, 128
          %s2791 = scalar_lea.hbm %s9, %s2790
          %s2793 = sshll.u32 %s2783, 4
          %s2794 = int_to_ptr.vmem [resolvable:$true] %s2793
          %2796 = dma.vmem_to_hbm [thread:$0]  %s2794, 128, %s2791, %s2780
        $region60: #{oscnn_forward.1} parent=55 // pred_fallthru
          _
      $region56: #{oscnn_forward.1} parent=5 // pred_fallthru
        _
      %p2797 = scmp.le.s32.totalorder 2, %s18
      // Predicated region
      $region61: #{oscnn_forward.1} parent=5 // pred_check
        %p2798 = pneg %p2797
      $region62: #{oscnn_forward.1} parent=5 // pred_check_branch
        %2800 = sbr.rel (%p2798) target = $region64
      $region63: #{oscnn_forward.1} parent=5 // pred_region
        %s2801 = ssub.s32 %s18, 2
        // Predicated region
        $region65: #{oscnn_forward.1} parent=63 // pred_check
          %p2802 = pneg %p241
        $region66: #{oscnn_forward.1} parent=63 // pred_check_branch
          %2804 = sbr.rel (%p2802) target = $region68
        $region67: #{oscnn_forward.1} parent=63 // pred_region
          %s2805 = sand.u32 %s226, 1
          %s2806 = scalar_lea.sflag [#allocation3], %s2805
          %s2807 = sand.u32 %s226, 1
          %s2808 = smul.addr %s2807, 8
          %s2809 = scalar_lea.vmem [#allocation2], %s2808
          %2810 = dma.done %s2806, 128
        $region68: #{oscnn_forward.1} parent=63 // pred_fallthru
          _
      $region64: #{oscnn_forward.1} parent=5 // pred_fallthru
        _
    $region6: #{oscnn_forward.1} parent=1 // loop_footer
      %s22 = sadd.s32 1, %s18
    $region7: #{oscnn_forward.1} parent=1 // loop_footer_branch
      %17 = sbr.rel target = $region3
    $region8: #{oscnn_forward.1} parent=1 // loop_exit
      _
    %2811 = vsyncpa [#allocation3], 1
    %s2812 = scalar_lea.sflag [#allocation3], 1
    %2813 = vsyncpa %s2812, 1

</llo_original>
